<compile_context>
chip_gen: v7x
topology: tpu7x:2x2x1
jax: 0.10.0
libtpu: 0.0.40
codegen_flags: <defaults>
</compile_context>

<pallas_src>
from functools import partial

import jax
import jax.numpy as jnp
from jax.experimental import pallas as pl
from jax.experimental.pallas import tpu as pltpu

_HAS_BUFFERED = hasattr(pl, "Buffered")


# --------------------------------------------------------------------------------------------
# Kernels
# --------------------------------------------------------------------------------------------
def _ffn_kernel_resident(x_ref, w1_ref, b1_ref, w2_ref, b2_ref, o_ref):
    # Weights fully VMEM-resident (single hidden step): no accumulator scratch, direct writeback.
    # x_ref: (tm, D)  w1_ref: (D, H)  b1_ref: (1, H)  w2_ref: (H, D)  b2_ref: (1, D)  o_ref: (tm, D)
    h = jnp.dot(x_ref[...], w1_ref[...], preferred_element_type=jnp.float32) + b1_ref[...]
    h = jnp.maximum(h, 0.0)
    y = jnp.dot(h.astype(w2_ref.dtype), w2_ref[...], preferred_element_type=jnp.float32)
    # Dropout(p=0.1) in eval mode is the identity.
    o_ref[...] = (y + b2_ref[...]).astype(o_ref.dtype)


def _ffn_kernel_streamed(x_ref, w1_ref, b1_ref, w2_ref, b2_ref, o_ref, acc_ref):
    # Hidden dim streamed over grid axis 1 ("arbitrary"); f32 VMEM accumulator over h tiles.
    # x_ref: (tm, D)  w1_ref: (D, tH)  b1_ref: (1, tH)  w2_ref: (tH, D)  b2_ref: (1, D)
    h_id = pl.program_id(1)

    @pl.when(h_id == 0)
    def _():
        acc_ref[...] = jnp.zeros_like(acc_ref)

    h = jnp.dot(x_ref[...], w1_ref[...], preferred_element_type=jnp.float32) + b1_ref[...]
    h = jnp.maximum(h, 0.0)
    acc_ref[...] += jnp.dot(h.astype(w2_ref.dtype), w2_ref[...],
                            preferred_element_type=jnp.float32)

    @pl.when(h_id == pl.num_programs(1) - 1)
    def _():
        # Dropout(p=0.1) in eval mode is the identity.
        o_ref[...] = (acc_ref[...] + b2_ref[...]).astype(o_ref.dtype)


# --------------------------------------------------------------------------------------------
# Heuristics (generation-aware)
# --------------------------------------------------------------------------------------------
def _round_up(x, m):
    return ((x + m - 1) // m) * m


def _tpu_hw():
    """(vmem_bytes_per_core, tensorcores_per_chip) with conservative fallbacks."""
    vmem, cores = 64 * 1024 * 1024, 1          # safe default
    try:
        kind = jax.devices()[0].device_kind.lower()
    except Exception:
        kind = ""
    if "v7" in kind:
        vmem, cores = 64 * 1024 * 1024, 2      # v7x: 64 MiB VMEM per TC, 2 TCs/chip
    elif "v6" in kind or "v5" in kind or "v4" in kind:
        vmem, cores = 128 * 1024 * 1024, 1     # v5e/v6e: 128 MiB VMEM, 1 TC/chip
    return vmem, cores


def _pick_row_tile(M, desired, multiple, n_cores):
    """Row tile: multiple of `multiple`, <= desired.  Only on multi-TC chips do we force the
    row-step count up to a multiple of n_cores so megacore sharding is balanced; single-TC
    chips keep the largest tile (no pointless split)."""
    m_up = _round_up(M, multiple)
    tm = min(_round_up(desired, multiple), m_up)
    if n_cores > 1 and m_up > multiple:
        n_rows = -(-m_up // tm)
        if n_rows % n_cores != 0:
            n_rows = max(n_cores, _round_up(n_rows, n_cores))
            tm = max(multiple, _round_up(-(-m_up // n_rows), multiple))
    return tm


def _pick_hidden_tile(D, H, itemsize, vmem_bytes):
    """Full H when both weight matrices fit comfortably in VMEM; otherwise a lane-aligned
    divisor of H sized so double-buffered W1+W2 tiles stay inside a VMEM fraction."""
    resident_thresh = int(0.35 * vmem_bytes) if vmem_bytes >= 96 * 2**20 else int(0.22 * vmem_bytes)
    if 2 * D * H * itemsize <= resident_thresh:
        return H
    budget = int(0.30 * vmem_bytes)            # double-buffered (D,tH)+(tH,D) weight tiles
    limit = max(128, budget // (4 * D * itemsize))
    best, t = 128, 128
    while t <= min(limit, H):
        if H % t == 0:
            best = t
        t += 128
    return best


def _invariant_spec(shape, index_map):
    """Grid-invariant input: one VMEM buffer is enough (no pipelining needed)."""
    if _HAS_BUFFERED:
        return pl.BlockSpec(shape, index_map, pipeline_mode=pl.Buffered(buffer_count=1))
    return pl.BlockSpec(shape, index_map)


# --------------------------------------------------------------------------------------------
# Jitted implementation
# --------------------------------------------------------------------------------------------
@partial(jax.jit, static_argnames=("tm", "tH", "compute_dtype", "out_dtype"))
def _ffn_impl(x, w1, b1, w2, b2, *, tm, tH, compute_dtype, out_dtype):
    cdt = jnp.dtype(compute_dtype)
    odt = jnp.dtype(out_dtype)
    B, T, D = x.shape
    H = w1.shape[1]
    M = B * T

    n_rows = -(-M // tm)
    M_pad = n_rows * tm
    n_h = H // tH

    # Casts / reshape / pad fuse into the surrounding XLA program (no eager HBM round trips).
    x2 = x.reshape(M, D)
    if M_pad != M:
        x2 = jnp.pad(x2, ((0, M_pad - M), (0, 0)))
    x2 = x2.astype(cdt)
    w1c = w1.astype(cdt)
    w2c = w2.astype(cdt)
    b1f = b1.reshape(1, H).astype(jnp.float32)
    b2f = b2.reshape(1, D).astype(jnp.float32)

    vmem_bytes, _ = _tpu_hw()
    vmem_cap = int(0.8 * vmem_bytes)           # leave headroom below physical VMEM
    c_i, o_i = cdt.itemsize, odt.itemsize

    if n_h == 1:
        wbuf = 1 if _HAS_BUFFERED else 2
        vmem_need = (2 * tm * D * c_i                     # x tiles (double-buffered)
                     + 2 * tm * D * o_i                   # out tiles
                     + wbuf * 2 * D * H * c_i             # W1 + W2 (resident)
                     + wbuf * (H + D) * 4                 # biases (f32)
                     + tm * H * (4 + c_i))                # (tm,H) f32 intermediate + cast copy
        grid = (n_rows,)
        in_specs = [
            pl.BlockSpec((tm, D), lambda i: (i, 0)),
            _invariant_spec((D, H), lambda i: (0, 0)),
            _invariant_spec((1, H), lambda i: (0, 0)),
            _invariant_spec((H, D), lambda i: (0, 0)),
            _invariant_spec((1, D), lambda i: (0, 0)),
        ]
        out_specs = pl.BlockSpec((tm, D), lambda i: (i, 0))
        scratch_shapes = []
        kernel = _ffn_kernel_resident
        dims = ("parallel",)
        weight_bytes = 2 * D * H * c_i
    else:
        vmem_need = (2 * tm * D * c_i
                     + 2 * tm * D * o_i
                     + 2 * 2 * D * tH * c_i               # W1 + W2 tiles (double-buffered)
                     + 2 * tH * 4 + D * 4                 # biases (f32)
                     + tm * D * 4                         # f32 accumulator scratch
                     + tm * tH * (4 + c_i))               # (tm,tH) f32 intermediate + cast copy
        grid = (n_rows, n_h)
        in_specs = [
            pl.BlockSpec((tm, D), lambda i, h: (i, 0)),
            pl.BlockSpec((D, tH), lambda i, h: (0, h)),
            pl.BlockSpec((1, tH), lambda i, h: (0, h)),
            pl.BlockSpec((tH, D), lambda i, h: (h, 0)),
            _invariant_spec((1, D), lambda i, h: (0, 0)),
        ]
        out_specs = pl.BlockSpec((tm, D), lambda i, h: (i, 0))
        scratch_shapes = [pltpu.VMEM((tm, D), jnp.float32)]
        kernel = _ffn_kernel_streamed
        dims = ("parallel", "arbitrary")
        weight_bytes = n_rows * 2 * D * H * c_i           # weights re-streamed once per row block

    vmem_limit = int(min(max(int(1.5 * vmem_need), 32 * 2**20), vmem_cap))
    cost = pl.CostEstimate(
        flops=4 * M_pad * D * H,                          # two matmuls, 2 flops per MAC
        transcendentals=0,
        bytes_accessed=int(M_pad * D * (c_i + o_i) + weight_bytes + (H + D) * 4),
    )

    out = pl.pallas_call(
        kernel,
        out_shape=jax.ShapeDtypeStruct((M_pad, D), odt),
        grid_spec=pltpu.PrefetchScalarGridSpec(
            num_scalar_prefetch=0,
            grid=grid,
            in_specs=in_specs,
            out_specs=out_specs,
            scratch_shapes=scratch_shapes,
        ),
        compiler_params=pltpu.CompilerParams(
            dimension_semantics=dims,
            vmem_limit_bytes=vmem_limit,
        ),
        cost_estimate=cost,
    )(x2, w1c, b1f, w2c, b2f)

    if M_pad != M:
        out = out[:M]                                     # cropped writeback for padded rows
    return out.reshape(B, T, D)


# --------------------------------------------------------------------------------------------
# Public wrapper
# --------------------------------------------------------------------------------------------
def feed_forward(x, w1, b1, w2, b2, *, tm=None, tH=None, compute_dtype=None):
    """FeedForward forward pass.  x: [B, T, D] -> [B, T, D].

    w1: [D, 4D], b1: [4D], w2: [4D, D], b2: [D] (already transposed vs. PyTorch storage).
    compute_dtype: MXU operand dtype; defaults to bf16 (f32 accumulation) on all TPU generations.
    """
    B, T, D = x.shape
    H = w1.shape[1]
    M = B * T
    assert D % 128 == 0 and H % 128 == 0, "feature dims must be lane-aligned (128)"

    vmem_bytes, n_cores = _tpu_hw()
    # bf16 operands + f32 MXU accumulation: peak MXU rate on v6e/v7x and half the weight /
    # activation DMA bytes on every generation.  Override with compute_dtype=jnp.float32.
    cdt = jnp.dtype(jnp.bfloat16 if compute_dtype is None else compute_dtype)
    odt = jnp.dtype(x.dtype)
    row_multiple = 16 if cdt.itemsize < 4 else 8          # sublane packing for the row tile

    if tm is None:
        desired = 512 if vmem_bytes >= 96 * 2**20 else 256
        tm = _pick_row_tile(M, desired, row_multiple, n_cores)
    tm = int(tm)
    assert tm % row_multiple == 0, "row tile must be sublane-aligned for the compute dtype"

    if tH is None:
        tH = _pick_hidden_tile(D, H, cdt.itemsize, vmem_bytes)
    tH = int(tH)
    assert H % tH == 0 and tH % 128 == 0, "hidden tile must divide H and be lane-aligned"

    return _ffn_impl(x, w1, b1, w2, b2, tm=tm, tH=tH,
                     compute_dtype=cdt.name, out_dtype=odt.name)


# --------------------------------------------------------------------------------------------
# Demo / self-check
# --------------------------------------------------------------------------------------------
if __name__ == "__main__":
    n_embd = 256
    hidden = 4 * n_embd
    batch, seq = 4, 64            # seq == block_size of the original model; M = 256 rows

    key = jax.random.PRNGKey(0)
    kx, kw1, kw2 = jax.random.split(key, 3)
    x = jax.random.normal(kx, (batch, seq, n_embd), dtype=jnp.float32)

    # Matches GPTLanguageModel._init_weights: Linear weights ~ N(0, 0.02), biases zero.
    # Stored as [in, out] so the kernel computes x @ W + b (== x @ W_pt.T + b).
    w1 = 0.02 * jax.random.normal(kw1, (n_embd, hidden), dtype=jnp.float32)
    b1 = jnp.zeros((hidden,), jnp.float32)
    w2 = 0.02 * jax.random.normal(kw2, (hidden, n_embd), dtype=jnp.float32)
    b2 = jnp.zeros((n_embd,), jnp.float32)

    # Pure-JAX reference (eval-mode FeedForward).
    ref = (jnp.maximum(x.reshape(-1, n_embd) @ w1 + b1, 0.0) @ w2 + b2)
    ref = ref.reshape(batch, seq, n_embd)

    # 1) Default path: bf16 operands / f32 accumulation, weights fully VMEM-resident.
    y = jax.block_until_ready(feed_forward(x, w1, b1, w2, b2))
    assert y.shape == ref.shape and y.dtype == ref.dtype
    assert jnp.allclose(y, ref, atol=2e-2, rtol=2e-2)

    # 2) f32 operands (tight tolerance), resident-weight kernel.
    y_f32 = jax.block_until_ready(feed_forward(x, w1, b1, w2, b2, compute_dtype=jnp.float32))
    assert jnp.allclose(y_f32, ref, atol=1e-4, rtol=1e-4)

    # 3) Hidden dim streamed in two tiles (exercises the accumulator / reduction path).
    y_str = jax.block_until_ready(
        feed_forward(x, w1, b1, w2, b2, tH=hidden // 2, compute_dtype=jnp.float32))
    assert jnp.allclose(y_str, ref, atol=1e-4, rtol=1e-4)

    # 4) Row count not divisible by the tile (exercises zero-pad + cropped writeback).
    y_pad = jax.block_until_ready(
        feed_forward(x, w1, b1, w2, b2, tm=96, compute_dtype=jnp.float32))
    assert jnp.allclose(y_pad, ref, atol=1e-4, rtol=1e-4)

    print("KERNEL_OK")
</pallas_src>

<mosaic_0001>
module attributes {stable_mosaic.version = 11 : i64} {
  func.func @_ffn_kernel_resident(%arg0: i32, %arg1: memref<256x256xbf16, #tpu.memory_space<vmem>>, %arg2: memref<256x1024xbf16, #tpu.memory_space<vmem>>, %arg3: memref<1x1024xf32, #tpu.memory_space<vmem>>, %arg4: memref<1024x256xbf16, #tpu.memory_space<vmem>>, %arg5: memref<1x256xf32, #tpu.memory_space<vmem>>, %arg6: memref<256x256xf32, #tpu.memory_space<vmem>>) attributes {dimension_semantics = [#tpu.dimension_semantics<parallel>], iteration_bounds = array<i64: 1>, scalar_prefetch = 0 : i64, scratch_operands = 0 : i64, tpu.core_type = #tpu.core_type<tc>, window_params = [{transform_indices = @transform_0, window_bounds = array<i64: 256, 256>}, {pipeline_mode = #tpu.pipeline_mode<synchronous>, transform_indices = @transform_1, window_bounds = array<i64: 256, 1024>}, {pipeline_mode = #tpu.pipeline_mode<synchronous>, transform_indices = @transform_2, window_bounds = array<i64: 1, 1024>}, {pipeline_mode = #tpu.pipeline_mode<synchronous>, transform_indices = @transform_3, window_bounds = array<i64: 1024, 256>}, {pipeline_mode = #tpu.pipeline_mode<synchronous>, transform_indices = @transform_4, window_bounds = array<i64: 1, 256>}, {transform_indices = @transform_5, window_bounds = array<i64: 256, 256>}]} {
    %c0 = arith.constant 0 : index
    %c0_0 = arith.constant 0 : index
    %0 = vector.load %arg1[%c0, %c0_0] : memref<256x256xbf16, #tpu.memory_space<vmem>>, vector<256x256xbf16>
    %c0_1 = arith.constant 0 : index
    %c0_2 = arith.constant 0 : index
    %1 = vector.load %arg2[%c0_1, %c0_2] : memref<256x1024xbf16, #tpu.memory_space<vmem>>, vector<256x1024xbf16>
    %cst = arith.constant dense<0.000000e+00> : vector<256x1024xf32>
    %2 = tpu.matmul %0, %1, %cst {dimension_numbers = #tpu.dot_dimension_numbers<[1], [0], [0], [1], [0, 0, 1, 1], [], []>} : vector<256x256xbf16>, vector<256x1024xbf16>, vector<256x1024xf32> -> vector<256x1024xf32>
    %c0_3 = arith.constant 0 : index
    %c0_4 = arith.constant 0 : index
    %3 = vector.load %arg3[%c0_3, %c0_4] : memref<1x1024xf32, #tpu.memory_space<vmem>>, vector<1x1024xf32>
    %4 = vector.broadcast %3 : vector<1x1024xf32> to vector<256x1024xf32>
    %5 = arith.addf %2, %4 : vector<256x1024xf32>
    %cst_5 = arith.constant 0.000000e+00 : f32
    %6 = vector.broadcast %cst_5 : f32 to vector<256x1024xf32>
    %7 = arith.maximumf %5, %6 : vector<256x1024xf32>
    %8 = arith.truncf %7 : vector<256x1024xf32> to vector<256x1024xbf16>
    %c0_6 = arith.constant 0 : index
    %c0_7 = arith.constant 0 : index
    %9 = vector.load %arg4[%c0_6, %c0_7] : memref<1024x256xbf16, #tpu.memory_space<vmem>>, vector<1024x256xbf16>
    %cst_8 = arith.constant dense<0.000000e+00> : vector<256x256xf32>
    %10 = tpu.matmul %8, %9, %cst_8 {dimension_numbers = #tpu.dot_dimension_numbers<[1], [0], [0], [1], [0, 0, 1, 1], [], []>} : vector<256x1024xbf16>, vector<1024x256xbf16>, vector<256x256xf32> -> vector<256x256xf32>
    %c0_9 = arith.constant 0 : index
    %c0_10 = arith.constant 0 : index
    %11 = vector.load %arg5[%c0_9, %c0_10] : memref<1x256xf32, #tpu.memory_space<vmem>>, vector<1x256xf32>
    %12 = vector.broadcast %11 : vector<1x256xf32> to vector<256x256xf32>
    %13 = arith.addf %10, %12 : vector<256x256xf32>
    %c0_11 = arith.constant 0 : index
    %c0_12 = arith.constant 0 : index
    %14 = vector.load %arg6[%c0_11, %c0_12] : memref<256x256xf32, #tpu.memory_space<vmem>>, vector<256x256xf32>
    tpu.vector_store %arg6[%c0_11, %c0_12], %13 {strides = array<i32>} : memref<256x256xf32, #tpu.memory_space<vmem>>, vector<256x256xf32>,
    return
  }
  func.func @transform_0(%arg0: i32) -> (i32, i32) {
    %c0_i32 = arith.constant 0 : i32
    %c0_i32_0 = arith.constant 0 : i32
    return %arg0, %c0_i32 : i32, i32
  }
  func.func @transform_1(%arg0: i32) -> (i32, i32) {
    %c0_i32 = arith.constant 0 : i32
    %c0_i32_0 = arith.constant 0 : i32
    %c0_i32_1 = arith.constant 0 : i32
    return %c0_i32, %c0_i32_0 : i32, i32
  }
  func.func @transform_2(%arg0: i32) -> (i32, i32) {
    %c0_i32 = arith.constant 0 : i32
    %c0_i32_0 = arith.constant 0 : i32
    %c0_i32_1 = arith.constant 0 : i32
    return %c0_i32, %c0_i32_0 : i32, i32
  }
  func.func @transform_3(%arg0: i32) -> (i32, i32) {
    %c0_i32 = arith.constant 0 : i32
    %c0_i32_0 = arith.constant 0 : i32
    %c0_i32_1 = arith.constant 0 : i32
    return %c0_i32, %c0_i32_0 : i32, i32
  }
  func.func @transform_4(%arg0: i32) -> (i32, i32) {
    %c0_i32 = arith.constant 0 : i32
    %c0_i32_0 = arith.constant 0 : i32
    %c0_i32_1 = arith.constant 0 : i32
    return %c0_i32, %c0_i32_0 : i32, i32
  }
  func.func @transform_5(%arg0: i32) -> (i32, i32) {
    %c0_i32 = arith.constant 0 : i32
    %c0_i32_0 = arith.constant 0 : i32
    return %arg0, %c0_i32 : i32, i32
  }
}

</mosaic_0001>

<llo_original>
// kernel: _ffn_impl.1
$region0: #{_ffn_impl.1}
  #allocation0 [shape = 'u32[]', space=smem, size = 0x4, offset = 0x4, fixed_abs, tag = 'smem constant byte address 0x4 - core index']
  #allocation1 [shape = 'u32[144,128]{1,0:T(1,128)}', space=vmem, size = 0x12000, scoped, tag = 'internal scratch']
  %s0 = inlined_call_operand.vmem [shape: bf16[256,256], index: 0, kind: input, shape index: {}]
  %s1 = inlined_call_operand.vmem [shape: bf16[256,1024], index: 1, kind: input, shape index: {}]
  %s2 = inlined_call_operand.vmem [shape: f32[1,1024], index: 2, kind: input, shape index: {}]
  %s3 = inlined_call_operand.vmem [shape: bf16[1024,256], index: 3, kind: input, shape index: {}]
  %s4 = inlined_call_operand.vmem [shape: f32[1,256], index: 4, kind: input, shape index: {}]
  %s5 = inlined_call_operand.hbm [shape: f32[256,256], index: 5, kind: output, shape index: {}]
  %s6 = sld [smem:[#allocation0]]
  $region30: #{_ffn_impl.1} parent=0
    _
  %s8 = ssub.s32 1, %s6
  %s9 = scalar_select 0, %s8, %s6
  $region1: #{_ffn_impl.1} parent=0
    #allocation2 [shape = 'u8[262144]{0}', space=vmem, size = 0x40000, scoped, tag = 'output window, operand 0, single buffered']
    #allocation3 [shape = 's32[1]{0}', space=sflag, size = 0x4, scoped, tag = 'scoped memory for _ffn_impl.1']
    %10 = vsyncpa [#allocation3], 0
    // Predicated region
    $region2: #{_ffn_impl.1} parent=1 // pred_check
      _
    $region3: #{_ffn_impl.1} parent=1 // pred_check_branch
      %12 = sbr.rel (0) target = $region5
    $region4: #{_ffn_impl.1} parent=1 // pred_region
      _
    $region5: #{_ffn_impl.1} parent=1 // pred_fallthru
      _
    // Predicated region
    $region6: #{_ffn_impl.1} parent=1 // pred_check
      _
    $region7: #{_ffn_impl.1} parent=1 // pred_check_branch
      %14 = sbr.rel (0) target = $region9
    $region8: #{_ffn_impl.1} parent=1 // pred_region
      _
    $region9: #{_ffn_impl.1} parent=1 // pred_fallthru
      _
    // Predicated region
    $region10: #{_ffn_impl.1} parent=1 // pred_check
      _
    $region11: #{_ffn_impl.1} parent=1 // pred_check_branch
      %16 = sbr.rel (0) target = $region13
    $region12: #{_ffn_impl.1} parent=1 // pred_region
      _
    $region13: #{_ffn_impl.1} parent=1 // pred_fallthru
      _
    // Predicated region
    $region14: #{_ffn_impl.1} parent=1 // pred_check
      _
    $region15: #{_ffn_impl.1} parent=1 // pred_check_branch
      %18 = sbr.rel (0) target = $region17
    $region16: #{_ffn_impl.1} parent=1 // pred_region
      _
    $region17: #{_ffn_impl.1} parent=1 // pred_fallthru
      _
    // Predicated region
    $region18: #{_ffn_impl.1} parent=1 // pred_check
      _
    $region19: #{_ffn_impl.1} parent=1 // pred_check_branch
      %20 = sbr.rel (0) target = $region21
    $region20: #{_ffn_impl.1} parent=1 // pred_region
      _
    $region21: #{_ffn_impl.1} parent=1 // pred_fallthru
      _
    %v21 = vld [vmem:[%s0] sm:$0xff]
    %v22 = vld [vmem:[%s0 + $0x8] sm:$0xff]
    %v23 = vld [vmem:[%s0 + $0x10] sm:$0xff]
    %v24 = vld [vmem:[%s0 + $0x18] sm:$0xff]
    %v25 = vld [vmem:[%s0 + $0x20] sm:$0xff]
    %v26 = vld [vmem:[%s0 + $0x28] sm:$0xff]
    %v27 = vld [vmem:[%s0 + $0x30] sm:$0xff]
    %v28 = vld [vmem:[%s0 + $0x38] sm:$0xff]
    %v29 = vld [vmem:[%s0 + $0x40] sm:$0xff]
    %v30 = vld [vmem:[%s0 + $0x48] sm:$0xff]
    %v31 = vld [vmem:[%s0 + $0x50] sm:$0xff]
    %v32 = vld [vmem:[%s0 + $0x58] sm:$0xff]
    %v33 = vld [vmem:[%s0 + $0x60] sm:$0xff]
    %v34 = vld [vmem:[%s0 + $0x68] sm:$0xff]
    %v35 = vld [vmem:[%s0 + $0x70] sm:$0xff]
    %v36 = vld [vmem:[%s0 + $0x78] sm:$0xff]
    %v37 = vld [vmem:[%s0 + $0x80] sm:$0xff]
    %v38 = vld [vmem:[%s0 + $0x88] sm:$0xff]
    %v39 = vld [vmem:[%s0 + $0x90] sm:$0xff]
    %v40 = vld [vmem:[%s0 + $0x98] sm:$0xff]
    %v41 = vld [vmem:[%s0 + $0xa0] sm:$0xff]
    %v42 = vld [vmem:[%s0 + $0xa8] sm:$0xff]
    %v43 = vld [vmem:[%s0 + $0xb0] sm:$0xff]
    %v44 = vld [vmem:[%s0 + $0xb8] sm:$0xff]
    %v45 = vld [vmem:[%s0 + $0xc0] sm:$0xff]
    %v46 = vld [vmem:[%s0 + $0xc8] sm:$0xff]
    %v47 = vld [vmem:[%s0 + $0xd0] sm:$0xff]
    %v48 = vld [vmem:[%s0 + $0xd8] sm:$0xff]
    %v49 = vld [vmem:[%s0 + $0xe0] sm:$0xff]
    %v50 = vld [vmem:[%s0 + $0xe8] sm:$0xff]
    %v51 = vld [vmem:[%s0 + $0xf0] sm:$0xff]
    %v52 = vld [vmem:[%s0 + $0xf8] sm:$0xff]
    %v53 = vld [vmem:[%s1] sm:$0xff]
    %v54 = vld [vmem:[%s1 + $0x8] sm:$0xff]
    %v55 = vld [vmem:[%s1 + $0x10] sm:$0xff]
    %v56 = vld [vmem:[%s1 + $0x18] sm:$0xff]
    %v57 = vld [vmem:[%s1 + $0x20] sm:$0xff]
    %v58 = vld [vmem:[%s1 + $0x28] sm:$0xff]
    %v59 = vld [vmem:[%s1 + $0x30] sm:$0xff]
    %v60 = vld [vmem:[%s1 + $0x38] sm:$0xff]
    %v61 = vld [vmem:[%s1 + $0x40] sm:$0xff]
    %v62 = vld [vmem:[%s1 + $0x48] sm:$0xff]
    %v63 = vld [vmem:[%s1 + $0x50] sm:$0xff]
    %v64 = vld [vmem:[%s1 + $0x58] sm:$0xff]
    %v65 = vld [vmem:[%s1 + $0x60] sm:$0xff]
    %v66 = vld [vmem:[%s1 + $0x68] sm:$0xff]
    %v67 = vld [vmem:[%s1 + $0x70] sm:$0xff]
    %v68 = vld [vmem:[%s1 + $0x78] sm:$0xff]
    %v69 = vld [vmem:[%s1 + $0x80] sm:$0xff]
    %v70 = vld [vmem:[%s1 + $0x88] sm:$0xff]
    %v71 = vld [vmem:[%s1 + $0x90] sm:$0xff]
    %v72 = vld [vmem:[%s1 + $0x98] sm:$0xff]
    %v73 = vld [vmem:[%s1 + $0xa0] sm:$0xff]
    %v74 = vld [vmem:[%s1 + $0xa8] sm:$0xff]
    %v75 = vld [vmem:[%s1 + $0xb0] sm:$0xff]
    %v76 = vld [vmem:[%s1 + $0xb8] sm:$0xff]
    %v77 = vld [vmem:[%s1 + $0xc0] sm:$0xff]
    %v78 = vld [vmem:[%s1 + $0xc8] sm:$0xff]
    %v79 = vld [vmem:[%s1 + $0xd0] sm:$0xff]
    %v80 = vld [vmem:[%s1 + $0xd8] sm:$0xff]
    %v81 = vld [vmem:[%s1 + $0xe0] sm:$0xff]
    %v82 = vld [vmem:[%s1 + $0xe8] sm:$0xff]
    %v83 = vld [vmem:[%s1 + $0xf0] sm:$0xff]
    %v84 = vld [vmem:[%s1 + $0xf8] sm:$0xff]
    %v85 = vld [vmem:[%s1 + $0x100] sm:$0xff]
    %v86 = vld [vmem:[%s1 + $0x108] sm:$0xff]
    %v87 = vld [vmem:[%s1 + $0x110] sm:$0xff]
    %v88 = vld [vmem:[%s1 + $0x118] sm:$0xff]
    %v89 = vld [vmem:[%s1 + $0x120] sm:$0xff]
    %v90 = vld [vmem:[%s1 + $0x128] sm:$0xff]
    %v91 = vld [vmem:[%s1 + $0x130] sm:$0xff]
    %v92 = vld [vmem:[%s1 + $0x138] sm:$0xff]
    %v93 = vld [vmem:[%s1 + $0x140] sm:$0xff]
    %v94 = vld [vmem:[%s1 + $0x148] sm:$0xff]
    %v95 = vld [vmem:[%s1 + $0x150] sm:$0xff]
    %v96 = vld [vmem:[%s1 + $0x158] sm:$0xff]
    %v97 = vld [vmem:[%s1 + $0x160] sm:$0xff]
    %v98 = vld [vmem:[%s1 + $0x168] sm:$0xff]
    %v99 = vld [vmem:[%s1 + $0x170] sm:$0xff]
    %v100 = vld [vmem:[%s1 + $0x178] sm:$0xff]
    %v101 = vld [vmem:[%s1 + $0x180] sm:$0xff]
    %v102 = vld [vmem:[%s1 + $0x188] sm:$0xff]
    %v103 = vld [vmem:[%s1 + $0x190] sm:$0xff]
    %v104 = vld [vmem:[%s1 + $0x198] sm:$0xff]
    %v105 = vld [vmem:[%s1 + $0x1a0] sm:$0xff]
    %v106 = vld [vmem:[%s1 + $0x1a8] sm:$0xff]
    %v107 = vld [vmem:[%s1 + $0x1b0] sm:$0xff]
    %v108 = vld [vmem:[%s1 + $0x1b8] sm:$0xff]
    %v109 = vld [vmem:[%s1 + $0x1c0] sm:$0xff]
    %v110 = vld [vmem:[%s1 + $0x1c8] sm:$0xff]
    %v111 = vld [vmem:[%s1 + $0x1d0] sm:$0xff]
    %v112 = vld [vmem:[%s1 + $0x1d8] sm:$0xff]
    %v113 = vld [vmem:[%s1 + $0x1e0] sm:$0xff]
    %v114 = vld [vmem:[%s1 + $0x1e8] sm:$0xff]
    %v115 = vld [vmem:[%s1 + $0x1f0] sm:$0xff]
    %v116 = vld [vmem:[%s1 + $0x1f8] sm:$0xff]
    %v117 = vld [vmem:[%s1 + $0x200] sm:$0xff]
    %v118 = vld [vmem:[%s1 + $0x208] sm:$0xff]
    %v119 = vld [vmem:[%s1 + $0x210] sm:$0xff]
    %v120 = vld [vmem:[%s1 + $0x218] sm:$0xff]
    %v121 = vld [vmem:[%s1 + $0x220] sm:$0xff]
    %v122 = vld [vmem:[%s1 + $0x228] sm:$0xff]
    %v123 = vld [vmem:[%s1 + $0x230] sm:$0xff]
    %v124 = vld [vmem:[%s1 + $0x238] sm:$0xff]
    %v125 = vld [vmem:[%s1 + $0x240] sm:$0xff]
    %v126 = vld [vmem:[%s1 + $0x248] sm:$0xff]
    %v127 = vld [vmem:[%s1 + $0x250] sm:$0xff]
    %v128 = vld [vmem:[%s1 + $0x258] sm:$0xff]
    %v129 = vld [vmem:[%s1 + $0x260] sm:$0xff]
    %v130 = vld [vmem:[%s1 + $0x268] sm:$0xff]
    %v131 = vld [vmem:[%s1 + $0x270] sm:$0xff]
    %v132 = vld [vmem:[%s1 + $0x278] sm:$0xff]
    %v133 = vld [vmem:[%s1 + $0x280] sm:$0xff]
    %v134 = vld [vmem:[%s1 + $0x288] sm:$0xff]
    %v135 = vld [vmem:[%s1 + $0x290] sm:$0xff]
    %v136 = vld [vmem:[%s1 + $0x298] sm:$0xff]
    %v137 = vld [vmem:[%s1 + $0x2a0] sm:$0xff]
    %v138 = vld [vmem:[%s1 + $0x2a8] sm:$0xff]
    %v139 = vld [vmem:[%s1 + $0x2b0] sm:$0xff]
    %v140 = vld [vmem:[%s1 + $0x2b8] sm:$0xff]
    %v141 = vld [vmem:[%s1 + $0x2c0] sm:$0xff]
    %v142 = vld [vmem:[%s1 + $0x2c8] sm:$0xff]
    %v143 = vld [vmem:[%s1 + $0x2d0] sm:$0xff]
    %v144 = vld [vmem:[%s1 + $0x2d8] sm:$0xff]
    %v145 = vld [vmem:[%s1 + $0x2e0] sm:$0xff]
    %v146 = vld [vmem:[%s1 + $0x2e8] sm:$0xff]
    %v147 = vld [vmem:[%s1 + $0x2f0] sm:$0xff]
    %v148 = vld [vmem:[%s1 + $0x2f8] sm:$0xff]
    %v149 = vld [vmem:[%s1 + $0x300] sm:$0xff]
    %v150 = vld [vmem:[%s1 + $0x308] sm:$0xff]
    %v151 = vld [vmem:[%s1 + $0x310] sm:$0xff]
    %v152 = vld [vmem:[%s1 + $0x318] sm:$0xff]
    %v153 = vld [vmem:[%s1 + $0x320] sm:$0xff]
    %v154 = vld [vmem:[%s1 + $0x328] sm:$0xff]
    %v155 = vld [vmem:[%s1 + $0x330] sm:$0xff]
    %v156 = vld [vmem:[%s1 + $0x338] sm:$0xff]
    %v157 = vld [vmem:[%s1 + $0x340] sm:$0xff]
    %v158 = vld [vmem:[%s1 + $0x348] sm:$0xff]
    %v159 = vld [vmem:[%s1 + $0x350] sm:$0xff]
    %v160 = vld [vmem:[%s1 + $0x358] sm:$0xff]
    %v161 = vld [vmem:[%s1 + $0x360] sm:$0xff]
    %v162 = vld [vmem:[%s1 + $0x368] sm:$0xff]
    %v163 = vld [vmem:[%s1 + $0x370] sm:$0xff]
    %v164 = vld [vmem:[%s1 + $0x378] sm:$0xff]
    %v165 = vld [vmem:[%s1 + $0x380] sm:$0xff]
    %v166 = vld [vmem:[%s1 + $0x388] sm:$0xff]
    %v167 = vld [vmem:[%s1 + $0x390] sm:$0xff]
    %v168 = vld [vmem:[%s1 + $0x398] sm:$0xff]
    %v169 = vld [vmem:[%s1 + $0x3a0] sm:$0xff]
    %v170 = vld [vmem:[%s1 + $0x3a8] sm:$0xff]
    %v171 = vld [vmem:[%s1 + $0x3b0] sm:$0xff]
    %v172 = vld [vmem:[%s1 + $0x3b8] sm:$0xff]
    %v173 = vld [vmem:[%s1 + $0x3c0] sm:$0xff]
    %v174 = vld [vmem:[%s1 + $0x3c8] sm:$0xff]
    %v175 = vld [vmem:[%s1 + $0x3d0] sm:$0xff]
    %v176 = vld [vmem:[%s1 + $0x3d8] sm:$0xff]
    %v177 = vld [vmem:[%s1 + $0x3e0] sm:$0xff]
    %v178 = vld [vmem:[%s1 + $0x3e8] sm:$0xff]
    %v179 = vld [vmem:[%s1 + $0x3f0] sm:$0xff]
    %v180 = vld [vmem:[%s1 + $0x3f8] sm:$0xff]
    %v181 = vld [vmem:[%s2] sm:$0xff]
    %v183 = vlaneseq
    %v184 = vshrl.u32 %v183, 7
    %v185 = vsub.s32 0, %v184
    %v186 = vrot.slane %v181, %v185
    %v187 = vlaneseq
    %v188 = vshrl.u32 %v187, 7
    %v189 = vsub.s32 1, %v188
    %v190 = vrot.slane %v181, %v189
    %v191 = vlaneseq
    %v192 = vshrl.u32 %v191, 7
    %v193 = vsub.s32 2, %v192
    %v194 = vrot.slane %v181, %v193
    %v195 = vlaneseq
    %v196 = vshrl.u32 %v195, 7
    %v197 = vsub.s32 3, %v196
    %v198 = vrot.slane %v181, %v197
    %v199 = vlaneseq
    %v200 = vshrl.u32 %v199, 7
    %v201 = vsub.s32 4, %v200
    %v202 = vrot.slane %v181, %v201
    %v203 = vlaneseq
    %v204 = vshrl.u32 %v203, 7
    %v205 = vsub.s32 5, %v204
    %v206 = vrot.slane %v181, %v205
    %v207 = vlaneseq
    %v208 = vshrl.u32 %v207, 7
    %v209 = vsub.s32 6, %v208
    %v210 = vrot.slane %v181, %v209
    %v211 = vlaneseq
    %v212 = vshrl.u32 %v211, 7
    %v213 = vsub.s32 7, %v212
    %v214 = vrot.slane %v181, %v213
    %v255 = vunpack.c.l.b16 %v21
    %v256 = vunpack.c.h.b16 %v21
    %v257 = vunpack.c.l.b16 %v22
    %v258 = vunpack.c.h.b16 %v22
    %v259 = vunpack.c.l.b16 %v23
    %v260 = vunpack.c.h.b16 %v23
    %v261 = vunpack.c.l.b16 %v24
    %v262 = vunpack.c.h.b16 %v24
    %v263 = vunpack.c.l.b16 %v25
    %v264 = vunpack.c.h.b16 %v25
    %v265 = vunpack.c.l.b16 %v26
    %v266 = vunpack.c.h.b16 %v26
    %v267 = vunpack.c.l.b16 %v27
    %v268 = vunpack.c.h.b16 %v27
    %v269 = vunpack.c.l.b16 %v28
    %v270 = vunpack.c.h.b16 %v28
    %v271 = vunpack.c.l.b16 %v29
    %v272 = vunpack.c.h.b16 %v29
    %v273 = vunpack.c.l.b16 %v30
    %v274 = vunpack.c.h.b16 %v30
    %v275 = vunpack.c.l.b16 %v31
    %v276 = vunpack.c.h.b16 %v31
    %v277 = vunpack.c.l.b16 %v32
    %v278 = vunpack.c.h.b16 %v32
    %v279 = vunpack.c.l.b16 %v33
    %v280 = vunpack.c.h.b16 %v33
    %v281 = vunpack.c.l.b16 %v34
    %v282 = vunpack.c.h.b16 %v34
    %v283 = vunpack.c.l.b16 %v35
    %v284 = vunpack.c.h.b16 %v35
    %v285 = vunpack.c.l.b16 %v36
    %v286 = vunpack.c.h.b16 %v36
    %v287 = vunpack.c.l.b16 %v37
    %v288 = vunpack.c.h.b16 %v37
    %v289 = vunpack.c.l.b16 %v38
    %v290 = vunpack.c.h.b16 %v38
    %v291 = vunpack.c.l.b16 %v39
    %v292 = vunpack.c.h.b16 %v39
    %v293 = vunpack.c.l.b16 %v40
    %v294 = vunpack.c.h.b16 %v40
    %v295 = vunpack.c.l.b16 %v41
    %v296 = vunpack.c.h.b16 %v41
    %v297 = vunpack.c.l.b16 %v42
    %v298 = vunpack.c.h.b16 %v42
    %v299 = vunpack.c.l.b16 %v43
    %v300 = vunpack.c.h.b16 %v43
    %v301 = vunpack.c.l.b16 %v44
    %v302 = vunpack.c.h.b16 %v44
    %v303 = vunpack.c.l.b16 %v45
    %v304 = vunpack.c.h.b16 %v45
    %v305 = vunpack.c.l.b16 %v46
    %v306 = vunpack.c.h.b16 %v46
    %v307 = vunpack.c.l.b16 %v47
    %v308 = vunpack.c.h.b16 %v47
    %v309 = vunpack.c.l.b16 %v48
    %v310 = vunpack.c.h.b16 %v48
    %v311 = vunpack.c.l.b16 %v49
    %v312 = vunpack.c.h.b16 %v49
    %v313 = vunpack.c.l.b16 %v50
    %v314 = vunpack.c.h.b16 %v50
    %v315 = vunpack.c.l.b16 %v51
    %v316 = vunpack.c.h.b16 %v51
    %v317 = vunpack.c.l.b16 %v52
    %v318 = vunpack.c.h.b16 %v52
    %v319 = vpack.c.b16 %v257, %v255
    %v320 = vpack.c.b16 %v258, %v256
    %v321 = vpack.c.b16 %v261, %v259
    %v322 = vpack.c.b16 %v262, %v260
    %v323 = vpack.c.b16 %v265, %v263
    %v324 = vpack.c.b16 %v266, %v264
    %v325 = vpack.c.b16 %v269, %v267
    %v326 = vpack.c.b16 %v270, %v268
    %v327 = vpack.c.b16 %v273, %v271
    %v328 = vpack.c.b16 %v274, %v272
    %v329 = vpack.c.b16 %v277, %v275
    %v330 = vpack.c.b16 %v278, %v276
    %v331 = vpack.c.b16 %v281, %v279
    %v332 = vpack.c.b16 %v282, %v280
    %v333 = vpack.c.b16 %v285, %v283
    %v334 = vpack.c.b16 %v286, %v284
    %v335 = vpack.c.b16 %v289, %v287
    %v336 = vpack.c.b16 %v290, %v288
    %v337 = vpack.c.b16 %v293, %v291
    %v338 = vpack.c.b16 %v294, %v292
    %v339 = vpack.c.b16 %v297, %v295
    %v340 = vpack.c.b16 %v298, %v296
    %v341 = vpack.c.b16 %v301, %v299
    %v342 = vpack.c.b16 %v302, %v300
    %v343 = vpack.c.b16 %v305, %v303
    %v344 = vpack.c.b16 %v306, %v304
    %v345 = vpack.c.b16 %v309, %v307
    %v346 = vpack.c.b16 %v310, %v308
    %v347 = vpack.c.b16 %v313, %v311
    %v348 = vpack.c.b16 %v314, %v312
    %v349 = vpack.c.b16 %v317, %v315
    %v350 = vpack.c.b16 %v318, %v316
    %v511 = vunpack.c.l.b16 %v53
    %v512 = vunpack.c.h.b16 %v53
    %v513 = vunpack.c.l.b16 %v54
    %v514 = vunpack.c.h.b16 %v54
    %v515 = vunpack.c.l.b16 %v55
    %v516 = vunpack.c.h.b16 %v55
    %v517 = vunpack.c.l.b16 %v56
    %v518 = vunpack.c.h.b16 %v56
    %v519 = vunpack.c.l.b16 %v57
    %v520 = vunpack.c.h.b16 %v57
    %v521 = vunpack.c.l.b16 %v58
    %v522 = vunpack.c.h.b16 %v58
    %v523 = vunpack.c.l.b16 %v59
    %v524 = vunpack.c.h.b16 %v59
    %v525 = vunpack.c.l.b16 %v60
    %v526 = vunpack.c.h.b16 %v60
    %v527 = vunpack.c.l.b16 %v61
    %v528 = vunpack.c.h.b16 %v61
    %v529 = vunpack.c.l.b16 %v62
    %v530 = vunpack.c.h.b16 %v62
    %v531 = vunpack.c.l.b16 %v63
    %v532 = vunpack.c.h.b16 %v63
    %v533 = vunpack.c.l.b16 %v64
    %v534 = vunpack.c.h.b16 %v64
    %v535 = vunpack.c.l.b16 %v65
    %v536 = vunpack.c.h.b16 %v65
    %v537 = vunpack.c.l.b16 %v66
    %v538 = vunpack.c.h.b16 %v66
    %v539 = vunpack.c.l.b16 %v67
    %v540 = vunpack.c.h.b16 %v67
    %v541 = vunpack.c.l.b16 %v68
    %v542 = vunpack.c.h.b16 %v68
    %v543 = vunpack.c.l.b16 %v69
    %v544 = vunpack.c.h.b16 %v69
    %v545 = vunpack.c.l.b16 %v70
    %v546 = vunpack.c.h.b16 %v70
    %v547 = vunpack.c.l.b16 %v71
    %v548 = vunpack.c.h.b16 %v71
    %v549 = vunpack.c.l.b16 %v72
    %v550 = vunpack.c.h.b16 %v72
    %v551 = vunpack.c.l.b16 %v73
    %v552 = vunpack.c.h.b16 %v73
    %v553 = vunpack.c.l.b16 %v74
    %v554 = vunpack.c.h.b16 %v74
    %v555 = vunpack.c.l.b16 %v75
    %v556 = vunpack.c.h.b16 %v75
    %v557 = vunpack.c.l.b16 %v76
    %v558 = vunpack.c.h.b16 %v76
    %v559 = vunpack.c.l.b16 %v77
    %v560 = vunpack.c.h.b16 %v77
    %v561 = vunpack.c.l.b16 %v78
    %v562 = vunpack.c.h.b16 %v78
    %v563 = vunpack.c.l.b16 %v79
    %v564 = vunpack.c.h.b16 %v79
    %v565 = vunpack.c.l.b16 %v80
    %v566 = vunpack.c.h.b16 %v80
    %v567 = vunpack.c.l.b16 %v81
    %v568 = vunpack.c.h.b16 %v81
    %v569 = vunpack.c.l.b16 %v82
    %v570 = vunpack.c.h.b16 %v82
    %v571 = vunpack.c.l.b16 %v83
    %v572 = vunpack.c.h.b16 %v83
    %v573 = vunpack.c.l.b16 %v84
    %v574 = vunpack.c.h.b16 %v84
    %v575 = vunpack.c.l.b16 %v85
    %v576 = vunpack.c.h.b16 %v85
    %v577 = vunpack.c.l.b16 %v86
    %v578 = vunpack.c.h.b16 %v86
    %v579 = vunpack.c.l.b16 %v87
    %v580 = vunpack.c.h.b16 %v87
    %v581 = vunpack.c.l.b16 %v88
    %v582 = vunpack.c.h.b16 %v88
    %v583 = vunpack.c.l.b16 %v89
    %v584 = vunpack.c.h.b16 %v89
    %v585 = vunpack.c.l.b16 %v90
    %v586 = vunpack.c.h.b16 %v90
    %v587 = vunpack.c.l.b16 %v91
    %v588 = vunpack.c.h.b16 %v91
    %v589 = vunpack.c.l.b16 %v92
    %v590 = vunpack.c.h.b16 %v92
    %v591 = vunpack.c.l.b16 %v93
    %v592 = vunpack.c.h.b16 %v93
    %v593 = vunpack.c.l.b16 %v94
    %v594 = vunpack.c.h.b16 %v94
    %v595 = vunpack.c.l.b16 %v95
    %v596 = vunpack.c.h.b16 %v95
    %v597 = vunpack.c.l.b16 %v96
    %v598 = vunpack.c.h.b16 %v96
    %v599 = vunpack.c.l.b16 %v97
    %v600 = vunpack.c.h.b16 %v97
    %v601 = vunpack.c.l.b16 %v98
    %v602 = vunpack.c.h.b16 %v98
    %v603 = vunpack.c.l.b16 %v99
    %v604 = vunpack.c.h.b16 %v99
    %v605 = vunpack.c.l.b16 %v100
    %v606 = vunpack.c.h.b16 %v100
    %v607 = vunpack.c.l.b16 %v101
    %v608 = vunpack.c.h.b16 %v101
    %v609 = vunpack.c.l.b16 %v102
    %v610 = vunpack.c.h.b16 %v102
    %v611 = vunpack.c.l.b16 %v103
    %v612 = vunpack.c.h.b16 %v103
    %v613 = vunpack.c.l.b16 %v104
    %v614 = vunpack.c.h.b16 %v104
    %v615 = vunpack.c.l.b16 %v105
    %v616 = vunpack.c.h.b16 %v105
    %v617 = vunpack.c.l.b16 %v106
    %v618 = vunpack.c.h.b16 %v106
    %v619 = vunpack.c.l.b16 %v107
    %v620 = vunpack.c.h.b16 %v107
    %v621 = vunpack.c.l.b16 %v108
    %v622 = vunpack.c.h.b16 %v108
    %v623 = vunpack.c.l.b16 %v109
    %v624 = vunpack.c.h.b16 %v109
    %v625 = vunpack.c.l.b16 %v110
    %v626 = vunpack.c.h.b16 %v110
    %v627 = vunpack.c.l.b16 %v111
    %v628 = vunpack.c.h.b16 %v111
    %v629 = vunpack.c.l.b16 %v112
    %v630 = vunpack.c.h.b16 %v112
    %v631 = vunpack.c.l.b16 %v113
    %v632 = vunpack.c.h.b16 %v113
    %v633 = vunpack.c.l.b16 %v114
    %v634 = vunpack.c.h.b16 %v114
    %v635 = vunpack.c.l.b16 %v115
    %v636 = vunpack.c.h.b16 %v115
    %v637 = vunpack.c.l.b16 %v116
    %v638 = vunpack.c.h.b16 %v116
    %v639 = vunpack.c.l.b16 %v117
    %v640 = vunpack.c.h.b16 %v117
    %v641 = vunpack.c.l.b16 %v118
    %v642 = vunpack.c.h.b16 %v118
    %v643 = vunpack.c.l.b16 %v119
    %v644 = vunpack.c.h.b16 %v119
    %v645 = vunpack.c.l.b16 %v120
    %v646 = vunpack.c.h.b16 %v120
    %v647 = vunpack.c.l.b16 %v121
    %v648 = vunpack.c.h.b16 %v121
    %v649 = vunpack.c.l.b16 %v122
    %v650 = vunpack.c.h.b16 %v122
    %v651 = vunpack.c.l.b16 %v123
    %v652 = vunpack.c.h.b16 %v123
    %v653 = vunpack.c.l.b16 %v124
    %v654 = vunpack.c.h.b16 %v124
    %v655 = vunpack.c.l.b16 %v125
    %v656 = vunpack.c.h.b16 %v125
    %v657 = vunpack.c.l.b16 %v126
    %v658 = vunpack.c.h.b16 %v126
    %v659 = vunpack.c.l.b16 %v127
    %v660 = vunpack.c.h.b16 %v127
    %v661 = vunpack.c.l.b16 %v128
    %v662 = vunpack.c.h.b16 %v128
    %v663 = vunpack.c.l.b16 %v129
    %v664 = vunpack.c.h.b16 %v129
    %v665 = vunpack.c.l.b16 %v130
    %v666 = vunpack.c.h.b16 %v130
    %v667 = vunpack.c.l.b16 %v131
    %v668 = vunpack.c.h.b16 %v131
    %v669 = vunpack.c.l.b16 %v132
    %v670 = vunpack.c.h.b16 %v132
    %v671 = vunpack.c.l.b16 %v133
    %v672 = vunpack.c.h.b16 %v133
    %v673 = vunpack.c.l.b16 %v134
    %v674 = vunpack.c.h.b16 %v134
    %v675 = vunpack.c.l.b16 %v135
    %v676 = vunpack.c.h.b16 %v135
    %v677 = vunpack.c.l.b16 %v136
    %v678 = vunpack.c.h.b16 %v136
    %v679 = vunpack.c.l.b16 %v137
    %v680 = vunpack.c.h.b16 %v137
    %v681 = vunpack.c.l.b16 %v138
    %v682 = vunpack.c.h.b16 %v138
    %v683 = vunpack.c.l.b16 %v139
    %v684 = vunpack.c.h.b16 %v139
    %v685 = vunpack.c.l.b16 %v140
    %v686 = vunpack.c.h.b16 %v140
    %v687 = vunpack.c.l.b16 %v141
    %v688 = vunpack.c.h.b16 %v141
    %v689 = vunpack.c.l.b16 %v142
    %v690 = vunpack.c.h.b16 %v142
    %v691 = vunpack.c.l.b16 %v143
    %v692 = vunpack.c.h.b16 %v143
    %v693 = vunpack.c.l.b16 %v144
    %v694 = vunpack.c.h.b16 %v144
    %v695 = vunpack.c.l.b16 %v145
    %v696 = vunpack.c.h.b16 %v145
    %v697 = vunpack.c.l.b16 %v146
    %v698 = vunpack.c.h.b16 %v146
    %v699 = vunpack.c.l.b16 %v147
    %v700 = vunpack.c.h.b16 %v147
    %v701 = vunpack.c.l.b16 %v148
    %v702 = vunpack.c.h.b16 %v148
    %v703 = vunpack.c.l.b16 %v149
    %v704 = vunpack.c.h.b16 %v149
    %v705 = vunpack.c.l.b16 %v150
    %v706 = vunpack.c.h.b16 %v150
    %v707 = vunpack.c.l.b16 %v151
    %v708 = vunpack.c.h.b16 %v151
    %v709 = vunpack.c.l.b16 %v152
    %v710 = vunpack.c.h.b16 %v152
    %v711 = vunpack.c.l.b16 %v153
    %v712 = vunpack.c.h.b16 %v153
    %v713 = vunpack.c.l.b16 %v154
    %v714 = vunpack.c.h.b16 %v154
    %v715 = vunpack.c.l.b16 %v155
    %v716 = vunpack.c.h.b16 %v155
    %v717 = vunpack.c.l.b16 %v156
    %v718 = vunpack.c.h.b16 %v156
    %v719 = vunpack.c.l.b16 %v157
    %v720 = vunpack.c.h.b16 %v157
    %v721 = vunpack.c.l.b16 %v158
    %v722 = vunpack.c.h.b16 %v158
    %v723 = vunpack.c.l.b16 %v159
    %v724 = vunpack.c.h.b16 %v159
    %v725 = vunpack.c.l.b16 %v160
    %v726 = vunpack.c.h.b16 %v160
    %v727 = vunpack.c.l.b16 %v161
    %v728 = vunpack.c.h.b16 %v161
    %v729 = vunpack.c.l.b16 %v162
    %v730 = vunpack.c.h.b16 %v162
    %v731 = vunpack.c.l.b16 %v163
    %v732 = vunpack.c.h.b16 %v163
    %v733 = vunpack.c.l.b16 %v164
    %v734 = vunpack.c.h.b16 %v164
    %v735 = vunpack.c.l.b16 %v165
    %v736 = vunpack.c.h.b16 %v165
    %v737 = vunpack.c.l.b16 %v166
    %v738 = vunpack.c.h.b16 %v166
    %v739 = vunpack.c.l.b16 %v167
    %v740 = vunpack.c.h.b16 %v167
    %v741 = vunpack.c.l.b16 %v168
    %v742 = vunpack.c.h.b16 %v168
    %v743 = vunpack.c.l.b16 %v169
    %v744 = vunpack.c.h.b16 %v169
    %v745 = vunpack.c.l.b16 %v170
    %v746 = vunpack.c.h.b16 %v170
    %v747 = vunpack.c.l.b16 %v171
    %v748 = vunpack.c.h.b16 %v171
    %v749 = vunpack.c.l.b16 %v172
    %v750 = vunpack.c.h.b16 %v172
    %v751 = vunpack.c.l.b16 %v173
    %v752 = vunpack.c.h.b16 %v173
    %v753 = vunpack.c.l.b16 %v174
    %v754 = vunpack.c.h.b16 %v174
    %v755 = vunpack.c.l.b16 %v175
    %v756 = vunpack.c.h.b16 %v175
    %v757 = vunpack.c.l.b16 %v176
    %v758 = vunpack.c.h.b16 %v176
    %v759 = vunpack.c.l.b16 %v177
    %v760 = vunpack.c.h.b16 %v177
    %v761 = vunpack.c.l.b16 %v178
    %v762 = vunpack.c.h.b16 %v178
    %v763 = vunpack.c.l.b16 %v179
    %v764 = vunpack.c.h.b16 %v179
    %v765 = vunpack.c.l.b16 %v180
    %v766 = vunpack.c.h.b16 %v180
    %v767 = vpack.c.b16 %v519, %v511
    %v768 = vpack.c.b16 %v520, %v512
    %v769 = vpack.c.b16 %v521, %v513
    %v770 = vpack.c.b16 %v522, %v514
    %v771 = vpack.c.b16 %v523, %v515
    %v772 = vpack.c.b16 %v524, %v516
    %v773 = vpack.c.b16 %v525, %v517
    %v774 = vpack.c.b16 %v526, %v518
    %v775 = vpack.c.b16 %v535, %v527
    %v776 = vpack.c.b16 %v536, %v528
    %v777 = vpack.c.b16 %v537, %v529
    %v778 = vpack.c.b16 %v538, %v530
    %v779 = vpack.c.b16 %v539, %v531
    %v780 = vpack.c.b16 %v540, %v532
    %v781 = vpack.c.b16 %v541, %v533
    %v782 = vpack.c.b16 %v542, %v534
    %v783 = vpack.c.b16 %v551, %v543
    %v784 = vpack.c.b16 %v552, %v544
    %v785 = vpack.c.b16 %v553, %v545
    %v786 = vpack.c.b16 %v554, %v546
    %v787 = vpack.c.b16 %v555, %v547
    %v788 = vpack.c.b16 %v556, %v548
    %v789 = vpack.c.b16 %v557, %v549
    %v790 = vpack.c.b16 %v558, %v550
    %v791 = vpack.c.b16 %v567, %v559
    %v792 = vpack.c.b16 %v568, %v560
    %v793 = vpack.c.b16 %v569, %v561
    %v794 = vpack.c.b16 %v570, %v562
    %v795 = vpack.c.b16 %v571, %v563
    %v796 = vpack.c.b16 %v572, %v564
    %v797 = vpack.c.b16 %v573, %v565
    %v798 = vpack.c.b16 %v574, %v566
    %v799 = vpack.c.b16 %v583, %v575
    %v800 = vpack.c.b16 %v584, %v576
    %v801 = vpack.c.b16 %v585, %v577
    %v802 = vpack.c.b16 %v586, %v578
    %v803 = vpack.c.b16 %v587, %v579
    %v804 = vpack.c.b16 %v588, %v580
    %v805 = vpack.c.b16 %v589, %v581
    %v806 = vpack.c.b16 %v590, %v582
    %v807 = vpack.c.b16 %v599, %v591
    %v808 = vpack.c.b16 %v600, %v592
    %v809 = vpack.c.b16 %v601, %v593
    %v810 = vpack.c.b16 %v602, %v594
    %v811 = vpack.c.b16 %v603, %v595
    %v812 = vpack.c.b16 %v604, %v596
    %v813 = vpack.c.b16 %v605, %v597
    %v814 = vpack.c.b16 %v606, %v598
    %v815 = vpack.c.b16 %v615, %v607
    %v816 = vpack.c.b16 %v616, %v608
    %v817 = vpack.c.b16 %v617, %v609
    %v818 = vpack.c.b16 %v618, %v610
    %v819 = vpack.c.b16 %v619, %v611
    %v820 = vpack.c.b16 %v620, %v612
    %v821 = vpack.c.b16 %v621, %v613
    %v822 = vpack.c.b16 %v622, %v614
    %v823 = vpack.c.b16 %v631, %v623
    %v824 = vpack.c.b16 %v632, %v624
    %v825 = vpack.c.b16 %v633, %v625
    %v826 = vpack.c.b16 %v634, %v626
    %v827 = vpack.c.b16 %v635, %v627
    %v828 = vpack.c.b16 %v636, %v628
    %v829 = vpack.c.b16 %v637, %v629
    %v830 = vpack.c.b16 %v638, %v630
    %v831 = vpack.c.b16 %v647, %v639
    %v832 = vpack.c.b16 %v648, %v640
    %v833 = vpack.c.b16 %v649, %v641
    %v834 = vpack.c.b16 %v650, %v642
    %v835 = vpack.c.b16 %v651, %v643
    %v836 = vpack.c.b16 %v652, %v644
    %v837 = vpack.c.b16 %v653, %v645
    %v838 = vpack.c.b16 %v654, %v646
    %v839 = vpack.c.b16 %v663, %v655
    %v840 = vpack.c.b16 %v664, %v656
    %v841 = vpack.c.b16 %v665, %v657
    %v842 = vpack.c.b16 %v666, %v658
    %v843 = vpack.c.b16 %v667, %v659
    %v844 = vpack.c.b16 %v668, %v660
    %v845 = vpack.c.b16 %v669, %v661
    %v846 = vpack.c.b16 %v670, %v662
    %v847 = vpack.c.b16 %v679, %v671
    %v848 = vpack.c.b16 %v680, %v672
    %v849 = vpack.c.b16 %v681, %v673
    %v850 = vpack.c.b16 %v682, %v674
    %v851 = vpack.c.b16 %v683, %v675
    %v852 = vpack.c.b16 %v684, %v676
    %v853 = vpack.c.b16 %v685, %v677
    %v854 = vpack.c.b16 %v686, %v678
    %v855 = vpack.c.b16 %v695, %v687
    %v856 = vpack.c.b16 %v696, %v688
    %v857 = vpack.c.b16 %v697, %v689
    %v858 = vpack.c.b16 %v698, %v690
    %v859 = vpack.c.b16 %v699, %v691
    %v860 = vpack.c.b16 %v700, %v692
    %v861 = vpack.c.b16 %v701, %v693
    %v862 = vpack.c.b16 %v702, %v694
    %v863 = vpack.c.b16 %v711, %v703
    %v864 = vpack.c.b16 %v712, %v704
    %v865 = vpack.c.b16 %v713, %v705
    %v866 = vpack.c.b16 %v714, %v706
    %v867 = vpack.c.b16 %v715, %v707
    %v868 = vpack.c.b16 %v716, %v708
    %v869 = vpack.c.b16 %v717, %v709
    %v870 = vpack.c.b16 %v718, %v710
    %v871 = vpack.c.b16 %v727, %v719
    %v872 = vpack.c.b16 %v728, %v720
    %v873 = vpack.c.b16 %v729, %v721
    %v874 = vpack.c.b16 %v730, %v722
    %v875 = vpack.c.b16 %v731, %v723
    %v876 = vpack.c.b16 %v732, %v724
    %v877 = vpack.c.b16 %v733, %v725
    %v878 = vpack.c.b16 %v734, %v726
    %v879 = vpack.c.b16 %v743, %v735
    %v880 = vpack.c.b16 %v744, %v736
    %v881 = vpack.c.b16 %v745, %v737
    %v882 = vpack.c.b16 %v746, %v738
    %v883 = vpack.c.b16 %v747, %v739
    %v884 = vpack.c.b16 %v748, %v740
    %v885 = vpack.c.b16 %v749, %v741
    %v886 = vpack.c.b16 %v750, %v742
    %v887 = vpack.c.b16 %v759, %v751
    %v888 = vpack.c.b16 %v760, %v752
    %v889 = vpack.c.b16 %v761, %v753
    %v890 = vpack.c.b16 %v762, %v754
    %v891 = vpack.c.b16 %v763, %v755
    %v892 = vpack.c.b16 %v764, %v756
    %v893 = vpack.c.b16 %v765, %v757
    %v894 = vpack.c.b16 %v766, %v758
    %1023 = vmatprep.subr.bf16.mxu0 %v768
    %1024 = vmatpush1.bf16.msra.mxu0 %v767
    %1025 = vmatprep.subr.bf16.mxu0 %v776
    %1026 = vmatpush1.bf16.msra.mxu0 %v775
    %1027 = vmatprep.subr.bf16.mxu0 %v784
    %1028 = vmatpush1.bf16.msra.mxu0 %v783
    %1029 = vmatprep.subr.bf16.mxu0 %v792
    %1030 = vmatpush1.bf16.msra.mxu0 %v791
    %1031 = vmatprep.subr.bf16.mxu0 %v800
    %1032 = vmatpush1.bf16.msra.mxu0 %v799
    %1033 = vmatprep.subr.bf16.mxu0 %v808
    %1034 = vmatpush1.bf16.msra.mxu0 %v807
    %1035 = vmatprep.subr.bf16.mxu0 %v816
    %1036 = vmatpush1.bf16.msra.mxu0 %v815
    %1037 = vmatprep.subr.bf16.mxu0 %v824
    %1038 = vmatpush1.bf16.msra.mxu0 %v823
    %1039 = vmatprep.subr.bf16.mxu0 %v832
    %1040 = vmatpush1.bf16.msra.mxu0 %v831
    %1041 = vmatprep.subr.bf16.mxu0 %v840
    %1042 = vmatpush1.bf16.msra.mxu0 %v839
    %1043 = vmatprep.subr.bf16.mxu0 %v848
    %1044 = vmatpush1.bf16.msra.mxu0 %v847
    %1045 = vmatprep.subr.bf16.mxu0 %v856
    %1046 = vmatpush1.bf16.msra.mxu0 %v855
    %1047 = vmatprep.subr.bf16.mxu0 %v864
    %1048 = vmatpush1.bf16.msra.mxu0 %v863
    %1049 = vmatprep.subr.bf16.mxu0 %v872
    %1050 = vmatpush1.bf16.msra.mxu0 %v871
    %1051 = vmatprep.subr.bf16.mxu0 %v880
    %1052 = vmatpush1.bf16.msra.mxu0 %v879
    %1053 = vmatprep.subr.bf16.mxu0 %v888
    %1054 = vmatpush1.bf16.msra.mxu0 %v887
    %1055 = vmatprep.mubr.bf16.mxu0 %v320
    %1056 = vmatmul.mubr.bf16.gmra.mrb[0].mxu0 %v319
    %v1057 = vpop.f32.mrb[0].mxu0
    %v1058 = vadd.f32 %v186, %v1057
    %v1059 = vpop.f32.mrb[0].mxu0
    %v1060 = vadd.f32 %v190, %v1059
    %v1061 = vpop.f32.mrb[0].mxu0
    %v1062 = vadd.f32 %v186, %v1061
    %v1063 = vpop.f32.mrb[0].mxu0
    %v1064 = vadd.f32 %v190, %v1063
    %1065 = vmatprep.mubr.bf16.mxu0 %v322
    %1066 = vmatmul.mubr.bf16.gmra.mrb[0].mxu0 %v321
    %v1067 = vpop.f32.mrb[0].mxu0
    %v1068 = vadd.f32 %v186, %v1067
    %v1069 = vpop.f32.mrb[0].mxu0
    %v1070 = vadd.f32 %v190, %v1069
    %v1071 = vpop.f32.mrb[0].mxu0
    %v1072 = vadd.f32 %v186, %v1071
    %v1073 = vpop.f32.mrb[0].mxu0
    %v1074 = vadd.f32 %v190, %v1073
    %1075 = vmatprep.mubr.bf16.mxu0 %v324
    %1076 = vmatmul.mubr.bf16.gmra.mrb[0].mxu0 %v323
    %v1077 = vpop.f32.mrb[0].mxu0
    %v1078 = vadd.f32 %v186, %v1077
    %v1079 = vpop.f32.mrb[0].mxu0
    %v1080 = vadd.f32 %v190, %v1079
    %v1081 = vpop.f32.mrb[0].mxu0
    %v1082 = vadd.f32 %v186, %v1081
    %v1083 = vpop.f32.mrb[0].mxu0
    %v1084 = vadd.f32 %v190, %v1083
    %1085 = vmatprep.mubr.bf16.mxu0 %v326
    %1086 = vmatmul.mubr.bf16.gmra.mrb[0].mxu0 %v325
    %v1087 = vpop.f32.mrb[0].mxu0
    %v1088 = vadd.f32 %v186, %v1087
    %v1089 = vpop.f32.mrb[0].mxu0
    %v1090 = vadd.f32 %v190, %v1089
    %v1091 = vpop.f32.mrb[0].mxu0
    %v1092 = vadd.f32 %v186, %v1091
    %v1093 = vpop.f32.mrb[0].mxu0
    %v1094 = vadd.f32 %v190, %v1093
    %1095 = vmatprep.mubr.bf16.mxu0 %v328
    %1096 = vmatmul.mubr.bf16.gmra.mrb[0].mxu0 %v327
    %v1097 = vpop.f32.mrb[0].mxu0
    %v1098 = vadd.f32 %v186, %v1097
    %v1099 = vpop.f32.mrb[0].mxu0
    %v1100 = vadd.f32 %v190, %v1099
    %v1101 = vpop.f32.mrb[0].mxu0
    %v1102 = vadd.f32 %v186, %v1101
    %v1103 = vpop.f32.mrb[0].mxu0
    %v1104 = vadd.f32 %v190, %v1103
    %1105 = vmatprep.mubr.bf16.mxu0 %v330
    %1106 = vmatmul.mubr.bf16.gmra.mrb[0].mxu0 %v329
    %v1107 = vpop.f32.mrb[0].mxu0
    %v1108 = vadd.f32 %v186, %v1107
    %v1109 = vpop.f32.mrb[0].mxu0
    %v1110 = vadd.f32 %v190, %v1109
    %v1111 = vpop.f32.mrb[0].mxu0
    %v1112 = vadd.f32 %v186, %v1111
    %v1113 = vpop.f32.mrb[0].mxu0
    %v1114 = vadd.f32 %v190, %v1113
    %1115 = vmatprep.mubr.bf16.mxu0 %v332
    %1116 = vmatmul.mubr.bf16.gmra.mrb[0].mxu0 %v331
    %v1117 = vpop.f32.mrb[0].mxu0
    %v1118 = vadd.f32 %v186, %v1117
    %v1119 = vpop.f32.mrb[0].mxu0
    %v1120 = vadd.f32 %v190, %v1119
    %v1121 = vpop.f32.mrb[0].mxu0
    %v1122 = vadd.f32 %v186, %v1121
    %v1123 = vpop.f32.mrb[0].mxu0
    %v1124 = vadd.f32 %v190, %v1123
    %1125 = vmatprep.mubr.bf16.mxu0 %v334
    %1126 = vmatmul.mubr.bf16.gmra.mrb[0].mxu0 %v333
    %v1127 = vpop.f32.mrb[0].mxu0
    %v1128 = vadd.f32 %v186, %v1127
    %v1129 = vpop.f32.mrb[0].mxu0
    %v1130 = vadd.f32 %v190, %v1129
    %v1131 = vpop.f32.mrb[0].mxu0
    %v1132 = vadd.f32 %v186, %v1131
    %v1133 = vpop.f32.mrb[0].mxu0
    %v1134 = vadd.f32 %v190, %v1133
    %1135 = vmatprep.mubr.bf16.mxu0 %v336
    %1136 = vmatmul.mubr.bf16.gmra.mrb[0].mxu0 %v335
    %v1137 = vpop.f32.mrb[0].mxu0
    %v1138 = vadd.f32 %v186, %v1137
    %v1139 = vpop.f32.mrb[0].mxu0
    %v1140 = vadd.f32 %v190, %v1139
    %v1141 = vpop.f32.mrb[0].mxu0
    %v1142 = vadd.f32 %v186, %v1141
    %v1143 = vpop.f32.mrb[0].mxu0
    %v1144 = vadd.f32 %v190, %v1143
    %1145 = vmatprep.mubr.bf16.mxu0 %v338
    %1146 = vmatmul.mubr.bf16.gmra.mrb[0].mxu0 %v337
    %v1147 = vpop.f32.mrb[0].mxu0
    %v1148 = vadd.f32 %v186, %v1147
    %v1149 = vpop.f32.mrb[0].mxu0
    %v1150 = vadd.f32 %v190, %v1149
    %v1151 = vpop.f32.mrb[0].mxu0
    %v1152 = vadd.f32 %v186, %v1151
    %v1153 = vpop.f32.mrb[0].mxu0
    %v1154 = vadd.f32 %v190, %v1153
    %1155 = vmatprep.mubr.bf16.mxu0 %v340
    %1156 = vmatmul.mubr.bf16.gmra.mrb[0].mxu0 %v339
    %v1157 = vpop.f32.mrb[0].mxu0
    %v1158 = vadd.f32 %v186, %v1157
    %v1159 = vpop.f32.mrb[0].mxu0
    %v1160 = vadd.f32 %v190, %v1159
    %v1161 = vpop.f32.mrb[0].mxu0
    %v1162 = vadd.f32 %v186, %v1161
    %v1163 = vpop.f32.mrb[0].mxu0
    %v1164 = vadd.f32 %v190, %v1163
    %1165 = vmatprep.mubr.bf16.mxu0 %v342
    %1166 = vmatmul.mubr.bf16.gmra.mrb[0].mxu0 %v341
    %v1167 = vpop.f32.mrb[0].mxu0
    %v1168 = vadd.f32 %v186, %v1167
    %v1169 = vpop.f32.mrb[0].mxu0
    %v1170 = vadd.f32 %v190, %v1169
    %v1171 = vpop.f32.mrb[0].mxu0
    %v1172 = vadd.f32 %v186, %v1171
    %v1173 = vpop.f32.mrb[0].mxu0
    %v1174 = vadd.f32 %v190, %v1173
    %1175 = vmatprep.mubr.bf16.mxu0 %v344
    %1176 = vmatmul.mubr.bf16.gmra.mrb[0].mxu0 %v343
    %v1177 = vpop.f32.mrb[0].mxu0
    %v1178 = vadd.f32 %v186, %v1177
    %v1179 = vpop.f32.mrb[0].mxu0
    %v1180 = vadd.f32 %v190, %v1179
    %v1181 = vpop.f32.mrb[0].mxu0
    %v1182 = vadd.f32 %v186, %v1181
    %v1183 = vpop.f32.mrb[0].mxu0
    %v1184 = vadd.f32 %v190, %v1183
    %1185 = vmatprep.mubr.bf16.mxu0 %v346
    %1186 = vmatmul.mubr.bf16.gmra.mrb[0].mxu0 %v345
    %v1187 = vpop.f32.mrb[0].mxu0
    %v1188 = vadd.f32 %v186, %v1187
    %v1189 = vpop.f32.mrb[0].mxu0
    %v1190 = vadd.f32 %v190, %v1189
    %v1191 = vpop.f32.mrb[0].mxu0
    %v1192 = vadd.f32 %v186, %v1191
    %v1193 = vpop.f32.mrb[0].mxu0
    %v1194 = vadd.f32 %v190, %v1193
    %1195 = vmatprep.mubr.bf16.mxu0 %v348
    %1196 = vmatmul.mubr.bf16.gmra.mrb[0].mxu0 %v347
    %v1197 = vpop.f32.mrb[0].mxu0
    %v1198 = vadd.f32 %v186, %v1197
    %v1199 = vpop.f32.mrb[0].mxu0
    %v1200 = vadd.f32 %v190, %v1199
    %v1201 = vpop.f32.mrb[0].mxu0
    %v1202 = vadd.f32 %v186, %v1201
    %v1203 = vpop.f32.mrb[0].mxu0
    %v1204 = vadd.f32 %v190, %v1203
    %1205 = vmatprep.mubr.bf16.mxu0 %v350
    %1206 = vmatmul.mubr.bf16.gmra.mrb[0].mxu0 %v349
    %v1207 = vpop.f32.mrb[0].mxu0
    %v1208 = vadd.f32 %v186, %v1207
    %v1209 = vpop.f32.mrb[0].mxu0
    %v1210 = vadd.f32 %v190, %v1209
    %v1211 = vpop.f32.mrb[0].mxu0
    %v1212 = vadd.f32 %v186, %v1211
    %v1213 = vpop.f32.mrb[0].mxu0
    %v1214 = vadd.f32 %v190, %v1213
    %1215 = vdwg.mxu0
    %1216 = vmatprep.subr.bf16.mxu0 %v770
    %1217 = vmatpush1.bf16.msra.mxu0 %v769
    %1218 = vmatprep.subr.bf16.mxu0 %v778
    %1219 = vmatpush1.bf16.msra.mxu0 %v777
    %1220 = vmatprep.subr.bf16.mxu0 %v786
    %1221 = vmatpush1.bf16.msra.mxu0 %v785
    %1222 = vmatprep.subr.bf16.mxu0 %v794
    %1223 = vmatpush1.bf16.msra.mxu0 %v793
    %1224 = vmatprep.subr.bf16.mxu0 %v802
    %1225 = vmatpush1.bf16.msra.mxu0 %v801
    %1226 = vmatprep.subr.bf16.mxu0 %v810
    %1227 = vmatpush1.bf16.msra.mxu0 %v809
    %1228 = vmatprep.subr.bf16.mxu0 %v818
    %1229 = vmatpush1.bf16.msra.mxu0 %v817
    %1230 = vmatprep.subr.bf16.mxu0 %v826
    %1231 = vmatpush1.bf16.msra.mxu0 %v825
    %1232 = vmatprep.subr.bf16.mxu0 %v834
    %1233 = vmatpush1.bf16.msra.mxu0 %v833
    %1234 = vmatprep.subr.bf16.mxu0 %v842
    %1235 = vmatpush1.bf16.msra.mxu0 %v841
    %1236 = vmatprep.subr.bf16.mxu0 %v850
    %1237 = vmatpush1.bf16.msra.mxu0 %v849
    %1238 = vmatprep.subr.bf16.mxu0 %v858
    %1239 = vmatpush1.bf16.msra.mxu0 %v857
    %1240 = vmatprep.subr.bf16.mxu0 %v866
    %1241 = vmatpush1.bf16.msra.mxu0 %v865
    %1242 = vmatprep.subr.bf16.mxu0 %v874
    %1243 = vmatpush1.bf16.msra.mxu0 %v873
    %1244 = vmatprep.subr.bf16.mxu0 %v882
    %1245 = vmatpush1.bf16.msra.mxu0 %v881
    %1246 = vmatprep.subr.bf16.mxu0 %v890
    %1247 = vmatpush1.bf16.msra.mxu0 %v889
    %1248 = vmatprep.mubr.bf16.mxu0 %v320
    %1249 = vmatmul.mubr.bf16.gmra.mrb[0].mxu0 %v319
    %v1250 = vpop.f32.mrb[0].mxu0
    %v1251 = vadd.f32 %v194, %v1250
    %v1252 = vpop.f32.mrb[0].mxu0
    %v1253 = vadd.f32 %v198, %v1252
    %v1254 = vpop.f32.mrb[0].mxu0
    %v1255 = vadd.f32 %v194, %v1254
    %v1256 = vpop.f32.mrb[0].mxu0
    %v1257 = vadd.f32 %v198, %v1256
    %1258 = vmatprep.mubr.bf16.mxu0 %v322
    %1259 = vmatmul.mubr.bf16.gmra.mrb[0].mxu0 %v321
    %v1260 = vpop.f32.mrb[0].mxu0
    %v1261 = vadd.f32 %v194, %v1260
    %v1262 = vpop.f32.mrb[0].mxu0
    %v1263 = vadd.f32 %v198, %v1262
    %v1264 = vpop.f32.mrb[0].mxu0
    %v1265 = vadd.f32 %v194, %v1264
    %v1266 = vpop.f32.mrb[0].mxu0
    %v1267 = vadd.f32 %v198, %v1266
    %1268 = vmatprep.mubr.bf16.mxu0 %v324
    %1269 = vmatmul.mubr.bf16.gmra.mrb[0].mxu0 %v323
    %v1270 = vpop.f32.mrb[0].mxu0
    %v1271 = vadd.f32 %v194, %v1270
    %v1272 = vpop.f32.mrb[0].mxu0
    %v1273 = vadd.f32 %v198, %v1272
    %v1274 = vpop.f32.mrb[0].mxu0
    %v1275 = vadd.f32 %v194, %v1274
    %v1276 = vpop.f32.mrb[0].mxu0
    %v1277 = vadd.f32 %v198, %v1276
    %1278 = vmatprep.mubr.bf16.mxu0 %v326
    %1279 = vmatmul.mubr.bf16.gmra.mrb[0].mxu0 %v325
    %v1280 = vpop.f32.mrb[0].mxu0
    %v1281 = vadd.f32 %v194, %v1280
    %v1282 = vpop.f32.mrb[0].mxu0
    %v1283 = vadd.f32 %v198, %v1282
    %v1284 = vpop.f32.mrb[0].mxu0
    %v1285 = vadd.f32 %v194, %v1284
    %v1286 = vpop.f32.mrb[0].mxu0
    %v1287 = vadd.f32 %v198, %v1286
    %1288 = vmatprep.mubr.bf16.mxu0 %v328
    %1289 = vmatmul.mubr.bf16.gmra.mrb[0].mxu0 %v327
    %v1290 = vpop.f32.mrb[0].mxu0
    %v1291 = vadd.f32 %v194, %v1290
    %v1292 = vpop.f32.mrb[0].mxu0
    %v1293 = vadd.f32 %v198, %v1292
    %v1294 = vpop.f32.mrb[0].mxu0
    %v1295 = vadd.f32 %v194, %v1294
    %v1296 = vpop.f32.mrb[0].mxu0
    %v1297 = vadd.f32 %v198, %v1296
    %1298 = vmatprep.mubr.bf16.mxu0 %v330
    %1299 = vmatmul.mubr.bf16.gmra.mrb[0].mxu0 %v329
    %v1300 = vpop.f32.mrb[0].mxu0
    %v1301 = vadd.f32 %v194, %v1300
    %v1302 = vpop.f32.mrb[0].mxu0
    %v1303 = vadd.f32 %v198, %v1302
    %v1304 = vpop.f32.mrb[0].mxu0
    %v1305 = vadd.f32 %v194, %v1304
    %v1306 = vpop.f32.mrb[0].mxu0
    %v1307 = vadd.f32 %v198, %v1306
    %1308 = vmatprep.mubr.bf16.mxu0 %v332
    %1309 = vmatmul.mubr.bf16.gmra.mrb[0].mxu0 %v331
    %v1310 = vpop.f32.mrb[0].mxu0
    %v1311 = vadd.f32 %v194, %v1310
    %v1312 = vpop.f32.mrb[0].mxu0
    %v1313 = vadd.f32 %v198, %v1312
    %v1314 = vpop.f32.mrb[0].mxu0
    %v1315 = vadd.f32 %v194, %v1314
    %v1316 = vpop.f32.mrb[0].mxu0
    %v1317 = vadd.f32 %v198, %v1316
    %1318 = vmatprep.mubr.bf16.mxu0 %v334
    %1319 = vmatmul.mubr.bf16.gmra.mrb[0].mxu0 %v333
    %v1320 = vpop.f32.mrb[0].mxu0
    %v1321 = vadd.f32 %v194, %v1320
    %v1322 = vpop.f32.mrb[0].mxu0
    %v1323 = vadd.f32 %v198, %v1322
    %v1324 = vpop.f32.mrb[0].mxu0
    %v1325 = vadd.f32 %v194, %v1324
    %v1326 = vpop.f32.mrb[0].mxu0
    %v1327 = vadd.f32 %v198, %v1326
    %1328 = vmatprep.mubr.bf16.mxu0 %v336
    %1329 = vmatmul.mubr.bf16.gmra.mrb[0].mxu0 %v335
    %v1330 = vpop.f32.mrb[0].mxu0
    %v1331 = vadd.f32 %v194, %v1330
    %v1332 = vpop.f32.mrb[0].mxu0
    %v1333 = vadd.f32 %v198, %v1332
    %v1334 = vpop.f32.mrb[0].mxu0
    %v1335 = vadd.f32 %v194, %v1334
    %v1336 = vpop.f32.mrb[0].mxu0
    %v1337 = vadd.f32 %v198, %v1336
    %1338 = vmatprep.mubr.bf16.mxu0 %v338
    %1339 = vmatmul.mubr.bf16.gmra.mrb[0].mxu0 %v337
    %v1340 = vpop.f32.mrb[0].mxu0
    %v1341 = vadd.f32 %v194, %v1340
    %v1342 = vpop.f32.mrb[0].mxu0
    %v1343 = vadd.f32 %v198, %v1342
    %v1344 = vpop.f32.mrb[0].mxu0
    %v1345 = vadd.f32 %v194, %v1344
    %v1346 = vpop.f32.mrb[0].mxu0
    %v1347 = vadd.f32 %v198, %v1346
    %1348 = vmatprep.mubr.bf16.mxu0 %v340
    %1349 = vmatmul.mubr.bf16.gmra.mrb[0].mxu0 %v339
    %v1350 = vpop.f32.mrb[0].mxu0
    %v1351 = vadd.f32 %v194, %v1350
    %v1352 = vpop.f32.mrb[0].mxu0
    %v1353 = vadd.f32 %v198, %v1352
    %v1354 = vpop.f32.mrb[0].mxu0
    %v1355 = vadd.f32 %v194, %v1354
    %v1356 = vpop.f32.mrb[0].mxu0
    %v1357 = vadd.f32 %v198, %v1356
    %1358 = vmatprep.mubr.bf16.mxu0 %v342
    %1359 = vmatmul.mubr.bf16.gmra.mrb[0].mxu0 %v341
    %v1360 = vpop.f32.mrb[0].mxu0
    %v1361 = vadd.f32 %v194, %v1360
    %v1362 = vpop.f32.mrb[0].mxu0
    %v1363 = vadd.f32 %v198, %v1362
    %v1364 = vpop.f32.mrb[0].mxu0
    %v1365 = vadd.f32 %v194, %v1364
    %v1366 = vpop.f32.mrb[0].mxu0
    %v1367 = vadd.f32 %v198, %v1366
    %1368 = vmatprep.mubr.bf16.mxu0 %v344
    %1369 = vmatmul.mubr.bf16.gmra.mrb[0].mxu0 %v343
    %v1370 = vpop.f32.mrb[0].mxu0
    %v1371 = vadd.f32 %v194, %v1370
    %v1372 = vpop.f32.mrb[0].mxu0
    %v1373 = vadd.f32 %v198, %v1372
    %v1374 = vpop.f32.mrb[0].mxu0
    %v1375 = vadd.f32 %v194, %v1374
    %v1376 = vpop.f32.mrb[0].mxu0
    %v1377 = vadd.f32 %v198, %v1376
    %1378 = vmatprep.mubr.bf16.mxu0 %v346
    %1379 = vmatmul.mubr.bf16.gmra.mrb[0].mxu0 %v345
    %v1380 = vpop.f32.mrb[0].mxu0
    %v1381 = vadd.f32 %v194, %v1380
    %v1382 = vpop.f32.mrb[0].mxu0
    %v1383 = vadd.f32 %v198, %v1382
    %v1384 = vpop.f32.mrb[0].mxu0
    %v1385 = vadd.f32 %v194, %v1384
    %v1386 = vpop.f32.mrb[0].mxu0
    %v1387 = vadd.f32 %v198, %v1386
    %1388 = vmatprep.mubr.bf16.mxu0 %v348
    %1389 = vmatmul.mubr.bf16.gmra.mrb[0].mxu0 %v347
    %v1390 = vpop.f32.mrb[0].mxu0
    %v1391 = vadd.f32 %v194, %v1390
    %v1392 = vpop.f32.mrb[0].mxu0
    %v1393 = vadd.f32 %v198, %v1392
    %v1394 = vpop.f32.mrb[0].mxu0
    %v1395 = vadd.f32 %v194, %v1394
    %v1396 = vpop.f32.mrb[0].mxu0
    %v1397 = vadd.f32 %v198, %v1396
    %1398 = vmatprep.mubr.bf16.mxu0 %v350
    %1399 = vmatmul.mubr.bf16.gmra.mrb[0].mxu0 %v349
    %v1400 = vpop.f32.mrb[0].mxu0
    %v1401 = vadd.f32 %v194, %v1400
    %v1402 = vpop.f32.mrb[0].mxu0
    %v1403 = vadd.f32 %v198, %v1402
    %v1404 = vpop.f32.mrb[0].mxu0
    %v1405 = vadd.f32 %v194, %v1404
    %v1406 = vpop.f32.mrb[0].mxu0
    %v1407 = vadd.f32 %v198, %v1406
    %1408 = vdwg.mxu0
    %1409 = vmatprep.subr.bf16.mxu0 %v772
    %1410 = vmatpush1.bf16.msra.mxu0 %v771
    %1411 = vmatprep.subr.bf16.mxu0 %v780
    %1412 = vmatpush1.bf16.msra.mxu0 %v779
    %1413 = vmatprep.subr.bf16.mxu0 %v788
    %1414 = vmatpush1.bf16.msra.mxu0 %v787
    %1415 = vmatprep.subr.bf16.mxu0 %v796
    %1416 = vmatpush1.bf16.msra.mxu0 %v795
    %1417 = vmatprep.subr.bf16.mxu0 %v804
    %1418 = vmatpush1.bf16.msra.mxu0 %v803
    %1419 = vmatprep.subr.bf16.mxu0 %v812
    %1420 = vmatpush1.bf16.msra.mxu0 %v811
    %1421 = vmatprep.subr.bf16.mxu0 %v820
    %1422 = vmatpush1.bf16.msra.mxu0 %v819
    %1423 = vmatprep.subr.bf16.mxu0 %v828
    %1424 = vmatpush1.bf16.msra.mxu0 %v827
    %1425 = vmatprep.subr.bf16.mxu0 %v836
    %1426 = vmatpush1.bf16.msra.mxu0 %v835
    %1427 = vmatprep.subr.bf16.mxu0 %v844
    %1428 = vmatpush1.bf16.msra.mxu0 %v843
    %1429 = vmatprep.subr.bf16.mxu0 %v852
    %1430 = vmatpush1.bf16.msra.mxu0 %v851
    %1431 = vmatprep.subr.bf16.mxu0 %v860
    %1432 = vmatpush1.bf16.msra.mxu0 %v859
    %1433 = vmatprep.subr.bf16.mxu0 %v868
    %1434 = vmatpush1.bf16.msra.mxu0 %v867
    %1435 = vmatprep.subr.bf16.mxu0 %v876
    %1436 = vmatpush1.bf16.msra.mxu0 %v875
    %1437 = vmatprep.subr.bf16.mxu0 %v884
    %1438 = vmatpush1.bf16.msra.mxu0 %v883
    %1439 = vmatprep.subr.bf16.mxu0 %v892
    %1440 = vmatpush1.bf16.msra.mxu0 %v891
    %1441 = vmatprep.mubr.bf16.mxu0 %v320
    %1442 = vmatmul.mubr.bf16.gmra.mrb[0].mxu0 %v319
    %v1443 = vpop.f32.mrb[0].mxu0
    %v1444 = vadd.f32 %v202, %v1443
    %v1445 = vpop.f32.mrb[0].mxu0
    %v1446 = vadd.f32 %v206, %v1445
    %v1447 = vpop.f32.mrb[0].mxu0
    %v1448 = vadd.f32 %v202, %v1447
    %v1449 = vpop.f32.mrb[0].mxu0
    %v1450 = vadd.f32 %v206, %v1449
    %1451 = vmatprep.mubr.bf16.mxu0 %v322
    %1452 = vmatmul.mubr.bf16.gmra.mrb[0].mxu0 %v321
    %v1453 = vpop.f32.mrb[0].mxu0
    %v1454 = vadd.f32 %v202, %v1453
    %v1455 = vpop.f32.mrb[0].mxu0
    %v1456 = vadd.f32 %v206, %v1455
    %v1457 = vpop.f32.mrb[0].mxu0
    %v1458 = vadd.f32 %v202, %v1457
    %v1459 = vpop.f32.mrb[0].mxu0
    %v1460 = vadd.f32 %v206, %v1459
    %1461 = vmatprep.mubr.bf16.mxu0 %v324
    %1462 = vmatmul.mubr.bf16.gmra.mrb[0].mxu0 %v323
    %v1463 = vpop.f32.mrb[0].mxu0
    %v1464 = vadd.f32 %v202, %v1463
    %v1465 = vpop.f32.mrb[0].mxu0
    %v1466 = vadd.f32 %v206, %v1465
    %v1467 = vpop.f32.mrb[0].mxu0
    %v1468 = vadd.f32 %v202, %v1467
    %v1469 = vpop.f32.mrb[0].mxu0
    %v1470 = vadd.f32 %v206, %v1469
    %1471 = vmatprep.mubr.bf16.mxu0 %v326
    %1472 = vmatmul.mubr.bf16.gmra.mrb[0].mxu0 %v325
    %v1473 = vpop.f32.mrb[0].mxu0
    %v1474 = vadd.f32 %v202, %v1473
    %v1475 = vpop.f32.mrb[0].mxu0
    %v1476 = vadd.f32 %v206, %v1475
    %v1477 = vpop.f32.mrb[0].mxu0
    %v1478 = vadd.f32 %v202, %v1477
    %v1479 = vpop.f32.mrb[0].mxu0
    %v1480 = vadd.f32 %v206, %v1479
    %1481 = vmatprep.mubr.bf16.mxu0 %v328
    %1482 = vmatmul.mubr.bf16.gmra.mrb[0].mxu0 %v327
    %v1483 = vpop.f32.mrb[0].mxu0
    %v1484 = vadd.f32 %v202, %v1483
    %v1485 = vpop.f32.mrb[0].mxu0
    %v1486 = vadd.f32 %v206, %v1485
    %v1487 = vpop.f32.mrb[0].mxu0
    %v1488 = vadd.f32 %v202, %v1487
    %v1489 = vpop.f32.mrb[0].mxu0
    %v1490 = vadd.f32 %v206, %v1489
    %1491 = vmatprep.mubr.bf16.mxu0 %v330
    %1492 = vmatmul.mubr.bf16.gmra.mrb[0].mxu0 %v329
    %v1493 = vpop.f32.mrb[0].mxu0
    %v1494 = vadd.f32 %v202, %v1493
    %v1495 = vpop.f32.mrb[0].mxu0
    %v1496 = vadd.f32 %v206, %v1495
    %v1497 = vpop.f32.mrb[0].mxu0
    %v1498 = vadd.f32 %v202, %v1497
    %v1499 = vpop.f32.mrb[0].mxu0
    %v1500 = vadd.f32 %v206, %v1499
    %1501 = vmatprep.mubr.bf16.mxu0 %v332
    %1502 = vmatmul.mubr.bf16.gmra.mrb[0].mxu0 %v331
    %v1503 = vpop.f32.mrb[0].mxu0
    %v1504 = vadd.f32 %v202, %v1503
    %v1505 = vpop.f32.mrb[0].mxu0
    %v1506 = vadd.f32 %v206, %v1505
    %v1507 = vpop.f32.mrb[0].mxu0
    %v1508 = vadd.f32 %v202, %v1507
    %v1509 = vpop.f32.mrb[0].mxu0
    %v1510 = vadd.f32 %v206, %v1509
    %1511 = vmatprep.mubr.bf16.mxu0 %v334
    %1512 = vmatmul.mubr.bf16.gmra.mrb[0].mxu0 %v333
    %v1513 = vpop.f32.mrb[0].mxu0
    %v1514 = vadd.f32 %v202, %v1513
    %v1515 = vpop.f32.mrb[0].mxu0
    %v1516 = vadd.f32 %v206, %v1515
    %v1517 = vpop.f32.mrb[0].mxu0
    %v1518 = vadd.f32 %v202, %v1517
    %v1519 = vpop.f32.mrb[0].mxu0
    %v1520 = vadd.f32 %v206, %v1519
    %1521 = vmatprep.mubr.bf16.mxu0 %v336
    %1522 = vmatmul.mubr.bf16.gmra.mrb[0].mxu0 %v335
    %v1523 = vpop.f32.mrb[0].mxu0
    %v1524 = vadd.f32 %v202, %v1523
    %v1525 = vpop.f32.mrb[0].mxu0
    %v1526 = vadd.f32 %v206, %v1525
    %v1527 = vpop.f32.mrb[0].mxu0
    %v1528 = vadd.f32 %v202, %v1527
    %v1529 = vpop.f32.mrb[0].mxu0
    %v1530 = vadd.f32 %v206, %v1529
    %1531 = vmatprep.mubr.bf16.mxu0 %v338
    %1532 = vmatmul.mubr.bf16.gmra.mrb[0].mxu0 %v337
    %v1533 = vpop.f32.mrb[0].mxu0
    %v1534 = vadd.f32 %v202, %v1533
    %v1535 = vpop.f32.mrb[0].mxu0
    %v1536 = vadd.f32 %v206, %v1535
    %v1537 = vpop.f32.mrb[0].mxu0
    %v1538 = vadd.f32 %v202, %v1537
    %v1539 = vpop.f32.mrb[0].mxu0
    %v1540 = vadd.f32 %v206, %v1539
    %1541 = vmatprep.mubr.bf16.mxu0 %v340
    %1542 = vmatmul.mubr.bf16.gmra.mrb[0].mxu0 %v339
    %v1543 = vpop.f32.mrb[0].mxu0
    %v1544 = vadd.f32 %v202, %v1543
    %v1545 = vpop.f32.mrb[0].mxu0
    %v1546 = vadd.f32 %v206, %v1545
    %v1547 = vpop.f32.mrb[0].mxu0
    %v1548 = vadd.f32 %v202, %v1547
    %v1549 = vpop.f32.mrb[0].mxu0
    %v1550 = vadd.f32 %v206, %v1549
    %1551 = vmatprep.mubr.bf16.mxu0 %v342
    %1552 = vmatmul.mubr.bf16.gmra.mrb[0].mxu0 %v341
    %v1553 = vpop.f32.mrb[0].mxu0
    %v1554 = vadd.f32 %v202, %v1553
    %v1555 = vpop.f32.mrb[0].mxu0
    %v1556 = vadd.f32 %v206, %v1555
    %v1557 = vpop.f32.mrb[0].mxu0
    %v1558 = vadd.f32 %v202, %v1557
    %v1559 = vpop.f32.mrb[0].mxu0
    %v1560 = vadd.f32 %v206, %v1559
    %1561 = vmatprep.mubr.bf16.mxu0 %v344
    %1562 = vmatmul.mubr.bf16.gmra.mrb[0].mxu0 %v343
    %v1563 = vpop.f32.mrb[0].mxu0
    %v1564 = vadd.f32 %v202, %v1563
    %v1565 = vpop.f32.mrb[0].mxu0
    %v1566 = vadd.f32 %v206, %v1565
    %v1567 = vpop.f32.mrb[0].mxu0
    %v1568 = vadd.f32 %v202, %v1567
    %v1569 = vpop.f32.mrb[0].mxu0
    %v1570 = vadd.f32 %v206, %v1569
    %1571 = vmatprep.mubr.bf16.mxu0 %v346
    %1572 = vmatmul.mubr.bf16.gmra.mrb[0].mxu0 %v345
    %v1573 = vpop.f32.mrb[0].mxu0
    %v1574 = vadd.f32 %v202, %v1573
    %v1575 = vpop.f32.mrb[0].mxu0
    %v1576 = vadd.f32 %v206, %v1575
    %v1577 = vpop.f32.mrb[0].mxu0
    %v1578 = vadd.f32 %v202, %v1577
    %v1579 = vpop.f32.mrb[0].mxu0
    %v1580 = vadd.f32 %v206, %v1579
    %1581 = vmatprep.mubr.bf16.mxu0 %v348
    %1582 = vmatmul.mubr.bf16.gmra.mrb[0].mxu0 %v347
    %v1583 = vpop.f32.mrb[0].mxu0
    %v1584 = vadd.f32 %v202, %v1583
    %v1585 = vpop.f32.mrb[0].mxu0
    %v1586 = vadd.f32 %v206, %v1585
    %v1587 = vpop.f32.mrb[0].mxu0
    %v1588 = vadd.f32 %v202, %v1587
    %v1589 = vpop.f32.mrb[0].mxu0
    %v1590 = vadd.f32 %v206, %v1589
    %1591 = vmatprep.mubr.bf16.mxu0 %v350
    %1592 = vmatmul.mubr.bf16.gmra.mrb[0].mxu0 %v349
    %v1593 = vpop.f32.mrb[0].mxu0
    %v1594 = vadd.f32 %v202, %v1593
    %v1595 = vpop.f32.mrb[0].mxu0
    %v1596 = vadd.f32 %v206, %v1595
    %v1597 = vpop.f32.mrb[0].mxu0
    %v1598 = vadd.f32 %v202, %v1597
    %v1599 = vpop.f32.mrb[0].mxu0
    %v1600 = vadd.f32 %v206, %v1599
    %1601 = vdwg.mxu0
    %1602 = vmatprep.subr.bf16.mxu0 %v774
    %1603 = vmatpush1.bf16.msra.mxu0 %v773
    %1604 = vmatprep.subr.bf16.mxu0 %v782
    %1605 = vmatpush1.bf16.msra.mxu0 %v781
    %1606 = vmatprep.subr.bf16.mxu0 %v790
    %1607 = vmatpush1.bf16.msra.mxu0 %v789
    %1608 = vmatprep.subr.bf16.mxu0 %v798
    %1609 = vmatpush1.bf16.msra.mxu0 %v797
    %1610 = vmatprep.subr.bf16.mxu0 %v806
    %1611 = vmatpush1.bf16.msra.mxu0 %v805
    %1612 = vmatprep.subr.bf16.mxu0 %v814
    %1613 = vmatpush1.bf16.msra.mxu0 %v813
    %1614 = vmatprep.subr.bf16.mxu0 %v822
    %1615 = vmatpush1.bf16.msra.mxu0 %v821
    %1616 = vmatprep.subr.bf16.mxu0 %v830
    %1617 = vmatpush1.bf16.msra.mxu0 %v829
    %1618 = vmatprep.subr.bf16.mxu0 %v838
    %1619 = vmatpush1.bf16.msra.mxu0 %v837
    %1620 = vmatprep.subr.bf16.mxu0 %v846
    %1621 = vmatpush1.bf16.msra.mxu0 %v845
    %1622 = vmatprep.subr.bf16.mxu0 %v854
    %1623 = vmatpush1.bf16.msra.mxu0 %v853
    %1624 = vmatprep.subr.bf16.mxu0 %v862
    %1625 = vmatpush1.bf16.msra.mxu0 %v861
    %1626 = vmatprep.subr.bf16.mxu0 %v870
    %1627 = vmatpush1.bf16.msra.mxu0 %v869
    %1628 = vmatprep.subr.bf16.mxu0 %v878
    %1629 = vmatpush1.bf16.msra.mxu0 %v877
    %1630 = vmatprep.subr.bf16.mxu0 %v886
    %1631 = vmatpush1.bf16.msra.mxu0 %v885
    %1632 = vmatprep.subr.bf16.mxu0 %v894
    %1633 = vmatpush1.bf16.msra.mxu0 %v893
    %1634 = vmatprep.mubr.bf16.mxu0 %v320
    %1635 = vmatmul.mubr.bf16.gmra.mrb[0].mxu0 %v319
    %v1636 = vpop.f32.mrb[0].mxu0
    %v1637 = vadd.f32 %v210, %v1636
    %v1638 = vpop.f32.mrb[0].mxu0
    %v1639 = vadd.f32 %v214, %v1638
    %v1640 = vpop.f32.mrb[0].mxu0
    %v1641 = vadd.f32 %v210, %v1640
    %v1642 = vpop.f32.mrb[0].mxu0
    %v1643 = vadd.f32 %v214, %v1642
    %1644 = vmatprep.mubr.bf16.mxu0 %v322
    %1645 = vmatmul.mubr.bf16.gmra.mrb[0].mxu0 %v321
    %v1646 = vpop.f32.mrb[0].mxu0
    %v1647 = vadd.f32 %v210, %v1646
    %v1648 = vpop.f32.mrb[0].mxu0
    %v1649 = vadd.f32 %v214, %v1648
    %v1650 = vpop.f32.mrb[0].mxu0
    %v1651 = vadd.f32 %v210, %v1650
    %v1652 = vpop.f32.mrb[0].mxu0
    %v1653 = vadd.f32 %v214, %v1652
    %1654 = vmatprep.mubr.bf16.mxu0 %v324
    %1655 = vmatmul.mubr.bf16.gmra.mrb[0].mxu0 %v323
    %v1656 = vpop.f32.mrb[0].mxu0
    %v1657 = vadd.f32 %v210, %v1656
    %v1658 = vpop.f32.mrb[0].mxu0
    %v1659 = vadd.f32 %v214, %v1658
    %v1660 = vpop.f32.mrb[0].mxu0
    %v1661 = vadd.f32 %v210, %v1660
    %v1662 = vpop.f32.mrb[0].mxu0
    %v1663 = vadd.f32 %v214, %v1662
    %1664 = vmatprep.mubr.bf16.mxu0 %v326
    %1665 = vmatmul.mubr.bf16.gmra.mrb[0].mxu0 %v325
    %v1666 = vpop.f32.mrb[0].mxu0
    %v1667 = vadd.f32 %v210, %v1666
    %v1668 = vpop.f32.mrb[0].mxu0
    %v1669 = vadd.f32 %v214, %v1668
    %v1670 = vpop.f32.mrb[0].mxu0
    %v1671 = vadd.f32 %v210, %v1670
    %v1672 = vpop.f32.mrb[0].mxu0
    %v1673 = vadd.f32 %v214, %v1672
    %1674 = vmatprep.mubr.bf16.mxu0 %v328
    %1675 = vmatmul.mubr.bf16.gmra.mrb[0].mxu0 %v327
    %v1676 = vpop.f32.mrb[0].mxu0
    %v1677 = vadd.f32 %v210, %v1676
    %v1678 = vpop.f32.mrb[0].mxu0
    %v1679 = vadd.f32 %v214, %v1678
    %v1680 = vpop.f32.mrb[0].mxu0
    %v1681 = vadd.f32 %v210, %v1680
    %v1682 = vpop.f32.mrb[0].mxu0
    %v1683 = vadd.f32 %v214, %v1682
    %1684 = vmatprep.mubr.bf16.mxu0 %v330
    %1685 = vmatmul.mubr.bf16.gmra.mrb[0].mxu0 %v329
    %v1686 = vpop.f32.mrb[0].mxu0
    %v1687 = vadd.f32 %v210, %v1686
    %v1688 = vpop.f32.mrb[0].mxu0
    %v1689 = vadd.f32 %v214, %v1688
    %v1690 = vpop.f32.mrb[0].mxu0
    %v1691 = vadd.f32 %v210, %v1690
    %v1692 = vpop.f32.mrb[0].mxu0
    %v1693 = vadd.f32 %v214, %v1692
    %1694 = vmatprep.mubr.bf16.mxu0 %v332
    %1695 = vmatmul.mubr.bf16.gmra.mrb[0].mxu0 %v331
    %v1696 = vpop.f32.mrb[0].mxu0
    %v1697 = vadd.f32 %v210, %v1696
    %v1698 = vpop.f32.mrb[0].mxu0
    %v1699 = vadd.f32 %v214, %v1698
    %v1700 = vpop.f32.mrb[0].mxu0
    %v1701 = vadd.f32 %v210, %v1700
    %v1702 = vpop.f32.mrb[0].mxu0
    %v1703 = vadd.f32 %v214, %v1702
    %1704 = vmatprep.mubr.bf16.mxu0 %v334
    %1705 = vmatmul.mubr.bf16.gmra.mrb[0].mxu0 %v333
    %v1706 = vpop.f32.mrb[0].mxu0
    %v1707 = vadd.f32 %v210, %v1706
    %v1708 = vpop.f32.mrb[0].mxu0
    %v1709 = vadd.f32 %v214, %v1708
    %v1710 = vpop.f32.mrb[0].mxu0
    %v1711 = vadd.f32 %v210, %v1710
    %v1712 = vpop.f32.mrb[0].mxu0
    %v1713 = vadd.f32 %v214, %v1712
    %1714 = vmatprep.mubr.bf16.mxu0 %v336
    %1715 = vmatmul.mubr.bf16.gmra.mrb[0].mxu0 %v335
    %v1716 = vpop.f32.mrb[0].mxu0
    %v1717 = vadd.f32 %v210, %v1716
    %v1718 = vpop.f32.mrb[0].mxu0
    %v1719 = vadd.f32 %v214, %v1718
    %v1720 = vpop.f32.mrb[0].mxu0
    %v1721 = vadd.f32 %v210, %v1720
    %v1722 = vpop.f32.mrb[0].mxu0
    %v1723 = vadd.f32 %v214, %v1722
    %1724 = vmatprep.mubr.bf16.mxu0 %v338
    %1725 = vmatmul.mubr.bf16.gmra.mrb[0].mxu0 %v337
    %v1726 = vpop.f32.mrb[0].mxu0
    %v1727 = vadd.f32 %v210, %v1726
    %v1728 = vpop.f32.mrb[0].mxu0
    %v1729 = vadd.f32 %v214, %v1728
    %v1730 = vpop.f32.mrb[0].mxu0
    %v1731 = vadd.f32 %v210, %v1730
    %v1732 = vpop.f32.mrb[0].mxu0
    %v1733 = vadd.f32 %v214, %v1732
    %1734 = vmatprep.mubr.bf16.mxu0 %v340
    %1735 = vmatmul.mubr.bf16.gmra.mrb[0].mxu0 %v339
    %v1736 = vpop.f32.mrb[0].mxu0
    %v1737 = vadd.f32 %v210, %v1736
    %v1738 = vpop.f32.mrb[0].mxu0
    %v1739 = vadd.f32 %v214, %v1738
    %v1740 = vpop.f32.mrb[0].mxu0
    %v1741 = vadd.f32 %v210, %v1740
    %v1742 = vpop.f32.mrb[0].mxu0
    %v1743 = vadd.f32 %v214, %v1742
    %1744 = vmatprep.mubr.bf16.mxu0 %v342
    %1745 = vmatmul.mubr.bf16.gmra.mrb[0].mxu0 %v341
    %v1746 = vpop.f32.mrb[0].mxu0
    %v1747 = vadd.f32 %v210, %v1746
    %v1748 = vpop.f32.mrb[0].mxu0
    %v1749 = vadd.f32 %v214, %v1748
    %v1750 = vpop.f32.mrb[0].mxu0
    %v1751 = vadd.f32 %v210, %v1750
    %v1752 = vpop.f32.mrb[0].mxu0
    %v1753 = vadd.f32 %v214, %v1752
    %1754 = vmatprep.mubr.bf16.mxu0 %v344
    %1755 = vmatmul.mubr.bf16.gmra.mrb[0].mxu0 %v343
    %v1756 = vpop.f32.mrb[0].mxu0
    %v1757 = vadd.f32 %v210, %v1756
    %v1758 = vpop.f32.mrb[0].mxu0
    %v1759 = vadd.f32 %v214, %v1758
    %v1760 = vpop.f32.mrb[0].mxu0
    %v1761 = vadd.f32 %v210, %v1760
    %v1762 = vpop.f32.mrb[0].mxu0
    %v1763 = vadd.f32 %v214, %v1762
    %1764 = vmatprep.mubr.bf16.mxu0 %v346
    %1765 = vmatmul.mubr.bf16.gmra.mrb[0].mxu0 %v345
    %v1766 = vpop.f32.mrb[0].mxu0
    %v1767 = vadd.f32 %v210, %v1766
    %v1768 = vpop.f32.mrb[0].mxu0
    %v1769 = vadd.f32 %v214, %v1768
    %v1770 = vpop.f32.mrb[0].mxu0
    %v1771 = vadd.f32 %v210, %v1770
    %v1772 = vpop.f32.mrb[0].mxu0
    %v1773 = vadd.f32 %v214, %v1772
    %1774 = vmatprep.mubr.bf16.mxu0 %v348
    %1775 = vmatmul.mubr.bf16.gmra.mrb[0].mxu0 %v347
    %v1776 = vpop.f32.mrb[0].mxu0
    %v1777 = vadd.f32 %v210, %v1776
    %v1778 = vpop.f32.mrb[0].mxu0
    %v1779 = vadd.f32 %v214, %v1778
    %v1780 = vpop.f32.mrb[0].mxu0
    %v1781 = vadd.f32 %v210, %v1780
    %v1782 = vpop.f32.mrb[0].mxu0
    %v1783 = vadd.f32 %v214, %v1782
    %1784 = vmatprep.mubr.bf16.mxu0 %v350
    %1785 = vmatmul.mubr.bf16.gmra.mrb[0].mxu0 %v349
    %v1786 = vpop.f32.mrb[0].mxu0
    %v1787 = vadd.f32 %v210, %v1786
    %v1788 = vpop.f32.mrb[0].mxu0
    %v1789 = vadd.f32 %v214, %v1788
    %v1790 = vpop.f32.mrb[0].mxu0
    %v1791 = vadd.f32 %v210, %v1790
    %v1792 = vpop.f32.mrb[0].mxu0
    %v1793 = vadd.f32 %v214, %v1792
    %1794 = vdwg.mxu0
    %v1795 = vmax.f32 %v1058, 0.0
    %v1796 = vmax.f32 %v1060, 0.0
    %v1797 = vmax.f32 %v1251, 0.0
    %v1798 = vmax.f32 %v1253, 0.0
    %v1799 = vmax.f32 %v1444, 0.0
    %v1800 = vmax.f32 %v1446, 0.0
    %v1801 = vmax.f32 %v1637, 0.0
    %v1802 = vmax.f32 %v1639, 0.0
    %v1803 = vmax.f32 %v1062, 0.0
    %v1804 = vmax.f32 %v1064, 0.0
    %v1805 = vmax.f32 %v1255, 0.0
    %v1806 = vmax.f32 %v1257, 0.0
    %v1807 = vmax.f32 %v1448, 0.0
    %v1808 = vmax.f32 %v1450, 0.0
    %v1809 = vmax.f32 %v1641, 0.0
    %v1810 = vmax.f32 %v1643, 0.0
    %v1811 = vmax.f32 %v1068, 0.0
    %v1812 = vmax.f32 %v1070, 0.0
    %v1813 = vmax.f32 %v1261, 0.0
    %v1814 = vmax.f32 %v1263, 0.0
    %v1815 = vmax.f32 %v1454, 0.0
    %v1816 = vmax.f32 %v1456, 0.0
    %v1817 = vmax.f32 %v1647, 0.0
    %v1818 = vmax.f32 %v1649, 0.0
    %v1819 = vmax.f32 %v1072, 0.0
    %v1820 = vmax.f32 %v1074, 0.0
    %v1821 = vmax.f32 %v1265, 0.0
    %v1822 = vmax.f32 %v1267, 0.0
    %v1823 = vmax.f32 %v1458, 0.0
    %v1824 = vmax.f32 %v1460, 0.0
    %v1825 = vmax.f32 %v1651, 0.0
    %v1826 = vmax.f32 %v1653, 0.0
    %v1827 = vmax.f32 %v1078, 0.0
    %v1828 = vmax.f32 %v1080, 0.0
    %v1829 = vmax.f32 %v1271, 0.0
    %v1830 = vmax.f32 %v1273, 0.0
    %v1831 = vmax.f32 %v1464, 0.0
    %v1832 = vmax.f32 %v1466, 0.0
    %v1833 = vmax.f32 %v1657, 0.0
    %v1834 = vmax.f32 %v1659, 0.0
    %v1835 = vmax.f32 %v1082, 0.0
    %v1836 = vmax.f32 %v1084, 0.0
    %v1837 = vmax.f32 %v1275, 0.0
    %v1838 = vmax.f32 %v1277, 0.0
    %v1839 = vmax.f32 %v1468, 0.0
    %v1840 = vmax.f32 %v1470, 0.0
    %v1841 = vmax.f32 %v1661, 0.0
    %v1842 = vmax.f32 %v1663, 0.0
    %v1843 = vmax.f32 %v1088, 0.0
    %v1844 = vmax.f32 %v1090, 0.0
    %v1845 = vmax.f32 %v1281, 0.0
    %v1846 = vmax.f32 %v1283, 0.0
    %v1847 = vmax.f32 %v1474, 0.0
    %v1848 = vmax.f32 %v1476, 0.0
    %v1849 = vmax.f32 %v1667, 0.0
    %v1850 = vmax.f32 %v1669, 0.0
    %v1851 = vmax.f32 %v1092, 0.0
    %v1852 = vmax.f32 %v1094, 0.0
    %v1853 = vmax.f32 %v1285, 0.0
    %v1854 = vmax.f32 %v1287, 0.0
    %v1855 = vmax.f32 %v1478, 0.0
    %v1856 = vmax.f32 %v1480, 0.0
    %v1857 = vmax.f32 %v1671, 0.0
    %v1858 = vmax.f32 %v1673, 0.0
    %v1859 = vmax.f32 %v1098, 0.0
    %v1860 = vmax.f32 %v1100, 0.0
    %v1861 = vmax.f32 %v1291, 0.0
    %v1862 = vmax.f32 %v1293, 0.0
    %v1863 = vmax.f32 %v1484, 0.0
    %v1864 = vmax.f32 %v1486, 0.0
    %v1865 = vmax.f32 %v1677, 0.0
    %v1866 = vmax.f32 %v1679, 0.0
    %v1867 = vmax.f32 %v1102, 0.0
    %v1868 = vmax.f32 %v1104, 0.0
    %v1869 = vmax.f32 %v1295, 0.0
    %v1870 = vmax.f32 %v1297, 0.0
    %v1871 = vmax.f32 %v1488, 0.0
    %v1872 = vmax.f32 %v1490, 0.0
    %v1873 = vmax.f32 %v1681, 0.0
    %v1874 = vmax.f32 %v1683, 0.0
    %v1875 = vmax.f32 %v1108, 0.0
    %v1876 = vmax.f32 %v1110, 0.0
    %v1877 = vmax.f32 %v1301, 0.0
    %v1878 = vmax.f32 %v1303, 0.0
    %v1879 = vmax.f32 %v1494, 0.0
    %v1880 = vmax.f32 %v1496, 0.0
    %v1881 = vmax.f32 %v1687, 0.0
    %v1882 = vmax.f32 %v1689, 0.0
    %v1883 = vmax.f32 %v1112, 0.0
    %v1884 = vmax.f32 %v1114, 0.0
    %v1885 = vmax.f32 %v1305, 0.0
    %v1886 = vmax.f32 %v1307, 0.0
    %v1887 = vmax.f32 %v1498, 0.0
    %v1888 = vmax.f32 %v1500, 0.0
    %v1889 = vmax.f32 %v1691, 0.0
    %v1890 = vmax.f32 %v1693, 0.0
    %v1891 = vmax.f32 %v1118, 0.0
    %v1892 = vmax.f32 %v1120, 0.0
    %v1893 = vmax.f32 %v1311, 0.0
    %v1894 = vmax.f32 %v1313, 0.0
    %v1895 = vmax.f32 %v1504, 0.0
    %v1896 = vmax.f32 %v1506, 0.0
    %v1897 = vmax.f32 %v1697, 0.0
    %v1898 = vmax.f32 %v1699, 0.0
    %v1899 = vmax.f32 %v1122, 0.0
    %v1900 = vmax.f32 %v1124, 0.0
    %v1901 = vmax.f32 %v1315, 0.0
    %v1902 = vmax.f32 %v1317, 0.0
    %v1903 = vmax.f32 %v1508, 0.0
    %v1904 = vmax.f32 %v1510, 0.0
    %v1905 = vmax.f32 %v1701, 0.0
    %v1906 = vmax.f32 %v1703, 0.0
    %v1907 = vmax.f32 %v1128, 0.0
    %v1908 = vmax.f32 %v1130, 0.0
    %v1909 = vmax.f32 %v1321, 0.0
    %v1910 = vmax.f32 %v1323, 0.0
    %v1911 = vmax.f32 %v1514, 0.0
    %v1912 = vmax.f32 %v1516, 0.0
    %v1913 = vmax.f32 %v1707, 0.0
    %v1914 = vmax.f32 %v1709, 0.0
    %v1915 = vmax.f32 %v1132, 0.0
    %v1916 = vmax.f32 %v1134, 0.0
    %v1917 = vmax.f32 %v1325, 0.0
    %v1918 = vmax.f32 %v1327, 0.0
    %v1919 = vmax.f32 %v1518, 0.0
    %v1920 = vmax.f32 %v1520, 0.0
    %v1921 = vmax.f32 %v1711, 0.0
    %v1922 = vmax.f32 %v1713, 0.0
    %v1923 = vmax.f32 %v1138, 0.0
    %v1924 = vmax.f32 %v1140, 0.0
    %v1925 = vmax.f32 %v1331, 0.0
    %v1926 = vmax.f32 %v1333, 0.0
    %v1927 = vmax.f32 %v1524, 0.0
    %v1928 = vmax.f32 %v1526, 0.0
    %v1929 = vmax.f32 %v1717, 0.0
    %v1930 = vmax.f32 %v1719, 0.0
    %v1931 = vmax.f32 %v1142, 0.0
    %v1932 = vmax.f32 %v1144, 0.0
    %v1933 = vmax.f32 %v1335, 0.0
    %v1934 = vmax.f32 %v1337, 0.0
    %v1935 = vmax.f32 %v1528, 0.0
    %v1936 = vmax.f32 %v1530, 0.0
    %v1937 = vmax.f32 %v1721, 0.0
    %v1938 = vmax.f32 %v1723, 0.0
    %v1939 = vmax.f32 %v1148, 0.0
    %v1940 = vmax.f32 %v1150, 0.0
    %v1941 = vmax.f32 %v1341, 0.0
    %v1942 = vmax.f32 %v1343, 0.0
    %v1943 = vmax.f32 %v1534, 0.0
    %v1944 = vmax.f32 %v1536, 0.0
    %v1945 = vmax.f32 %v1727, 0.0
    %v1946 = vmax.f32 %v1729, 0.0
    %v1947 = vmax.f32 %v1152, 0.0
    %v1948 = vmax.f32 %v1154, 0.0
    %v1949 = vmax.f32 %v1345, 0.0
    %v1950 = vmax.f32 %v1347, 0.0
    %v1951 = vmax.f32 %v1538, 0.0
    %v1952 = vmax.f32 %v1540, 0.0
    %v1953 = vmax.f32 %v1731, 0.0
    %v1954 = vmax.f32 %v1733, 0.0
    %v1955 = vmax.f32 %v1158, 0.0
    %v1956 = vmax.f32 %v1160, 0.0
    %v1957 = vmax.f32 %v1351, 0.0
    %v1958 = vmax.f32 %v1353, 0.0
    %v1959 = vmax.f32 %v1544, 0.0
    %v1960 = vmax.f32 %v1546, 0.0
    %v1961 = vmax.f32 %v1737, 0.0
    %v1962 = vmax.f32 %v1739, 0.0
    %v1963 = vmax.f32 %v1162, 0.0
    %v1964 = vmax.f32 %v1164, 0.0
    %v1965 = vmax.f32 %v1355, 0.0
    %v1966 = vmax.f32 %v1357, 0.0
    %v1967 = vmax.f32 %v1548, 0.0
    %v1968 = vmax.f32 %v1550, 0.0
    %v1969 = vmax.f32 %v1741, 0.0
    %v1970 = vmax.f32 %v1743, 0.0
    %v1971 = vmax.f32 %v1168, 0.0
    %v1972 = vmax.f32 %v1170, 0.0
    %v1973 = vmax.f32 %v1361, 0.0
    %v1974 = vmax.f32 %v1363, 0.0
    %v1975 = vmax.f32 %v1554, 0.0
    %v1976 = vmax.f32 %v1556, 0.0
    %v1977 = vmax.f32 %v1747, 0.0
    %v1978 = vmax.f32 %v1749, 0.0
    %v1979 = vmax.f32 %v1172, 0.0
    %v1980 = vmax.f32 %v1174, 0.0
    %v1981 = vmax.f32 %v1365, 0.0
    %v1982 = vmax.f32 %v1367, 0.0
    %v1983 = vmax.f32 %v1558, 0.0
    %v1984 = vmax.f32 %v1560, 0.0
    %v1985 = vmax.f32 %v1751, 0.0
    %v1986 = vmax.f32 %v1753, 0.0
    %v1987 = vmax.f32 %v1178, 0.0
    %v1988 = vmax.f32 %v1180, 0.0
    %v1989 = vmax.f32 %v1371, 0.0
    %v1990 = vmax.f32 %v1373, 0.0
    %v1991 = vmax.f32 %v1564, 0.0
    %v1992 = vmax.f32 %v1566, 0.0
    %v1993 = vmax.f32 %v1757, 0.0
    %v1994 = vmax.f32 %v1759, 0.0
    %v1995 = vmax.f32 %v1182, 0.0
    %v1996 = vmax.f32 %v1184, 0.0
    %v1997 = vmax.f32 %v1375, 0.0
    %v1998 = vmax.f32 %v1377, 0.0
    %v1999 = vmax.f32 %v1568, 0.0
    %v2000 = vmax.f32 %v1570, 0.0
    %v2001 = vmax.f32 %v1761, 0.0
    %v2002 = vmax.f32 %v1763, 0.0
    %v2003 = vmax.f32 %v1188, 0.0
    %v2004 = vmax.f32 %v1190, 0.0
    %v2005 = vmax.f32 %v1381, 0.0
    %v2006 = vmax.f32 %v1383, 0.0
    %v2007 = vmax.f32 %v1574, 0.0
    %v2008 = vmax.f32 %v1576, 0.0
    %v2009 = vmax.f32 %v1767, 0.0
    %v2010 = vmax.f32 %v1769, 0.0
    %v2011 = vmax.f32 %v1192, 0.0
    %v2012 = vmax.f32 %v1194, 0.0
    %v2013 = vmax.f32 %v1385, 0.0
    %v2014 = vmax.f32 %v1387, 0.0
    %v2015 = vmax.f32 %v1578, 0.0
    %v2016 = vmax.f32 %v1580, 0.0
    %v2017 = vmax.f32 %v1771, 0.0
    %v2018 = vmax.f32 %v1773, 0.0
    %v2019 = vmax.f32 %v1198, 0.0
    %v2020 = vmax.f32 %v1200, 0.0
    %v2021 = vmax.f32 %v1391, 0.0
    %v2022 = vmax.f32 %v1393, 0.0
    %v2023 = vmax.f32 %v1584, 0.0
    %v2024 = vmax.f32 %v1586, 0.0
    %v2025 = vmax.f32 %v1777, 0.0
    %v2026 = vmax.f32 %v1779, 0.0
    %v2027 = vmax.f32 %v1202, 0.0
    %v2028 = vmax.f32 %v1204, 0.0
    %v2029 = vmax.f32 %v1395, 0.0
    %v2030 = vmax.f32 %v1397, 0.0
    %v2031 = vmax.f32 %v1588, 0.0
    %v2032 = vmax.f32 %v1590, 0.0
    %v2033 = vmax.f32 %v1781, 0.0
    %v2034 = vmax.f32 %v1783, 0.0
    %v2035 = vmax.f32 %v1208, 0.0
    %v2036 = vmax.f32 %v1210, 0.0
    %v2037 = vmax.f32 %v1401, 0.0
    %v2038 = vmax.f32 %v1403, 0.0
    %v2039 = vmax.f32 %v1594, 0.0
    %v2040 = vmax.f32 %v1596, 0.0
    %v2041 = vmax.f32 %v1787, 0.0
    %v2042 = vmax.f32 %v1789, 0.0
    %v2043 = vmax.f32 %v1212, 0.0
    %v2044 = vmax.f32 %v1214, 0.0
    %v2045 = vmax.f32 %v1405, 0.0
    %v2046 = vmax.f32 %v1407, 0.0
    %v2047 = vmax.f32 %v1598, 0.0
    %v2048 = vmax.f32 %v1600, 0.0
    %v2049 = vmax.f32 %v1791, 0.0
    %v2050 = vmax.f32 %v1793, 0.0
    %v2051 = vpack.c.bf16 %v1803, %v1795
    %v2052 = vpack.c.bf16 %v1804, %v1796
    %v2053 = vpack.c.bf16 %v1805, %v1797
    %v2054 = vpack.c.bf16 %v1806, %v1798
    %v2055 = vpack.c.bf16 %v1807, %v1799
    %v2056 = vpack.c.bf16 %v1808, %v1800
    %v2057 = vpack.c.bf16 %v1809, %v1801
    %v2058 = vpack.c.bf16 %v1810, %v1802
    %v2059 = vpack.c.bf16 %v1819, %v1811
    %v2060 = vpack.c.bf16 %v1820, %v1812
    %v2061 = vpack.c.bf16 %v1821, %v1813
    %v2062 = vpack.c.bf16 %v1822, %v1814
    %v2063 = vpack.c.bf16 %v1823, %v1815
    %v2064 = vpack.c.bf16 %v1824, %v1816
    %v2065 = vpack.c.bf16 %v1825, %v1817
    %v2066 = vpack.c.bf16 %v1826, %v1818
    %v2067 = vpack.c.bf16 %v1835, %v1827
    %v2068 = vpack.c.bf16 %v1836, %v1828
    %v2069 = vpack.c.bf16 %v1837, %v1829
    %v2070 = vpack.c.bf16 %v1838, %v1830
    %v2071 = vpack.c.bf16 %v1839, %v1831
    %v2072 = vpack.c.bf16 %v1840, %v1832
    %v2073 = vpack.c.bf16 %v1841, %v1833
    %v2074 = vpack.c.bf16 %v1842, %v1834
    %v2075 = vpack.c.bf16 %v1851, %v1843
    %v2076 = vpack.c.bf16 %v1852, %v1844
    %v2077 = vpack.c.bf16 %v1853, %v1845
    %v2078 = vpack.c.bf16 %v1854, %v1846
    %v2079 = vpack.c.bf16 %v1855, %v1847
    %v2080 = vpack.c.bf16 %v1856, %v1848
    %v2081 = vpack.c.bf16 %v1857, %v1849
    %v2082 = vpack.c.bf16 %v1858, %v1850
    %v2083 = vpack.c.bf16 %v1867, %v1859
    %v2084 = vpack.c.bf16 %v1868, %v1860
    %v2085 = vpack.c.bf16 %v1869, %v1861
    %v2086 = vpack.c.bf16 %v1870, %v1862
    %v2087 = vpack.c.bf16 %v1871, %v1863
    %v2088 = vpack.c.bf16 %v1872, %v1864
    %v2089 = vpack.c.bf16 %v1873, %v1865
    %v2090 = vpack.c.bf16 %v1874, %v1866
    %v2091 = vpack.c.bf16 %v1883, %v1875
    %v2092 = vpack.c.bf16 %v1884, %v1876
    %v2093 = vpack.c.bf16 %v1885, %v1877
    %v2094 = vpack.c.bf16 %v1886, %v1878
    %v2095 = vpack.c.bf16 %v1887, %v1879
    %v2096 = vpack.c.bf16 %v1888, %v1880
    %v2097 = vpack.c.bf16 %v1889, %v1881
    %v2098 = vpack.c.bf16 %v1890, %v1882
    %v2099 = vpack.c.bf16 %v1899, %v1891
    %v2100 = vpack.c.bf16 %v1900, %v1892
    %v2101 = vpack.c.bf16 %v1901, %v1893
    %v2102 = vpack.c.bf16 %v1902, %v1894
    %v2103 = vpack.c.bf16 %v1903, %v1895
    %v2104 = vpack.c.bf16 %v1904, %v1896
    %v2105 = vpack.c.bf16 %v1905, %v1897
    %v2106 = vpack.c.bf16 %v1906, %v1898
    %v2107 = vpack.c.bf16 %v1915, %v1907
    %v2108 = vpack.c.bf16 %v1916, %v1908
    %v2109 = vpack.c.bf16 %v1917, %v1909
    %v2110 = vpack.c.bf16 %v1918, %v1910
    %v2111 = vpack.c.bf16 %v1919, %v1911
    %v2112 = vpack.c.bf16 %v1920, %v1912
    %v2113 = vpack.c.bf16 %v1921, %v1913
    %v2114 = vpack.c.bf16 %v1922, %v1914
    %v2115 = vpack.c.bf16 %v1931, %v1923
    %v2116 = vpack.c.bf16 %v1932, %v1924
    %v2117 = vpack.c.bf16 %v1933, %v1925
    %v2118 = vpack.c.bf16 %v1934, %v1926
    %v2119 = vpack.c.bf16 %v1935, %v1927
    %v2120 = vpack.c.bf16 %v1936, %v1928
    %v2121 = vpack.c.bf16 %v1937, %v1929
    %v2122 = vpack.c.bf16 %v1938, %v1930
    %v2123 = vpack.c.bf16 %v1947, %v1939
    %v2124 = vpack.c.bf16 %v1948, %v1940
    %v2125 = vpack.c.bf16 %v1949, %v1941
    %v2126 = vpack.c.bf16 %v1950, %v1942
    %v2127 = vpack.c.bf16 %v1951, %v1943
    %v2128 = vpack.c.bf16 %v1952, %v1944
    %v2129 = vpack.c.bf16 %v1953, %v1945
    %v2130 = vpack.c.bf16 %v1954, %v1946
    %v2131 = vpack.c.bf16 %v1963, %v1955
    %v2132 = vpack.c.bf16 %v1964, %v1956
    %v2133 = vpack.c.bf16 %v1965, %v1957
    %v2134 = vpack.c.bf16 %v1966, %v1958
    %v2135 = vpack.c.bf16 %v1967, %v1959
    %v2136 = vpack.c.bf16 %v1968, %v1960
    %v2137 = vpack.c.bf16 %v1969, %v1961
    %v2138 = vpack.c.bf16 %v1970, %v1962
    %v2139 = vpack.c.bf16 %v1979, %v1971
    %v2140 = vpack.c.bf16 %v1980, %v1972
    %v2141 = vpack.c.bf16 %v1981, %v1973
    %v2142 = vpack.c.bf16 %v1982, %v1974
    %v2143 = vpack.c.bf16 %v1983, %v1975
    %v2144 = vpack.c.bf16 %v1984, %v1976
    %v2145 = vpack.c.bf16 %v1985, %v1977
    %v2146 = vpack.c.bf16 %v1986, %v1978
    %v2147 = vpack.c.bf16 %v1995, %v1987
    %v2148 = vpack.c.bf16 %v1996, %v1988
    %v2149 = vpack.c.bf16 %v1997, %v1989
    %v2150 = vpack.c.bf16 %v1998, %v1990
    %v2151 = vpack.c.bf16 %v1999, %v1991
    %v2152 = vpack.c.bf16 %v2000, %v1992
    %v2153 = vpack.c.bf16 %v2001, %v1993
    %v2154 = vpack.c.bf16 %v2002, %v1994
    %v2155 = vpack.c.bf16 %v2011, %v2003
    %v2156 = vpack.c.bf16 %v2012, %v2004
    %v2157 = vpack.c.bf16 %v2013, %v2005
    %v2158 = vpack.c.bf16 %v2014, %v2006
    %v2159 = vpack.c.bf16 %v2015, %v2007
    %v2160 = vpack.c.bf16 %v2016, %v2008
    %v2161 = vpack.c.bf16 %v2017, %v2009
    %v2162 = vpack.c.bf16 %v2018, %v2010
    %v2163 = vpack.c.bf16 %v2027, %v2019
    %v2164 = vpack.c.bf16 %v2028, %v2020
    %v2165 = vpack.c.bf16 %v2029, %v2021
    %v2166 = vpack.c.bf16 %v2030, %v2022
    %v2167 = vpack.c.bf16 %v2031, %v2023
    %v2168 = vpack.c.bf16 %v2032, %v2024
    %v2169 = vpack.c.bf16 %v2033, %v2025
    %v2170 = vpack.c.bf16 %v2034, %v2026
    %v2171 = vpack.c.bf16 %v2043, %v2035
    %v2172 = vpack.c.bf16 %v2044, %v2036
    %v2173 = vpack.c.bf16 %v2045, %v2037
    %v2174 = vpack.c.bf16 %v2046, %v2038
    %v2175 = vpack.c.bf16 %v2047, %v2039
    %v2176 = vpack.c.bf16 %v2048, %v2040
    %v2177 = vpack.c.bf16 %v2049, %v2041
    %v2178 = vpack.c.bf16 %v2050, %v2042
    %v2179 = vld [vmem:[%s3] sm:$0xff]
    %v2180 = vld [vmem:[%s3 + $0x8] sm:$0xff]
    %v2181 = vld [vmem:[%s3 + $0x10] sm:$0xff]
    %v2182 = vld [vmem:[%s3 + $0x18] sm:$0xff]
    %v2183 = vld [vmem:[%s3 + $0x20] sm:$0xff]
    %v2184 = vld [vmem:[%s3 + $0x28] sm:$0xff]
    %v2185 = vld [vmem:[%s3 + $0x30] sm:$0xff]
    %v2186 = vld [vmem:[%s3 + $0x38] sm:$0xff]
    %v2187 = vld [vmem:[%s3 + $0x40] sm:$0xff]
    %v2188 = vld [vmem:[%s3 + $0x48] sm:$0xff]
    %v2189 = vld [vmem:[%s3 + $0x50] sm:$0xff]
    %v2190 = vld [vmem:[%s3 + $0x58] sm:$0xff]
    %v2191 = vld [vmem:[%s3 + $0x60] sm:$0xff]
    %v2192 = vld [vmem:[%s3 + $0x68] sm:$0xff]
    %v2193 = vld [vmem:[%s3 + $0x70] sm:$0xff]
    %v2194 = vld [vmem:[%s3 + $0x78] sm:$0xff]
    %v2195 = vld [vmem:[%s3 + $0x80] sm:$0xff]
    %v2196 = vld [vmem:[%s3 + $0x88] sm:$0xff]
    %v2197 = vld [vmem:[%s3 + $0x90] sm:$0xff]
    %v2198 = vld [vmem:[%s3 + $0x98] sm:$0xff]
    %v2199 = vld [vmem:[%s3 + $0xa0] sm:$0xff]
    %v2200 = vld [vmem:[%s3 + $0xa8] sm:$0xff]
    %v2201 = vld [vmem:[%s3 + $0xb0] sm:$0xff]
    %v2202 = vld [vmem:[%s3 + $0xb8] sm:$0xff]
    %v2203 = vld [vmem:[%s3 + $0xc0] sm:$0xff]
    %v2204 = vld [vmem:[%s3 + $0xc8] sm:$0xff]
    %v2205 = vld [vmem:[%s3 + $0xd0] sm:$0xff]
    %v2206 = vld [vmem:[%s3 + $0xd8] sm:$0xff]
    %v2207 = vld [vmem:[%s3 + $0xe0] sm:$0xff]
    %v2208 = vld [vmem:[%s3 + $0xe8] sm:$0xff]
    %v2209 = vld [vmem:[%s3 + $0xf0] sm:$0xff]
    %v2210 = vld [vmem:[%s3 + $0xf8] sm:$0xff]
    %v2211 = vld [vmem:[%s3 + $0x100] sm:$0xff]
    %v2212 = vld [vmem:[%s3 + $0x108] sm:$0xff]
    %v2213 = vld [vmem:[%s3 + $0x110] sm:$0xff]
    %v2214 = vld [vmem:[%s3 + $0x118] sm:$0xff]
    %v2215 = vld [vmem:[%s3 + $0x120] sm:$0xff]
    %v2216 = vld [vmem:[%s3 + $0x128] sm:$0xff]
    %v2217 = vld [vmem:[%s3 + $0x130] sm:$0xff]
    %v2218 = vld [vmem:[%s3 + $0x138] sm:$0xff]
    %v2219 = vld [vmem:[%s3 + $0x140] sm:$0xff]
    %v2220 = vld [vmem:[%s3 + $0x148] sm:$0xff]
    %v2221 = vld [vmem:[%s3 + $0x150] sm:$0xff]
    %v2222 = vld [vmem:[%s3 + $0x158] sm:$0xff]
    %v2223 = vld [vmem:[%s3 + $0x160] sm:$0xff]
    %v2224 = vld [vmem:[%s3 + $0x168] sm:$0xff]
    %v2225 = vld [vmem:[%s3 + $0x170] sm:$0xff]
    %v2226 = vld [vmem:[%s3 + $0x178] sm:$0xff]
    %v2227 = vld [vmem:[%s3 + $0x180] sm:$0xff]
    %v2228 = vld [vmem:[%s3 + $0x188] sm:$0xff]
    %v2229 = vld [vmem:[%s3 + $0x190] sm:$0xff]
    %v2230 = vld [vmem:[%s3 + $0x198] sm:$0xff]
    %v2231 = vld [vmem:[%s3 + $0x1a0] sm:$0xff]
    %v2232 = vld [vmem:[%s3 + $0x1a8] sm:$0xff]
    %v2233 = vld [vmem:[%s3 + $0x1b0] sm:$0xff]
    %v2234 = vld [vmem:[%s3 + $0x1b8] sm:$0xff]
    %v2235 = vld [vmem:[%s3 + $0x1c0] sm:$0xff]
    %v2236 = vld [vmem:[%s3 + $0x1c8] sm:$0xff]
    %v2237 = vld [vmem:[%s3 + $0x1d0] sm:$0xff]
    %v2238 = vld [vmem:[%s3 + $0x1d8] sm:$0xff]
    %v2239 = vld [vmem:[%s3 + $0x1e0] sm:$0xff]
    %v2240 = vld [vmem:[%s3 + $0x1e8] sm:$0xff]
    %v2241 = vld [vmem:[%s3 + $0x1f0] sm:$0xff]
    %v2242 = vld [vmem:[%s3 + $0x1f8] sm:$0xff]
    %v2243 = vld [vmem:[%s3 + $0x200] sm:$0xff]
    %v2244 = vld [vmem:[%s3 + $0x208] sm:$0xff]
    %v2245 = vld [vmem:[%s3 + $0x210] sm:$0xff]
    %v2246 = vld [vmem:[%s3 + $0x218] sm:$0xff]
    %v2247 = vld [vmem:[%s3 + $0x220] sm:$0xff]
    %v2248 = vld [vmem:[%s3 + $0x228] sm:$0xff]
    %v2249 = vld [vmem:[%s3 + $0x230] sm:$0xff]
    %v2250 = vld [vmem:[%s3 + $0x238] sm:$0xff]
    %v2251 = vld [vmem:[%s3 + $0x240] sm:$0xff]
    %v2252 = vld [vmem:[%s3 + $0x248] sm:$0xff]
    %v2253 = vld [vmem:[%s3 + $0x250] sm:$0xff]
    %v2254 = vld [vmem:[%s3 + $0x258] sm:$0xff]
    %v2255 = vld [vmem:[%s3 + $0x260] sm:$0xff]
    %v2256 = vld [vmem:[%s3 + $0x268] sm:$0xff]
    %v2257 = vld [vmem:[%s3 + $0x270] sm:$0xff]
    %v2258 = vld [vmem:[%s3 + $0x278] sm:$0xff]
    %v2259 = vld [vmem:[%s3 + $0x280] sm:$0xff]
    %v2260 = vld [vmem:[%s3 + $0x288] sm:$0xff]
    %v2261 = vld [vmem:[%s3 + $0x290] sm:$0xff]
    %v2262 = vld [vmem:[%s3 + $0x298] sm:$0xff]
    %v2263 = vld [vmem:[%s3 + $0x2a0] sm:$0xff]
    %v2264 = vld [vmem:[%s3 + $0x2a8] sm:$0xff]
    %v2265 = vld [vmem:[%s3 + $0x2b0] sm:$0xff]
    %v2266 = vld [vmem:[%s3 + $0x2b8] sm:$0xff]
    %v2267 = vld [vmem:[%s3 + $0x2c0] sm:$0xff]
    %v2268 = vld [vmem:[%s3 + $0x2c8] sm:$0xff]
    %v2269 = vld [vmem:[%s3 + $0x2d0] sm:$0xff]
    %v2270 = vld [vmem:[%s3 + $0x2d8] sm:$0xff]
    %v2271 = vld [vmem:[%s3 + $0x2e0] sm:$0xff]
    %v2272 = vld [vmem:[%s3 + $0x2e8] sm:$0xff]
    %v2273 = vld [vmem:[%s3 + $0x2f0] sm:$0xff]
    %v2274 = vld [vmem:[%s3 + $0x2f8] sm:$0xff]
    %v2275 = vld [vmem:[%s3 + $0x300] sm:$0xff]
    %v2276 = vld [vmem:[%s3 + $0x308] sm:$0xff]
    %v2277 = vld [vmem:[%s3 + $0x310] sm:$0xff]
    %v2278 = vld [vmem:[%s3 + $0x318] sm:$0xff]
    %v2279 = vld [vmem:[%s3 + $0x320] sm:$0xff]
    %v2280 = vld [vmem:[%s3 + $0x328] sm:$0xff]
    %v2281 = vld [vmem:[%s3 + $0x330] sm:$0xff]
    %v2282 = vld [vmem:[%s3 + $0x338] sm:$0xff]
    %v2283 = vld [vmem:[%s3 + $0x340] sm:$0xff]
    %v2284 = vld [vmem:[%s3 + $0x348] sm:$0xff]
    %v2285 = vld [vmem:[%s3 + $0x350] sm:$0xff]
    %v2286 = vld [vmem:[%s3 + $0x358] sm:$0xff]
    %v2287 = vld [vmem:[%s3 + $0x360] sm:$0xff]
    %v2288 = vld [vmem:[%s3 + $0x368] sm:$0xff]
    %v2289 = vld [vmem:[%s3 + $0x370] sm:$0xff]
    %v2290 = vld [vmem:[%s3 + $0x378] sm:$0xff]
    %v2291 = vld [vmem:[%s3 + $0x380] sm:$0xff]
    %v2292 = vld [vmem:[%s3 + $0x388] sm:$0xff]
    %v2293 = vld [vmem:[%s3 + $0x390] sm:$0xff]
    %v2294 = vld [vmem:[%s3 + $0x398] sm:$0xff]
    %v2295 = vld [vmem:[%s3 + $0x3a0] sm:$0xff]
    %v2296 = vld [vmem:[%s3 + $0x3a8] sm:$0xff]
    %v2297 = vld [vmem:[%s3 + $0x3b0] sm:$0xff]
    %v2298 = vld [vmem:[%s3 + $0x3b8] sm:$0xff]
    %v2299 = vld [vmem:[%s3 + $0x3c0] sm:$0xff]
    %v2300 = vld [vmem:[%s3 + $0x3c8] sm:$0xff]
    %v2301 = vld [vmem:[%s3 + $0x3d0] sm:$0xff]
    %v2302 = vld [vmem:[%s3 + $0x3d8] sm:$0xff]
    %v2303 = vld [vmem:[%s3 + $0x3e0] sm:$0xff]
    %v2304 = vld [vmem:[%s3 + $0x3e8] sm:$0xff]
    %v2305 = vld [vmem:[%s3 + $0x3f0] sm:$0xff]
    %v2306 = vld [vmem:[%s3 + $0x3f8] sm:$0xff]
    %v2307 = vld [vmem:[%s4] sm:$0x3]
    %v2309 = vlaneseq
    %v2310 = vshrl.u32 %v2309, 7
    %v2311 = vsub.s32 0, %v2310
    %v2312 = vrot.slane %v2307, %v2311
    %v2313 = vlaneseq
    %v2314 = vshrl.u32 %v2313, 7
    %v2315 = vsub.s32 1, %v2314
    %v2316 = vrot.slane %v2307, %v2315
    %v2447 = vunpack.c.l.b16 %v2179
    %v2448 = vunpack.c.h.b16 %v2179
    %v2449 = vunpack.c.l.b16 %v2180
    %v2450 = vunpack.c.h.b16 %v2180
    %v2451 = vunpack.c.l.b16 %v2181
    %v2452 = vunpack.c.h.b16 %v2181
    %v2453 = vunpack.c.l.b16 %v2182
    %v2454 = vunpack.c.h.b16 %v2182
    %v2455 = vunpack.c.l.b16 %v2183
    %v2456 = vunpack.c.h.b16 %v2183
    %v2457 = vunpack.c.l.b16 %v2184
    %v2458 = vunpack.c.h.b16 %v2184
    %v2459 = vunpack.c.l.b16 %v2185
    %v2460 = vunpack.c.h.b16 %v2185
    %v2461 = vunpack.c.l.b16 %v2186
    %v2462 = vunpack.c.h.b16 %v2186
    %v2463 = vunpack.c.l.b16 %v2187
    %v2464 = vunpack.c.h.b16 %v2187
    %v2465 = vunpack.c.l.b16 %v2188
    %v2466 = vunpack.c.h.b16 %v2188
    %v2467 = vunpack.c.l.b16 %v2189
    %v2468 = vunpack.c.h.b16 %v2189
    %v2469 = vunpack.c.l.b16 %v2190
    %v2470 = vunpack.c.h.b16 %v2190
    %v2471 = vunpack.c.l.b16 %v2191
    %v2472 = vunpack.c.h.b16 %v2191
    %v2473 = vunpack.c.l.b16 %v2192
    %v2474 = vunpack.c.h.b16 %v2192
    %v2475 = vunpack.c.l.b16 %v2193
    %v2476 = vunpack.c.h.b16 %v2193
    %v2477 = vunpack.c.l.b16 %v2194
    %v2478 = vunpack.c.h.b16 %v2194
    %v2479 = vunpack.c.l.b16 %v2195
    %v2480 = vunpack.c.h.b16 %v2195
    %v2481 = vunpack.c.l.b16 %v2196
    %v2482 = vunpack.c.h.b16 %v2196
    %v2483 = vunpack.c.l.b16 %v2197
    %v2484 = vunpack.c.h.b16 %v2197
    %v2485 = vunpack.c.l.b16 %v2198
    %v2486 = vunpack.c.h.b16 %v2198
    %v2487 = vunpack.c.l.b16 %v2199
    %v2488 = vunpack.c.h.b16 %v2199
    %v2489 = vunpack.c.l.b16 %v2200
    %v2490 = vunpack.c.h.b16 %v2200
    %v2491 = vunpack.c.l.b16 %v2201
    %v2492 = vunpack.c.h.b16 %v2201
    %v2493 = vunpack.c.l.b16 %v2202
    %v2494 = vunpack.c.h.b16 %v2202
    %v2495 = vunpack.c.l.b16 %v2203
    %v2496 = vunpack.c.h.b16 %v2203
    %v2497 = vunpack.c.l.b16 %v2204
    %v2498 = vunpack.c.h.b16 %v2204
    %v2499 = vunpack.c.l.b16 %v2205
    %v2500 = vunpack.c.h.b16 %v2205
    %v2501 = vunpack.c.l.b16 %v2206
    %v2502 = vunpack.c.h.b16 %v2206
    %v2503 = vunpack.c.l.b16 %v2207
    %v2504 = vunpack.c.h.b16 %v2207
    %v2505 = vunpack.c.l.b16 %v2208
    %v2506 = vunpack.c.h.b16 %v2208
    %v2507 = vunpack.c.l.b16 %v2209
    %v2508 = vunpack.c.h.b16 %v2209
    %v2509 = vunpack.c.l.b16 %v2210
    %v2510 = vunpack.c.h.b16 %v2210
    %v2511 = vunpack.c.l.b16 %v2211
    %v2512 = vunpack.c.h.b16 %v2211
    %v2513 = vunpack.c.l.b16 %v2212
    %v2514 = vunpack.c.h.b16 %v2212
    %v2515 = vunpack.c.l.b16 %v2213
    %v2516 = vunpack.c.h.b16 %v2213
    %v2517 = vunpack.c.l.b16 %v2214
    %v2518 = vunpack.c.h.b16 %v2214
    %v2519 = vunpack.c.l.b16 %v2215
    %v2520 = vunpack.c.h.b16 %v2215
    %v2521 = vunpack.c.l.b16 %v2216
    %v2522 = vunpack.c.h.b16 %v2216
    %v2523 = vunpack.c.l.b16 %v2217
    %v2524 = vunpack.c.h.b16 %v2217
    %v2525 = vunpack.c.l.b16 %v2218
    %v2526 = vunpack.c.h.b16 %v2218
    %v2527 = vunpack.c.l.b16 %v2219
    %v2528 = vunpack.c.h.b16 %v2219
    %v2529 = vunpack.c.l.b16 %v2220
    %v2530 = vunpack.c.h.b16 %v2220
    %v2531 = vunpack.c.l.b16 %v2221
    %v2532 = vunpack.c.h.b16 %v2221
    %v2533 = vunpack.c.l.b16 %v2222
    %v2534 = vunpack.c.h.b16 %v2222
    %v2535 = vunpack.c.l.b16 %v2223
    %v2536 = vunpack.c.h.b16 %v2223
    %v2537 = vunpack.c.l.b16 %v2224
    %v2538 = vunpack.c.h.b16 %v2224
    %v2539 = vunpack.c.l.b16 %v2225
    %v2540 = vunpack.c.h.b16 %v2225
    %v2541 = vunpack.c.l.b16 %v2226
    %v2542 = vunpack.c.h.b16 %v2226
    %v2543 = vunpack.c.l.b16 %v2227
    %v2544 = vunpack.c.h.b16 %v2227
    %v2545 = vunpack.c.l.b16 %v2228
    %v2546 = vunpack.c.h.b16 %v2228
    %v2547 = vunpack.c.l.b16 %v2229
    %v2548 = vunpack.c.h.b16 %v2229
    %v2549 = vunpack.c.l.b16 %v2230
    %v2550 = vunpack.c.h.b16 %v2230
    %v2551 = vunpack.c.l.b16 %v2231
    %v2552 = vunpack.c.h.b16 %v2231
    %v2553 = vunpack.c.l.b16 %v2232
    %v2554 = vunpack.c.h.b16 %v2232
    %v2555 = vunpack.c.l.b16 %v2233
    %v2556 = vunpack.c.h.b16 %v2233
    %v2557 = vunpack.c.l.b16 %v2234
    %v2558 = vunpack.c.h.b16 %v2234
    %v2559 = vunpack.c.l.b16 %v2235
    %v2560 = vunpack.c.h.b16 %v2235
    %v2561 = vunpack.c.l.b16 %v2236
    %v2562 = vunpack.c.h.b16 %v2236
    %v2563 = vunpack.c.l.b16 %v2237
    %v2564 = vunpack.c.h.b16 %v2237
    %v2565 = vunpack.c.l.b16 %v2238
    %v2566 = vunpack.c.h.b16 %v2238
    %v2567 = vunpack.c.l.b16 %v2239
    %v2568 = vunpack.c.h.b16 %v2239
    %v2569 = vunpack.c.l.b16 %v2240
    %v2570 = vunpack.c.h.b16 %v2240
    %v2571 = vunpack.c.l.b16 %v2241
    %v2572 = vunpack.c.h.b16 %v2241
    %v2573 = vunpack.c.l.b16 %v2242
    %v2574 = vunpack.c.h.b16 %v2242
    %v2575 = vunpack.c.l.b16 %v2243
    %v2576 = vunpack.c.h.b16 %v2243
    %v2577 = vunpack.c.l.b16 %v2244
    %v2578 = vunpack.c.h.b16 %v2244
    %v2579 = vunpack.c.l.b16 %v2245
    %v2580 = vunpack.c.h.b16 %v2245
    %v2581 = vunpack.c.l.b16 %v2246
    %v2582 = vunpack.c.h.b16 %v2246
    %v2583 = vunpack.c.l.b16 %v2247
    %v2584 = vunpack.c.h.b16 %v2247
    %v2585 = vunpack.c.l.b16 %v2248
    %v2586 = vunpack.c.h.b16 %v2248
    %v2587 = vunpack.c.l.b16 %v2249
    %v2588 = vunpack.c.h.b16 %v2249
    %v2589 = vunpack.c.l.b16 %v2250
    %v2590 = vunpack.c.h.b16 %v2250
    %v2591 = vunpack.c.l.b16 %v2251
    %v2592 = vunpack.c.h.b16 %v2251
    %v2593 = vunpack.c.l.b16 %v2252
    %v2594 = vunpack.c.h.b16 %v2252
    %v2595 = vunpack.c.l.b16 %v2253
    %v2596 = vunpack.c.h.b16 %v2253
    %v2597 = vunpack.c.l.b16 %v2254
    %v2598 = vunpack.c.h.b16 %v2254
    %v2599 = vunpack.c.l.b16 %v2255
    %v2600 = vunpack.c.h.b16 %v2255
    %v2601 = vunpack.c.l.b16 %v2256
    %v2602 = vunpack.c.h.b16 %v2256
    %v2603 = vunpack.c.l.b16 %v2257
    %v2604 = vunpack.c.h.b16 %v2257
    %v2605 = vunpack.c.l.b16 %v2258
    %v2606 = vunpack.c.h.b16 %v2258
    %v2607 = vunpack.c.l.b16 %v2259
    %v2608 = vunpack.c.h.b16 %v2259
    %v2609 = vunpack.c.l.b16 %v2260
    %v2610 = vunpack.c.h.b16 %v2260
    %v2611 = vunpack.c.l.b16 %v2261
    %v2612 = vunpack.c.h.b16 %v2261
    %v2613 = vunpack.c.l.b16 %v2262
    %v2614 = vunpack.c.h.b16 %v2262
    %v2615 = vunpack.c.l.b16 %v2263
    %v2616 = vunpack.c.h.b16 %v2263
    %v2617 = vunpack.c.l.b16 %v2264
    %v2618 = vunpack.c.h.b16 %v2264
    %v2619 = vunpack.c.l.b16 %v2265
    %v2620 = vunpack.c.h.b16 %v2265
    %v2621 = vunpack.c.l.b16 %v2266
    %v2622 = vunpack.c.h.b16 %v2266
    %v2623 = vunpack.c.l.b16 %v2267
    %v2624 = vunpack.c.h.b16 %v2267
    %v2625 = vunpack.c.l.b16 %v2268
    %v2626 = vunpack.c.h.b16 %v2268
    %v2627 = vunpack.c.l.b16 %v2269
    %v2628 = vunpack.c.h.b16 %v2269
    %v2629 = vunpack.c.l.b16 %v2270
    %v2630 = vunpack.c.h.b16 %v2270
    %v2631 = vunpack.c.l.b16 %v2271
    %v2632 = vunpack.c.h.b16 %v2271
    %v2633 = vunpack.c.l.b16 %v2272
    %v2634 = vunpack.c.h.b16 %v2272
    %v2635 = vunpack.c.l.b16 %v2273
    %v2636 = vunpack.c.h.b16 %v2273
    %v2637 = vunpack.c.l.b16 %v2274
    %v2638 = vunpack.c.h.b16 %v2274
    %v2639 = vunpack.c.l.b16 %v2275
    %v2640 = vunpack.c.h.b16 %v2275
    %v2641 = vunpack.c.l.b16 %v2276
    %v2642 = vunpack.c.h.b16 %v2276
    %v2643 = vunpack.c.l.b16 %v2277
    %v2644 = vunpack.c.h.b16 %v2277
    %v2645 = vunpack.c.l.b16 %v2278
    %v2646 = vunpack.c.h.b16 %v2278
    %v2647 = vunpack.c.l.b16 %v2279
    %v2648 = vunpack.c.h.b16 %v2279
    %v2649 = vunpack.c.l.b16 %v2280
    %v2650 = vunpack.c.h.b16 %v2280
    %v2651 = vunpack.c.l.b16 %v2281
    %v2652 = vunpack.c.h.b16 %v2281
    %v2653 = vunpack.c.l.b16 %v2282
    %v2654 = vunpack.c.h.b16 %v2282
    %v2655 = vunpack.c.l.b16 %v2283
    %v2656 = vunpack.c.h.b16 %v2283
    %v2657 = vunpack.c.l.b16 %v2284
    %v2658 = vunpack.c.h.b16 %v2284
    %v2659 = vunpack.c.l.b16 %v2285
    %v2660 = vunpack.c.h.b16 %v2285
    %v2661 = vunpack.c.l.b16 %v2286
    %v2662 = vunpack.c.h.b16 %v2286
    %v2663 = vunpack.c.l.b16 %v2287
    %v2664 = vunpack.c.h.b16 %v2287
    %v2665 = vunpack.c.l.b16 %v2288
    %v2666 = vunpack.c.h.b16 %v2288
    %v2667 = vunpack.c.l.b16 %v2289
    %v2668 = vunpack.c.h.b16 %v2289
    %v2669 = vunpack.c.l.b16 %v2290
    %v2670 = vunpack.c.h.b16 %v2290
    %v2671 = vunpack.c.l.b16 %v2291
    %v2672 = vunpack.c.h.b16 %v2291
    %v2673 = vunpack.c.l.b16 %v2292
    %v2674 = vunpack.c.h.b16 %v2292
    %v2675 = vunpack.c.l.b16 %v2293
    %v2676 = vunpack.c.h.b16 %v2293
    %v2677 = vunpack.c.l.b16 %v2294
    %v2678 = vunpack.c.h.b16 %v2294
    %v2679 = vunpack.c.l.b16 %v2295
    %v2680 = vunpack.c.h.b16 %v2295
    %v2681 = vunpack.c.l.b16 %v2296
    %v2682 = vunpack.c.h.b16 %v2296
    %v2683 = vunpack.c.l.b16 %v2297
    %v2684 = vunpack.c.h.b16 %v2297
    %v2685 = vunpack.c.l.b16 %v2298
    %v2686 = vunpack.c.h.b16 %v2298
    %v2687 = vunpack.c.l.b16 %v2299
    %v2688 = vunpack.c.h.b16 %v2299
    %v2689 = vunpack.c.l.b16 %v2300
    %v2690 = vunpack.c.h.b16 %v2300
    %v2691 = vunpack.c.l.b16 %v2301
    %v2692 = vunpack.c.h.b16 %v2301
    %v2693 = vunpack.c.l.b16 %v2302
    %v2694 = vunpack.c.h.b16 %v2302
    %v2695 = vunpack.c.l.b16 %v2303
    %v2696 = vunpack.c.h.b16 %v2303
    %v2697 = vunpack.c.l.b16 %v2304
    %v2698 = vunpack.c.h.b16 %v2304
    %v2699 = vunpack.c.l.b16 %v2305
    %v2700 = vunpack.c.h.b16 %v2305
    %v2701 = vunpack.c.l.b16 %v2306
    %v2702 = vunpack.c.h.b16 %v2306
    %v2703 = vpack.c.b16 %v2449, %v2447
    %v2704 = vpack.c.b16 %v2450, %v2448
    %v2705 = vpack.c.b16 %v2453, %v2451
    %v2706 = vpack.c.b16 %v2454, %v2452
    %v2707 = vpack.c.b16 %v2457, %v2455
    %v2708 = vpack.c.b16 %v2458, %v2456
    %v2709 = vpack.c.b16 %v2461, %v2459
    %v2710 = vpack.c.b16 %v2462, %v2460
    %v2711 = vpack.c.b16 %v2465, %v2463
    %v2712 = vpack.c.b16 %v2466, %v2464
    %v2713 = vpack.c.b16 %v2469, %v2467
    %v2714 = vpack.c.b16 %v2470, %v2468
    %v2715 = vpack.c.b16 %v2473, %v2471
    %v2716 = vpack.c.b16 %v2474, %v2472
    %v2717 = vpack.c.b16 %v2477, %v2475
    %v2718 = vpack.c.b16 %v2478, %v2476
    %v2719 = vpack.c.b16 %v2481, %v2479
    %v2720 = vpack.c.b16 %v2482, %v2480
    %v2721 = vpack.c.b16 %v2485, %v2483
    %v2722 = vpack.c.b16 %v2486, %v2484
    %v2723 = vpack.c.b16 %v2489, %v2487
    %v2724 = vpack.c.b16 %v2490, %v2488
    %v2725 = vpack.c.b16 %v2493, %v2491
    %v2726 = vpack.c.b16 %v2494, %v2492
    %v2727 = vpack.c.b16 %v2497, %v2495
    %v2728 = vpack.c.b16 %v2498, %v2496
    %v2729 = vpack.c.b16 %v2501, %v2499
    %v2730 = vpack.c.b16 %v2502, %v2500
    %v2731 = vpack.c.b16 %v2505, %v2503
    %v2732 = vpack.c.b16 %v2506, %v2504
    %v2733 = vpack.c.b16 %v2509, %v2507
    %v2734 = vpack.c.b16 %v2510, %v2508
    %v2735 = vpack.c.b16 %v2513, %v2511
    %v2736 = vpack.c.b16 %v2514, %v2512
    %v2737 = vpack.c.b16 %v2517, %v2515
    %v2738 = vpack.c.b16 %v2518, %v2516
    %v2739 = vpack.c.b16 %v2521, %v2519
    %v2740 = vpack.c.b16 %v2522, %v2520
    %v2741 = vpack.c.b16 %v2525, %v2523
    %v2742 = vpack.c.b16 %v2526, %v2524
    %v2743 = vpack.c.b16 %v2529, %v2527
    %v2744 = vpack.c.b16 %v2530, %v2528
    %v2745 = vpack.c.b16 %v2533, %v2531
    %v2746 = vpack.c.b16 %v2534, %v2532
    %v2747 = vpack.c.b16 %v2537, %v2535
    %v2748 = vpack.c.b16 %v2538, %v2536
    %v2749 = vpack.c.b16 %v2541, %v2539
    %v2750 = vpack.c.b16 %v2542, %v2540
    %v2751 = vpack.c.b16 %v2545, %v2543
    %v2752 = vpack.c.b16 %v2546, %v2544
    %v2753 = vpack.c.b16 %v2549, %v2547
    %v2754 = vpack.c.b16 %v2550, %v2548
    %v2755 = vpack.c.b16 %v2553, %v2551
    %v2756 = vpack.c.b16 %v2554, %v2552
    %v2757 = vpack.c.b16 %v2557, %v2555
    %v2758 = vpack.c.b16 %v2558, %v2556
    %v2759 = vpack.c.b16 %v2561, %v2559
    %v2760 = vpack.c.b16 %v2562, %v2560
    %v2761 = vpack.c.b16 %v2565, %v2563
    %v2762 = vpack.c.b16 %v2566, %v2564
    %v2763 = vpack.c.b16 %v2569, %v2567
    %v2764 = vpack.c.b16 %v2570, %v2568
    %v2765 = vpack.c.b16 %v2573, %v2571
    %v2766 = vpack.c.b16 %v2574, %v2572
    %v2767 = vpack.c.b16 %v2577, %v2575
    %v2768 = vpack.c.b16 %v2578, %v2576
    %v2769 = vpack.c.b16 %v2581, %v2579
    %v2770 = vpack.c.b16 %v2582, %v2580
    %v2771 = vpack.c.b16 %v2585, %v2583
    %v2772 = vpack.c.b16 %v2586, %v2584
    %v2773 = vpack.c.b16 %v2589, %v2587
    %v2774 = vpack.c.b16 %v2590, %v2588
    %v2775 = vpack.c.b16 %v2593, %v2591
    %v2776 = vpack.c.b16 %v2594, %v2592
    %v2777 = vpack.c.b16 %v2597, %v2595
    %v2778 = vpack.c.b16 %v2598, %v2596
    %v2779 = vpack.c.b16 %v2601, %v2599
    %v2780 = vpack.c.b16 %v2602, %v2600
    %v2781 = vpack.c.b16 %v2605, %v2603
    %v2782 = vpack.c.b16 %v2606, %v2604
    %v2783 = vpack.c.b16 %v2609, %v2607
    %v2784 = vpack.c.b16 %v2610, %v2608
    %v2785 = vpack.c.b16 %v2613, %v2611
    %v2786 = vpack.c.b16 %v2614, %v2612
    %v2787 = vpack.c.b16 %v2617, %v2615
    %v2788 = vpack.c.b16 %v2618, %v2616
    %v2789 = vpack.c.b16 %v2621, %v2619
    %v2790 = vpack.c.b16 %v2622, %v2620
    %v2791 = vpack.c.b16 %v2625, %v2623
    %v2792 = vpack.c.b16 %v2626, %v2624
    %v2793 = vpack.c.b16 %v2629, %v2627
    %v2794 = vpack.c.b16 %v2630, %v2628
    %v2795 = vpack.c.b16 %v2633, %v2631
    %v2796 = vpack.c.b16 %v2634, %v2632
    %v2797 = vpack.c.b16 %v2637, %v2635
    %v2798 = vpack.c.b16 %v2638, %v2636
    %v2799 = vpack.c.b16 %v2641, %v2639
    %v2800 = vpack.c.b16 %v2642, %v2640
    %v2801 = vpack.c.b16 %v2645, %v2643
    %v2802 = vpack.c.b16 %v2646, %v2644
    %v2803 = vpack.c.b16 %v2649, %v2647
    %v2804 = vpack.c.b16 %v2650, %v2648
    %v2805 = vpack.c.b16 %v2653, %v2651
    %v2806 = vpack.c.b16 %v2654, %v2652
    %v2807 = vpack.c.b16 %v2657, %v2655
    %v2808 = vpack.c.b16 %v2658, %v2656
    %v2809 = vpack.c.b16 %v2661, %v2659
    %v2810 = vpack.c.b16 %v2662, %v2660
    %v2811 = vpack.c.b16 %v2665, %v2663
    %v2812 = vpack.c.b16 %v2666, %v2664
    %v2813 = vpack.c.b16 %v2669, %v2667
    %v2814 = vpack.c.b16 %v2670, %v2668
    %v2815 = vpack.c.b16 %v2673, %v2671
    %v2816 = vpack.c.b16 %v2674, %v2672
    %v2817 = vpack.c.b16 %v2677, %v2675
    %v2818 = vpack.c.b16 %v2678, %v2676
    %v2819 = vpack.c.b16 %v2681, %v2679
    %v2820 = vpack.c.b16 %v2682, %v2680
    %v2821 = vpack.c.b16 %v2685, %v2683
    %v2822 = vpack.c.b16 %v2686, %v2684
    %v2823 = vpack.c.b16 %v2689, %v2687
    %v2824 = vpack.c.b16 %v2690, %v2688
    %v2825 = vpack.c.b16 %v2693, %v2691
    %v2826 = vpack.c.b16 %v2694, %v2692
    %v2827 = vpack.c.b16 %v2697, %v2695
    %v2828 = vpack.c.b16 %v2698, %v2696
    %v2829 = vpack.c.b16 %v2701, %v2699
    %v2830 = vpack.c.b16 %v2702, %v2700
    %2959 = vmatprep.subr.bf16.mxu0 %v2704
    %2960 = vmatpush1.bf16.msra.mxu0 %v2703
    %2961 = vmatprep.subr.bf16.mxu0 %v2706
    %2962 = vmatpush1.bf16.msra.mxu0 %v2705
    %2963 = vmatprep.subr.bf16.mxu0 %v2708
    %2964 = vmatpush1.bf16.msra.mxu0 %v2707
    %2965 = vmatprep.subr.bf16.mxu0 %v2710
    %2966 = vmatpush1.bf16.msra.mxu0 %v2709
    %2967 = vmatprep.subr.bf16.mxu0 %v2712
    %2968 = vmatpush1.bf16.msra.mxu0 %v2711
    %2969 = vmatprep.subr.bf16.mxu0 %v2714
    %2970 = vmatpush1.bf16.msra.mxu0 %v2713
    %2971 = vmatprep.subr.bf16.mxu0 %v2716
    %2972 = vmatpush1.bf16.msra.mxu0 %v2715
    %2973 = vmatprep.subr.bf16.mxu0 %v2718
    %2974 = vmatpush1.bf16.msra.mxu0 %v2717
    %2975 = vmatprep.subr.bf16.mxu0 %v2720
    %2976 = vmatpush1.bf16.msra.mxu0 %v2719
    %2977 = vmatprep.subr.bf16.mxu0 %v2722
    %2978 = vmatpush1.bf16.msra.mxu0 %v2721
    %2979 = vmatprep.subr.bf16.mxu0 %v2724
    %2980 = vmatpush1.bf16.msra.mxu0 %v2723
    %2981 = vmatprep.subr.bf16.mxu0 %v2726
    %2982 = vmatpush1.bf16.msra.mxu0 %v2725
    %2983 = vmatprep.subr.bf16.mxu0 %v2728
    %2984 = vmatpush1.bf16.msra.mxu0 %v2727
    %2985 = vmatprep.subr.bf16.mxu0 %v2730
    %2986 = vmatpush1.bf16.msra.mxu0 %v2729
    %2987 = vmatprep.subr.bf16.mxu0 %v2732
    %2988 = vmatpush1.bf16.msra.mxu0 %v2731
    %2989 = vmatprep.subr.bf16.mxu0 %v2734
    %2990 = vmatpush1.bf16.msra.mxu0 %v2733
    %2991 = vmatprep.mubr.bf16.mxu0 %v2052
    %2992 = vmatmul.mubr.bf16.gmra.mrb[0].mxu0 %v2051
    %v2993 = vpop.f32.mrb[0].mxu0
    %v2994 = vadd.f32 %v2312, %v2993
    %v2995 = vpop.f32.mrb[0].mxu0
    %v2996 = vadd.f32 %v2316, %v2995
    %v2997 = vpop.f32.mrb[0].mxu0
    %v2998 = vadd.f32 %v2312, %v2997
    %v2999 = vpop.f32.mrb[0].mxu0
    %v3000 = vadd.f32 %v2316, %v2999
    %3001 = vmatprep.mubr.bf16.mxu0 %v2060
    %3002 = vmatmul.mubr.bf16.gmra.mrb[0].mxu0 %v2059
    %v3003 = vpop.f32.mrb[0].mxu0
    %v3004 = vadd.f32 %v2312, %v3003
    %v3005 = vpop.f32.mrb[0].mxu0
    %v3006 = vadd.f32 %v2316, %v3005
    %v3007 = vpop.f32.mrb[0].mxu0
    %v3008 = vadd.f32 %v2312, %v3007
    %v3009 = vpop.f32.mrb[0].mxu0
    %v3010 = vadd.f32 %v2316, %v3009
    %3011 = vmatprep.mubr.bf16.mxu0 %v2068
    %3012 = vmatmul.mubr.bf16.gmra.mrb[0].mxu0 %v2067
    %v3013 = vpop.f32.mrb[0].mxu0
    %v3014 = vadd.f32 %v2312, %v3013
    %v3015 = vpop.f32.mrb[0].mxu0
    %v3016 = vadd.f32 %v2316, %v3015
    %v3017 = vpop.f32.mrb[0].mxu0
    %v3018 = vadd.f32 %v2312, %v3017
    %v3019 = vpop.f32.mrb[0].mxu0
    %v3020 = vadd.f32 %v2316, %v3019
    %3021 = vmatprep.mubr.bf16.mxu0 %v2076
    %3022 = vmatmul.mubr.bf16.gmra.mrb[0].mxu0 %v2075
    %v3023 = vpop.f32.mrb[0].mxu0
    %v3024 = vadd.f32 %v2312, %v3023
    %v3025 = vpop.f32.mrb[0].mxu0
    %v3026 = vadd.f32 %v2316, %v3025
    %v3027 = vpop.f32.mrb[0].mxu0
    %v3028 = vadd.f32 %v2312, %v3027
    %v3029 = vpop.f32.mrb[0].mxu0
    %v3030 = vadd.f32 %v2316, %v3029
    %3031 = vmatprep.mubr.bf16.mxu0 %v2084
    %3032 = vmatmul.mubr.bf16.gmra.mrb[0].mxu0 %v2083
    %v3033 = vpop.f32.mrb[0].mxu0
    %v3034 = vadd.f32 %v2312, %v3033
    %v3035 = vpop.f32.mrb[0].mxu0
    %v3036 = vadd.f32 %v2316, %v3035
    %v3037 = vpop.f32.mrb[0].mxu0
    %v3038 = vadd.f32 %v2312, %v3037
    %v3039 = vpop.f32.mrb[0].mxu0
    %v3040 = vadd.f32 %v2316, %v3039
    %3041 = vmatprep.mubr.bf16.mxu0 %v2092
    %3042 = vmatmul.mubr.bf16.gmra.mrb[0].mxu0 %v2091
    %v3043 = vpop.f32.mrb[0].mxu0
    %v3044 = vadd.f32 %v2312, %v3043
    %v3045 = vpop.f32.mrb[0].mxu0
    %v3046 = vadd.f32 %v2316, %v3045
    %v3047 = vpop.f32.mrb[0].mxu0
    %v3048 = vadd.f32 %v2312, %v3047
    %v3049 = vpop.f32.mrb[0].mxu0
    %v3050 = vadd.f32 %v2316, %v3049
    %3051 = vmatprep.mubr.bf16.mxu0 %v2100
    %3052 = vmatmul.mubr.bf16.gmra.mrb[0].mxu0 %v2099
    %v3053 = vpop.f32.mrb[0].mxu0
    %v3054 = vadd.f32 %v2312, %v3053
    %v3055 = vpop.f32.mrb[0].mxu0
    %v3056 = vadd.f32 %v2316, %v3055
    %v3057 = vpop.f32.mrb[0].mxu0
    %v3058 = vadd.f32 %v2312, %v3057
    %v3059 = vpop.f32.mrb[0].mxu0
    %v3060 = vadd.f32 %v2316, %v3059
    %3061 = vmatprep.mubr.bf16.mxu0 %v2108
    %3062 = vmatmul.mubr.bf16.gmra.mrb[0].mxu0 %v2107
    %v3063 = vpop.f32.mrb[0].mxu0
    %v3064 = vadd.f32 %v2312, %v3063
    %v3065 = vpop.f32.mrb[0].mxu0
    %v3066 = vadd.f32 %v2316, %v3065
    %v3067 = vpop.f32.mrb[0].mxu0
    %v3068 = vadd.f32 %v2312, %v3067
    %v3069 = vpop.f32.mrb[0].mxu0
    %v3070 = vadd.f32 %v2316, %v3069
    %3071 = vmatprep.mubr.bf16.mxu0 %v2116
    %3072 = vmatmul.mubr.bf16.gmra.mrb[0].mxu0 %v2115
    %v3073 = vpop.f32.mrb[0].mxu0
    %v3074 = vadd.f32 %v2312, %v3073
    %v3075 = vpop.f32.mrb[0].mxu0
    %v3076 = vadd.f32 %v2316, %v3075
    %v3077 = vpop.f32.mrb[0].mxu0
    %v3078 = vadd.f32 %v2312, %v3077
    %v3079 = vpop.f32.mrb[0].mxu0
    %v3080 = vadd.f32 %v2316, %v3079
    %3081 = vmatprep.mubr.bf16.mxu0 %v2124
    %3082 = vmatmul.mubr.bf16.gmra.mrb[0].mxu0 %v2123
    %v3083 = vpop.f32.mrb[0].mxu0
    %v3084 = vadd.f32 %v2312, %v3083
    %v3085 = vpop.f32.mrb[0].mxu0
    %v3086 = vadd.f32 %v2316, %v3085
    %v3087 = vpop.f32.mrb[0].mxu0
    %v3088 = vadd.f32 %v2312, %v3087
    %v3089 = vpop.f32.mrb[0].mxu0
    %v3090 = vadd.f32 %v2316, %v3089
    %3091 = vmatprep.mubr.bf16.mxu0 %v2132
    %3092 = vmatmul.mubr.bf16.gmra.mrb[0].mxu0 %v2131
    %v3093 = vpop.f32.mrb[0].mxu0
    %v3094 = vadd.f32 %v2312, %v3093
    %v3095 = vpop.f32.mrb[0].mxu0
    %v3096 = vadd.f32 %v2316, %v3095
    %v3097 = vpop.f32.mrb[0].mxu0
    %v3098 = vadd.f32 %v2312, %v3097
    %v3099 = vpop.f32.mrb[0].mxu0
    %v3100 = vadd.f32 %v2316, %v3099
    %3101 = vmatprep.mubr.bf16.mxu0 %v2140
    %3102 = vmatmul.mubr.bf16.gmra.mrb[0].mxu0 %v2139
    %v3103 = vpop.f32.mrb[0].mxu0
    %v3104 = vadd.f32 %v2312, %v3103
    %v3105 = vpop.f32.mrb[0].mxu0
    %v3106 = vadd.f32 %v2316, %v3105
    %v3107 = vpop.f32.mrb[0].mxu0
    %v3108 = vadd.f32 %v2312, %v3107
    %v3109 = vpop.f32.mrb[0].mxu0
    %v3110 = vadd.f32 %v2316, %v3109
    %3111 = vmatprep.mubr.bf16.mxu0 %v2148
    %3112 = vmatmul.mubr.bf16.gmra.mrb[0].mxu0 %v2147
    %v3113 = vpop.f32.mrb[0].mxu0
    %v3114 = vadd.f32 %v2312, %v3113
    %v3115 = vpop.f32.mrb[0].mxu0
    %v3116 = vadd.f32 %v2316, %v3115
    %v3117 = vpop.f32.mrb[0].mxu0
    %v3118 = vadd.f32 %v2312, %v3117
    %v3119 = vpop.f32.mrb[0].mxu0
    %v3120 = vadd.f32 %v2316, %v3119
    %3121 = vmatprep.mubr.bf16.mxu0 %v2156
    %3122 = vmatmul.mubr.bf16.gmra.mrb[0].mxu0 %v2155
    %v3123 = vpop.f32.mrb[0].mxu0
    %v3124 = vadd.f32 %v2312, %v3123
    %v3125 = vpop.f32.mrb[0].mxu0
    %v3126 = vadd.f32 %v2316, %v3125
    %v3127 = vpop.f32.mrb[0].mxu0
    %v3128 = vadd.f32 %v2312, %v3127
    %v3129 = vpop.f32.mrb[0].mxu0
    %v3130 = vadd.f32 %v2316, %v3129
    %3131 = vmatprep.mubr.bf16.mxu0 %v2164
    %3132 = vmatmul.mubr.bf16.gmra.mrb[0].mxu0 %v2163
    %v3133 = vpop.f32.mrb[0].mxu0
    %v3134 = vadd.f32 %v2312, %v3133
    %v3135 = vpop.f32.mrb[0].mxu0
    %v3136 = vadd.f32 %v2316, %v3135
    %v3137 = vpop.f32.mrb[0].mxu0
    %v3138 = vadd.f32 %v2312, %v3137
    %v3139 = vpop.f32.mrb[0].mxu0
    %v3140 = vadd.f32 %v2316, %v3139
    %3141 = vmatprep.mubr.bf16.mxu0 %v2172
    %3142 = vmatmul.mubr.bf16.gmra.mrb[0].mxu0 %v2171
    %v3143 = vpop.f32.mrb[0].mxu0
    %v3144 = vadd.f32 %v2312, %v3143
    %v3145 = vpop.f32.mrb[0].mxu0
    %v3146 = vadd.f32 %v2316, %v3145
    %v3147 = vpop.f32.mrb[0].mxu0
    %v3148 = vadd.f32 %v2312, %v3147
    %v3149 = vpop.f32.mrb[0].mxu0
    %v3150 = vadd.f32 %v2316, %v3149
    %3151 = vdwg.mxu0
    %3152 = vmatprep.subr.bf16.mxu0 %v2736
    %3153 = vmatpush1.bf16.msra.mxu0 %v2735
    %3154 = vmatprep.subr.bf16.mxu0 %v2738
    %3155 = vmatpush1.bf16.msra.mxu0 %v2737
    %3156 = vmatprep.subr.bf16.mxu0 %v2740
    %3157 = vmatpush1.bf16.msra.mxu0 %v2739
    %3158 = vmatprep.subr.bf16.mxu0 %v2742
    %3159 = vmatpush1.bf16.msra.mxu0 %v2741
    %3160 = vmatprep.subr.bf16.mxu0 %v2744
    %3161 = vmatpush1.bf16.msra.mxu0 %v2743
    %3162 = vmatprep.subr.bf16.mxu0 %v2746
    %3163 = vmatpush1.bf16.msra.mxu0 %v2745
    %3164 = vmatprep.subr.bf16.mxu0 %v2748
    %3165 = vmatpush1.bf16.msra.mxu0 %v2747
    %3166 = vmatprep.subr.bf16.mxu0 %v2750
    %3167 = vmatpush1.bf16.msra.mxu0 %v2749
    %3168 = vmatprep.subr.bf16.mxu0 %v2752
    %3169 = vmatpush1.bf16.msra.mxu0 %v2751
    %3170 = vmatprep.subr.bf16.mxu0 %v2754
    %3171 = vmatpush1.bf16.msra.mxu0 %v2753
    %3172 = vmatprep.subr.bf16.mxu0 %v2756
    %3173 = vmatpush1.bf16.msra.mxu0 %v2755
    %3174 = vmatprep.subr.bf16.mxu0 %v2758
    %3175 = vmatpush1.bf16.msra.mxu0 %v2757
    %3176 = vmatprep.subr.bf16.mxu0 %v2760
    %3177 = vmatpush1.bf16.msra.mxu0 %v2759
    %3178 = vmatprep.subr.bf16.mxu0 %v2762
    %3179 = vmatpush1.bf16.msra.mxu0 %v2761
    %3180 = vmatprep.subr.bf16.mxu0 %v2764
    %3181 = vmatpush1.bf16.msra.mxu0 %v2763
    %3182 = vmatprep.subr.bf16.mxu0 %v2766
    %3183 = vmatpush1.bf16.msra.mxu0 %v2765
    %3184 = vmatprep.mubr.bf16.mxu0 %v2054
    %3185 = vmatmul.mubr.bf16.gmra.mrb[0].mxu0 %v2053
    %v3186 = vpop.f32.mrb[0].mxu0
    %v3187 = vadd.f32 %v2994, %v3186
    %v3188 = vpop.f32.mrb[0].mxu0
    %v3189 = vadd.f32 %v2996, %v3188
    %v3190 = vpop.f32.mrb[0].mxu0
    %v3191 = vadd.f32 %v2998, %v3190
    %v3192 = vpop.f32.mrb[0].mxu0
    %v3193 = vadd.f32 %v3000, %v3192
    %3194 = vmatprep.mubr.bf16.mxu0 %v2062
    %3195 = vmatmul.mubr.bf16.gmra.mrb[0].mxu0 %v2061
    %v3196 = vpop.f32.mrb[0].mxu0
    %v3197 = vadd.f32 %v3004, %v3196
    %v3198 = vpop.f32.mrb[0].mxu0
    %v3199 = vadd.f32 %v3006, %v3198
    %v3200 = vpop.f32.mrb[0].mxu0
    %v3201 = vadd.f32 %v3008, %v3200
    %v3202 = vpop.f32.mrb[0].mxu0
    %v3203 = vadd.f32 %v3010, %v3202
    %3204 = vmatprep.mubr.bf16.mxu0 %v2070
    %3205 = vmatmul.mubr.bf16.gmra.mrb[0].mxu0 %v2069
    %v3206 = vpop.f32.mrb[0].mxu0
    %v3207 = vadd.f32 %v3014, %v3206
    %v3208 = vpop.f32.mrb[0].mxu0
    %v3209 = vadd.f32 %v3016, %v3208
    %v3210 = vpop.f32.mrb[0].mxu0
    %v3211 = vadd.f32 %v3018, %v3210
    %v3212 = vpop.f32.mrb[0].mxu0
    %v3213 = vadd.f32 %v3020, %v3212
    %3214 = vmatprep.mubr.bf16.mxu0 %v2078
    %3215 = vmatmul.mubr.bf16.gmra.mrb[0].mxu0 %v2077
    %v3216 = vpop.f32.mrb[0].mxu0
    %v3217 = vadd.f32 %v3024, %v3216
    %v3218 = vpop.f32.mrb[0].mxu0
    %v3219 = vadd.f32 %v3026, %v3218
    %v3220 = vpop.f32.mrb[0].mxu0
    %v3221 = vadd.f32 %v3028, %v3220
    %v3222 = vpop.f32.mrb[0].mxu0
    %v3223 = vadd.f32 %v3030, %v3222
    %3224 = vmatprep.mubr.bf16.mxu0 %v2086
    %3225 = vmatmul.mubr.bf16.gmra.mrb[0].mxu0 %v2085
    %v3226 = vpop.f32.mrb[0].mxu0
    %v3227 = vadd.f32 %v3034, %v3226
    %v3228 = vpop.f32.mrb[0].mxu0
    %v3229 = vadd.f32 %v3036, %v3228
    %v3230 = vpop.f32.mrb[0].mxu0
    %v3231 = vadd.f32 %v3038, %v3230
    %v3232 = vpop.f32.mrb[0].mxu0
    %v3233 = vadd.f32 %v3040, %v3232
    %3234 = vmatprep.mubr.bf16.mxu0 %v2094
    %3235 = vmatmul.mubr.bf16.gmra.mrb[0].mxu0 %v2093
    %v3236 = vpop.f32.mrb[0].mxu0
    %v3237 = vadd.f32 %v3044, %v3236
    %v3238 = vpop.f32.mrb[0].mxu0
    %v3239 = vadd.f32 %v3046, %v3238
    %v3240 = vpop.f32.mrb[0].mxu0
    %v3241 = vadd.f32 %v3048, %v3240
    %v3242 = vpop.f32.mrb[0].mxu0
    %v3243 = vadd.f32 %v3050, %v3242
    %3244 = vmatprep.mubr.bf16.mxu0 %v2102
    %3245 = vmatmul.mubr.bf16.gmra.mrb[0].mxu0 %v2101
    %v3246 = vpop.f32.mrb[0].mxu0
    %v3247 = vadd.f32 %v3054, %v3246
    %v3248 = vpop.f32.mrb[0].mxu0
    %v3249 = vadd.f32 %v3056, %v3248
    %v3250 = vpop.f32.mrb[0].mxu0
    %v3251 = vadd.f32 %v3058, %v3250
    %v3252 = vpop.f32.mrb[0].mxu0
    %v3253 = vadd.f32 %v3060, %v3252
    %3254 = vmatprep.mubr.bf16.mxu0 %v2110
    %3255 = vmatmul.mubr.bf16.gmra.mrb[0].mxu0 %v2109
    %v3256 = vpop.f32.mrb[0].mxu0
    %v3257 = vadd.f32 %v3064, %v3256
    %v3258 = vpop.f32.mrb[0].mxu0
    %v3259 = vadd.f32 %v3066, %v3258
    %v3260 = vpop.f32.mrb[0].mxu0
    %v3261 = vadd.f32 %v3068, %v3260
    %v3262 = vpop.f32.mrb[0].mxu0
    %v3263 = vadd.f32 %v3070, %v3262
    %3264 = vmatprep.mubr.bf16.mxu0 %v2118
    %3265 = vmatmul.mubr.bf16.gmra.mrb[0].mxu0 %v2117
    %v3266 = vpop.f32.mrb[0].mxu0
    %v3267 = vadd.f32 %v3074, %v3266
    %v3268 = vpop.f32.mrb[0].mxu0
    %v3269 = vadd.f32 %v3076, %v3268
    %v3270 = vpop.f32.mrb[0].mxu0
    %v3271 = vadd.f32 %v3078, %v3270
    %v3272 = vpop.f32.mrb[0].mxu0
    %v3273 = vadd.f32 %v3080, %v3272
    %3274 = vmatprep.mubr.bf16.mxu0 %v2126
    %3275 = vmatmul.mubr.bf16.gmra.mrb[0].mxu0 %v2125
    %v3276 = vpop.f32.mrb[0].mxu0
    %v3277 = vadd.f32 %v3084, %v3276
    %v3278 = vpop.f32.mrb[0].mxu0
    %v3279 = vadd.f32 %v3086, %v3278
    %v3280 = vpop.f32.mrb[0].mxu0
    %v3281 = vadd.f32 %v3088, %v3280
    %v3282 = vpop.f32.mrb[0].mxu0
    %v3283 = vadd.f32 %v3090, %v3282
    %3284 = vmatprep.mubr.bf16.mxu0 %v2134
    %3285 = vmatmul.mubr.bf16.gmra.mrb[0].mxu0 %v2133
    %v3286 = vpop.f32.mrb[0].mxu0
    %v3287 = vadd.f32 %v3094, %v3286
    %v3288 = vpop.f32.mrb[0].mxu0
    %v3289 = vadd.f32 %v3096, %v3288
    %v3290 = vpop.f32.mrb[0].mxu0
    %v3291 = vadd.f32 %v3098, %v3290
    %v3292 = vpop.f32.mrb[0].mxu0
    %v3293 = vadd.f32 %v3100, %v3292
    %3294 = vmatprep.mubr.bf16.mxu0 %v2142
    %3295 = vmatmul.mubr.bf16.gmra.mrb[0].mxu0 %v2141
    %v3296 = vpop.f32.mrb[0].mxu0
    %v3297 = vadd.f32 %v3104, %v3296
    %v3298 = vpop.f32.mrb[0].mxu0
    %v3299 = vadd.f32 %v3106, %v3298
    %v3300 = vpop.f32.mrb[0].mxu0
    %v3301 = vadd.f32 %v3108, %v3300
    %v3302 = vpop.f32.mrb[0].mxu0
    %v3303 = vadd.f32 %v3110, %v3302
    %3304 = vmatprep.mubr.bf16.mxu0 %v2150
    %3305 = vmatmul.mubr.bf16.gmra.mrb[0].mxu0 %v2149
    %v3306 = vpop.f32.mrb[0].mxu0
    %v3307 = vadd.f32 %v3114, %v3306
    %v3308 = vpop.f32.mrb[0].mxu0
    %v3309 = vadd.f32 %v3116, %v3308
    %v3310 = vpop.f32.mrb[0].mxu0
    %v3311 = vadd.f32 %v3118, %v3310
    %v3312 = vpop.f32.mrb[0].mxu0
    %v3313 = vadd.f32 %v3120, %v3312
    %3314 = vmatprep.mubr.bf16.mxu0 %v2158
    %3315 = vmatmul.mubr.bf16.gmra.mrb[0].mxu0 %v2157
    %v3316 = vpop.f32.mrb[0].mxu0
    %v3317 = vadd.f32 %v3124, %v3316
    %v3318 = vpop.f32.mrb[0].mxu0
    %v3319 = vadd.f32 %v3126, %v3318
    %v3320 = vpop.f32.mrb[0].mxu0
    %v3321 = vadd.f32 %v3128, %v3320
    %v3322 = vpop.f32.mrb[0].mxu0
    %v3323 = vadd.f32 %v3130, %v3322
    %3324 = vmatprep.mubr.bf16.mxu0 %v2166
    %3325 = vmatmul.mubr.bf16.gmra.mrb[0].mxu0 %v2165
    %v3326 = vpop.f32.mrb[0].mxu0
    %v3327 = vadd.f32 %v3134, %v3326
    %v3328 = vpop.f32.mrb[0].mxu0
    %v3329 = vadd.f32 %v3136, %v3328
    %v3330 = vpop.f32.mrb[0].mxu0
    %v3331 = vadd.f32 %v3138, %v3330
    %v3332 = vpop.f32.mrb[0].mxu0
    %v3333 = vadd.f32 %v3140, %v3332
    %3334 = vmatprep.mubr.bf16.mxu0 %v2174
    %3335 = vmatmul.mubr.bf16.gmra.mrb[0].mxu0 %v2173
    %v3336 = vpop.f32.mrb[0].mxu0
    %v3337 = vadd.f32 %v3144, %v3336
    %v3338 = vpop.f32.mrb[0].mxu0
    %v3339 = vadd.f32 %v3146, %v3338
    %v3340 = vpop.f32.mrb[0].mxu0
    %v3341 = vadd.f32 %v3148, %v3340
    %v3342 = vpop.f32.mrb[0].mxu0
    %v3343 = vadd.f32 %v3150, %v3342
    %3344 = vdwg.mxu0
    %3345 = vmatprep.subr.bf16.mxu0 %v2768
    %3346 = vmatpush1.bf16.msra.mxu0 %v2767
    %3347 = vmatprep.subr.bf16.mxu0 %v2770
    %3348 = vmatpush1.bf16.msra.mxu0 %v2769
    %3349 = vmatprep.subr.bf16.mxu0 %v2772
    %3350 = vmatpush1.bf16.msra.mxu0 %v2771
    %3351 = vmatprep.subr.bf16.mxu0 %v2774
    %3352 = vmatpush1.bf16.msra.mxu0 %v2773
    %3353 = vmatprep.subr.bf16.mxu0 %v2776
    %3354 = vmatpush1.bf16.msra.mxu0 %v2775
    %3355 = vmatprep.subr.bf16.mxu0 %v2778
    %3356 = vmatpush1.bf16.msra.mxu0 %v2777
    %3357 = vmatprep.subr.bf16.mxu0 %v2780
    %3358 = vmatpush1.bf16.msra.mxu0 %v2779
    %3359 = vmatprep.subr.bf16.mxu0 %v2782
    %3360 = vmatpush1.bf16.msra.mxu0 %v2781
    %3361 = vmatprep.subr.bf16.mxu0 %v2784
    %3362 = vmatpush1.bf16.msra.mxu0 %v2783
    %3363 = vmatprep.subr.bf16.mxu0 %v2786
    %3364 = vmatpush1.bf16.msra.mxu0 %v2785
    %3365 = vmatprep.subr.bf16.mxu0 %v2788
    %3366 = vmatpush1.bf16.msra.mxu0 %v2787
    %3367 = vmatprep.subr.bf16.mxu0 %v2790
    %3368 = vmatpush1.bf16.msra.mxu0 %v2789
    %3369 = vmatprep.subr.bf16.mxu0 %v2792
    %3370 = vmatpush1.bf16.msra.mxu0 %v2791
    %3371 = vmatprep.subr.bf16.mxu0 %v2794
    %3372 = vmatpush1.bf16.msra.mxu0 %v2793
    %3373 = vmatprep.subr.bf16.mxu0 %v2796
    %3374 = vmatpush1.bf16.msra.mxu0 %v2795
    %3375 = vmatprep.subr.bf16.mxu0 %v2798
    %3376 = vmatpush1.bf16.msra.mxu0 %v2797
    %3377 = vmatprep.mubr.bf16.mxu0 %v2056
    %3378 = vmatmul.mubr.bf16.gmra.mrb[0].mxu0 %v2055
    %v3379 = vpop.f32.mrb[0].mxu0
    %v3380 = vadd.f32 %v3187, %v3379
    %v3381 = vpop.f32.mrb[0].mxu0
    %v3382 = vadd.f32 %v3189, %v3381
    %v3383 = vpop.f32.mrb[0].mxu0
    %v3384 = vadd.f32 %v3191, %v3383
    %v3385 = vpop.f32.mrb[0].mxu0
    %v3386 = vadd.f32 %v3193, %v3385
    %3387 = vmatprep.mubr.bf16.mxu0 %v2064
    %3388 = vmatmul.mubr.bf16.gmra.mrb[0].mxu0 %v2063
    %v3389 = vpop.f32.mrb[0].mxu0
    %v3390 = vadd.f32 %v3197, %v3389
    %v3391 = vpop.f32.mrb[0].mxu0
    %v3392 = vadd.f32 %v3199, %v3391
    %v3393 = vpop.f32.mrb[0].mxu0
    %v3394 = vadd.f32 %v3201, %v3393
    %v3395 = vpop.f32.mrb[0].mxu0
    %v3396 = vadd.f32 %v3203, %v3395
    %3397 = vmatprep.mubr.bf16.mxu0 %v2072
    %3398 = vmatmul.mubr.bf16.gmra.mrb[0].mxu0 %v2071
    %v3399 = vpop.f32.mrb[0].mxu0
    %v3400 = vadd.f32 %v3207, %v3399
    %v3401 = vpop.f32.mrb[0].mxu0
    %v3402 = vadd.f32 %v3209, %v3401
    %v3403 = vpop.f32.mrb[0].mxu0
    %v3404 = vadd.f32 %v3211, %v3403
    %v3405 = vpop.f32.mrb[0].mxu0
    %v3406 = vadd.f32 %v3213, %v3405
    %3407 = vmatprep.mubr.bf16.mxu0 %v2080
    %3408 = vmatmul.mubr.bf16.gmra.mrb[0].mxu0 %v2079
    %v3409 = vpop.f32.mrb[0].mxu0
    %v3410 = vadd.f32 %v3217, %v3409
    %v3411 = vpop.f32.mrb[0].mxu0
    %v3412 = vadd.f32 %v3219, %v3411
    %v3413 = vpop.f32.mrb[0].mxu0
    %v3414 = vadd.f32 %v3221, %v3413
    %v3415 = vpop.f32.mrb[0].mxu0
    %v3416 = vadd.f32 %v3223, %v3415
    %3417 = vmatprep.mubr.bf16.mxu0 %v2088
    %3418 = vmatmul.mubr.bf16.gmra.mrb[0].mxu0 %v2087
    %v3419 = vpop.f32.mrb[0].mxu0
    %v3420 = vadd.f32 %v3227, %v3419
    %v3421 = vpop.f32.mrb[0].mxu0
    %v3422 = vadd.f32 %v3229, %v3421
    %v3423 = vpop.f32.mrb[0].mxu0
    %v3424 = vadd.f32 %v3231, %v3423
    %v3425 = vpop.f32.mrb[0].mxu0
    %v3426 = vadd.f32 %v3233, %v3425
    %3427 = vmatprep.mubr.bf16.mxu0 %v2096
    %3428 = vmatmul.mubr.bf16.gmra.mrb[0].mxu0 %v2095
    %v3429 = vpop.f32.mrb[0].mxu0
    %v3430 = vadd.f32 %v3237, %v3429
    %v3431 = vpop.f32.mrb[0].mxu0
    %v3432 = vadd.f32 %v3239, %v3431
    %v3433 = vpop.f32.mrb[0].mxu0
    %v3434 = vadd.f32 %v3241, %v3433
    %v3435 = vpop.f32.mrb[0].mxu0
    %v3436 = vadd.f32 %v3243, %v3435
    %3437 = vmatprep.mubr.bf16.mxu0 %v2104
    %3438 = vmatmul.mubr.bf16.gmra.mrb[0].mxu0 %v2103
    %v3439 = vpop.f32.mrb[0].mxu0
    %v3440 = vadd.f32 %v3247, %v3439
    %v3441 = vpop.f32.mrb[0].mxu0
    %v3442 = vadd.f32 %v3249, %v3441
    %v3443 = vpop.f32.mrb[0].mxu0
    %v3444 = vadd.f32 %v3251, %v3443
    %v3445 = vpop.f32.mrb[0].mxu0
    %v3446 = vadd.f32 %v3253, %v3445
    %3447 = vmatprep.mubr.bf16.mxu0 %v2112
    %3448 = vmatmul.mubr.bf16.gmra.mrb[0].mxu0 %v2111
    %v3449 = vpop.f32.mrb[0].mxu0
    %v3450 = vadd.f32 %v3257, %v3449
    %v3451 = vpop.f32.mrb[0].mxu0
    %v3452 = vadd.f32 %v3259, %v3451
    %v3453 = vpop.f32.mrb[0].mxu0
    %v3454 = vadd.f32 %v3261, %v3453
    %v3455 = vpop.f32.mrb[0].mxu0
    %v3456 = vadd.f32 %v3263, %v3455
    %3457 = vmatprep.mubr.bf16.mxu0 %v2120
    %3458 = vmatmul.mubr.bf16.gmra.mrb[0].mxu0 %v2119
    %v3459 = vpop.f32.mrb[0].mxu0
    %v3460 = vadd.f32 %v3267, %v3459
    %v3461 = vpop.f32.mrb[0].mxu0
    %v3462 = vadd.f32 %v3269, %v3461
    %v3463 = vpop.f32.mrb[0].mxu0
    %v3464 = vadd.f32 %v3271, %v3463
    %v3465 = vpop.f32.mrb[0].mxu0
    %v3466 = vadd.f32 %v3273, %v3465
    %3467 = vmatprep.mubr.bf16.mxu0 %v2128
    %3468 = vmatmul.mubr.bf16.gmra.mrb[0].mxu0 %v2127
    %v3469 = vpop.f32.mrb[0].mxu0
    %v3470 = vadd.f32 %v3277, %v3469
    %v3471 = vpop.f32.mrb[0].mxu0
    %v3472 = vadd.f32 %v3279, %v3471
    %v3473 = vpop.f32.mrb[0].mxu0
    %v3474 = vadd.f32 %v3281, %v3473
    %v3475 = vpop.f32.mrb[0].mxu0
    %v3476 = vadd.f32 %v3283, %v3475
    %3477 = vmatprep.mubr.bf16.mxu0 %v2136
    %3478 = vmatmul.mubr.bf16.gmra.mrb[0].mxu0 %v2135
    %v3479 = vpop.f32.mrb[0].mxu0
    %v3480 = vadd.f32 %v3287, %v3479
    %v3481 = vpop.f32.mrb[0].mxu0
    %v3482 = vadd.f32 %v3289, %v3481
    %v3483 = vpop.f32.mrb[0].mxu0
    %v3484 = vadd.f32 %v3291, %v3483
    %v3485 = vpop.f32.mrb[0].mxu0
    %v3486 = vadd.f32 %v3293, %v3485
    %3487 = vmatprep.mubr.bf16.mxu0 %v2144
    %3488 = vmatmul.mubr.bf16.gmra.mrb[0].mxu0 %v2143
    %v3489 = vpop.f32.mrb[0].mxu0
    %v3490 = vadd.f32 %v3297, %v3489
    %v3491 = vpop.f32.mrb[0].mxu0
    %v3492 = vadd.f32 %v3299, %v3491
    %v3493 = vpop.f32.mrb[0].mxu0
    %v3494 = vadd.f32 %v3301, %v3493
    %v3495 = vpop.f32.mrb[0].mxu0
    %v3496 = vadd.f32 %v3303, %v3495
    %3497 = vmatprep.mubr.bf16.mxu0 %v2152
    %3498 = vmatmul.mubr.bf16.gmra.mrb[0].mxu0 %v2151
    %v3499 = vpop.f32.mrb[0].mxu0
    %v3500 = vadd.f32 %v3307, %v3499
    %v3501 = vpop.f32.mrb[0].mxu0
    %v3502 = vadd.f32 %v3309, %v3501
    %v3503 = vpop.f32.mrb[0].mxu0
    %v3504 = vadd.f32 %v3311, %v3503
    %v3505 = vpop.f32.mrb[0].mxu0
    %v3506 = vadd.f32 %v3313, %v3505
    %3507 = vmatprep.mubr.bf16.mxu0 %v2160
    %3508 = vmatmul.mubr.bf16.gmra.mrb[0].mxu0 %v2159
    %v3509 = vpop.f32.mrb[0].mxu0
    %v3510 = vadd.f32 %v3317, %v3509
    %v3511 = vpop.f32.mrb[0].mxu0
    %v3512 = vadd.f32 %v3319, %v3511
    %v3513 = vpop.f32.mrb[0].mxu0
    %v3514 = vadd.f32 %v3321, %v3513
    %v3515 = vpop.f32.mrb[0].mxu0
    %v3516 = vadd.f32 %v3323, %v3515
    %3517 = vmatprep.mubr.bf16.mxu0 %v2168
    %3518 = vmatmul.mubr.bf16.gmra.mrb[0].mxu0 %v2167
    %v3519 = vpop.f32.mrb[0].mxu0
    %v3520 = vadd.f32 %v3327, %v3519
    %v3521 = vpop.f32.mrb[0].mxu0
    %v3522 = vadd.f32 %v3329, %v3521
    %v3523 = vpop.f32.mrb[0].mxu0
    %v3524 = vadd.f32 %v3331, %v3523
    %v3525 = vpop.f32.mrb[0].mxu0
    %v3526 = vadd.f32 %v3333, %v3525
    %3527 = vmatprep.mubr.bf16.mxu0 %v2176
    %3528 = vmatmul.mubr.bf16.gmra.mrb[0].mxu0 %v2175
    %v3529 = vpop.f32.mrb[0].mxu0
    %v3530 = vadd.f32 %v3337, %v3529
    %v3531 = vpop.f32.mrb[0].mxu0
    %v3532 = vadd.f32 %v3339, %v3531
    %v3533 = vpop.f32.mrb[0].mxu0
    %v3534 = vadd.f32 %v3341, %v3533
    %v3535 = vpop.f32.mrb[0].mxu0
    %v3536 = vadd.f32 %v3343, %v3535
    %3537 = vdwg.mxu0
    %3538 = vmatprep.subr.bf16.mxu0 %v2800
    %3539 = vmatpush1.bf16.msra.mxu0 %v2799
    %3540 = vmatprep.subr.bf16.mxu0 %v2802
    %3541 = vmatpush1.bf16.msra.mxu0 %v2801
    %3542 = vmatprep.subr.bf16.mxu0 %v2804
    %3543 = vmatpush1.bf16.msra.mxu0 %v2803
    %3544 = vmatprep.subr.bf16.mxu0 %v2806
    %3545 = vmatpush1.bf16.msra.mxu0 %v2805
    %3546 = vmatprep.subr.bf16.mxu0 %v2808
    %3547 = vmatpush1.bf16.msra.mxu0 %v2807
    %3548 = vmatprep.subr.bf16.mxu0 %v2810
    %3549 = vmatpush1.bf16.msra.mxu0 %v2809
    %3550 = vmatprep.subr.bf16.mxu0 %v2812
    %3551 = vmatpush1.bf16.msra.mxu0 %v2811
    %3552 = vmatprep.subr.bf16.mxu0 %v2814
    %3553 = vmatpush1.bf16.msra.mxu0 %v2813
    %3554 = vmatprep.subr.bf16.mxu0 %v2816
    %3555 = vmatpush1.bf16.msra.mxu0 %v2815
    %3556 = vmatprep.subr.bf16.mxu0 %v2818
    %3557 = vmatpush1.bf16.msra.mxu0 %v2817
    %3558 = vmatprep.subr.bf16.mxu0 %v2820
    %3559 = vmatpush1.bf16.msra.mxu0 %v2819
    %3560 = vmatprep.subr.bf16.mxu0 %v2822
    %3561 = vmatpush1.bf16.msra.mxu0 %v2821
    %3562 = vmatprep.subr.bf16.mxu0 %v2824
    %3563 = vmatpush1.bf16.msra.mxu0 %v2823
    %3564 = vmatprep.subr.bf16.mxu0 %v2826
    %3565 = vmatpush1.bf16.msra.mxu0 %v2825
    %3566 = vmatprep.subr.bf16.mxu0 %v2828
    %3567 = vmatpush1.bf16.msra.mxu0 %v2827
    %3568 = vmatprep.subr.bf16.mxu0 %v2830
    %3569 = vmatpush1.bf16.msra.mxu0 %v2829
    %3570 = vmatprep.mubr.bf16.mxu0 %v2058
    %3571 = vmatmul.mubr.bf16.gmra.mrb[0].mxu0 %v2057
    %v3572 = vpop.f32.mrb[0].mxu0
    %v3573 = vadd.f32 %v3380, %v3572
    %v3574 = vpop.f32.mrb[0].mxu0
    %v3575 = vadd.f32 %v3382, %v3574
    %v3576 = vpop.f32.mrb[0].mxu0
    %v3577 = vadd.f32 %v3384, %v3576
    %v3578 = vpop.f32.mrb[0].mxu0
    %v3579 = vadd.f32 %v3386, %v3578
    %3580 = vmatprep.mubr.bf16.mxu0 %v2066
    %3581 = vmatmul.mubr.bf16.gmra.mrb[0].mxu0 %v2065
    %v3582 = vpop.f32.mrb[0].mxu0
    %v3583 = vadd.f32 %v3390, %v3582
    %v3584 = vpop.f32.mrb[0].mxu0
    %v3585 = vadd.f32 %v3392, %v3584
    %v3586 = vpop.f32.mrb[0].mxu0
    %v3587 = vadd.f32 %v3394, %v3586
    %v3588 = vpop.f32.mrb[0].mxu0
    %v3589 = vadd.f32 %v3396, %v3588
    %3590 = vmatprep.mubr.bf16.mxu0 %v2074
    %3591 = vmatmul.mubr.bf16.gmra.mrb[0].mxu0 %v2073
    %v3592 = vpop.f32.mrb[0].mxu0
    %v3593 = vadd.f32 %v3400, %v3592
    %v3594 = vpop.f32.mrb[0].mxu0
    %v3595 = vadd.f32 %v3402, %v3594
    %v3596 = vpop.f32.mrb[0].mxu0
    %v3597 = vadd.f32 %v3404, %v3596
    %v3598 = vpop.f32.mrb[0].mxu0
    %v3599 = vadd.f32 %v3406, %v3598
    %3600 = vmatprep.mubr.bf16.mxu0 %v2082
    %3601 = vmatmul.mubr.bf16.gmra.mrb[0].mxu0 %v2081
    %v3602 = vpop.f32.mrb[0].mxu0
    %v3603 = vadd.f32 %v3410, %v3602
    %v3604 = vpop.f32.mrb[0].mxu0
    %v3605 = vadd.f32 %v3412, %v3604
    %v3606 = vpop.f32.mrb[0].mxu0
    %v3607 = vadd.f32 %v3414, %v3606
    %v3608 = vpop.f32.mrb[0].mxu0
    %v3609 = vadd.f32 %v3416, %v3608
    %3610 = vmatprep.mubr.bf16.mxu0 %v2090
    %3611 = vmatmul.mubr.bf16.gmra.mrb[0].mxu0 %v2089
    %v3612 = vpop.f32.mrb[0].mxu0
    %v3613 = vadd.f32 %v3420, %v3612
    %v3614 = vpop.f32.mrb[0].mxu0
    %v3615 = vadd.f32 %v3422, %v3614
    %v3616 = vpop.f32.mrb[0].mxu0
    %v3617 = vadd.f32 %v3424, %v3616
    %v3618 = vpop.f32.mrb[0].mxu0
    %v3619 = vadd.f32 %v3426, %v3618
    %3620 = vmatprep.mubr.bf16.mxu0 %v2098
    %3621 = vmatmul.mubr.bf16.gmra.mrb[0].mxu0 %v2097
    %v3622 = vpop.f32.mrb[0].mxu0
    %v3623 = vadd.f32 %v3430, %v3622
    %v3624 = vpop.f32.mrb[0].mxu0
    %v3625 = vadd.f32 %v3432, %v3624
    %v3626 = vpop.f32.mrb[0].mxu0
    %v3627 = vadd.f32 %v3434, %v3626
    %v3628 = vpop.f32.mrb[0].mxu0
    %v3629 = vadd.f32 %v3436, %v3628
    %3630 = vmatprep.mubr.bf16.mxu0 %v2106
    %3631 = vmatmul.mubr.bf16.gmra.mrb[0].mxu0 %v2105
    %v3632 = vpop.f32.mrb[0].mxu0
    %v3633 = vadd.f32 %v3440, %v3632
    %v3634 = vpop.f32.mrb[0].mxu0
    %v3635 = vadd.f32 %v3442, %v3634
    %v3636 = vpop.f32.mrb[0].mxu0
    %v3637 = vadd.f32 %v3444, %v3636
    %v3638 = vpop.f32.mrb[0].mxu0
    %v3639 = vadd.f32 %v3446, %v3638
    %3640 = vmatprep.mubr.bf16.mxu0 %v2114
    %3641 = vmatmul.mubr.bf16.gmra.mrb[0].mxu0 %v2113
    %v3642 = vpop.f32.mrb[0].mxu0
    %v3643 = vadd.f32 %v3450, %v3642
    %v3644 = vpop.f32.mrb[0].mxu0
    %v3645 = vadd.f32 %v3452, %v3644
    %v3646 = vpop.f32.mrb[0].mxu0
    %v3647 = vadd.f32 %v3454, %v3646
    %v3648 = vpop.f32.mrb[0].mxu0
    %v3649 = vadd.f32 %v3456, %v3648
    %3650 = vmatprep.mubr.bf16.mxu0 %v2122
    %3651 = vmatmul.mubr.bf16.gmra.mrb[0].mxu0 %v2121
    %v3652 = vpop.f32.mrb[0].mxu0
    %v3653 = vadd.f32 %v3460, %v3652
    %v3654 = vpop.f32.mrb[0].mxu0
    %v3655 = vadd.f32 %v3462, %v3654
    %v3656 = vpop.f32.mrb[0].mxu0
    %v3657 = vadd.f32 %v3464, %v3656
    %v3658 = vpop.f32.mrb[0].mxu0
    %v3659 = vadd.f32 %v3466, %v3658
    %3660 = vmatprep.mubr.bf16.mxu0 %v2130
    %3661 = vmatmul.mubr.bf16.gmra.mrb[0].mxu0 %v2129
    %v3662 = vpop.f32.mrb[0].mxu0
    %v3663 = vadd.f32 %v3470, %v3662
    %v3664 = vpop.f32.mrb[0].mxu0
    %v3665 = vadd.f32 %v3472, %v3664
    %v3666 = vpop.f32.mrb[0].mxu0
    %v3667 = vadd.f32 %v3474, %v3666
    %v3668 = vpop.f32.mrb[0].mxu0
    %v3669 = vadd.f32 %v3476, %v3668
    %3670 = vmatprep.mubr.bf16.mxu0 %v2138
    %3671 = vmatmul.mubr.bf16.gmra.mrb[0].mxu0 %v2137
    %v3672 = vpop.f32.mrb[0].mxu0
    %v3673 = vadd.f32 %v3480, %v3672
    %v3674 = vpop.f32.mrb[0].mxu0
    %v3675 = vadd.f32 %v3482, %v3674
    %v3676 = vpop.f32.mrb[0].mxu0
    %v3677 = vadd.f32 %v3484, %v3676
    %v3678 = vpop.f32.mrb[0].mxu0
    %v3679 = vadd.f32 %v3486, %v3678
    %3680 = vmatprep.mubr.bf16.mxu0 %v2146
    %3681 = vmatmul.mubr.bf16.gmra.mrb[0].mxu0 %v2145
    %v3682 = vpop.f32.mrb[0].mxu0
    %v3683 = vadd.f32 %v3490, %v3682
    %v3684 = vpop.f32.mrb[0].mxu0
    %v3685 = vadd.f32 %v3492, %v3684
    %v3686 = vpop.f32.mrb[0].mxu0
    %v3687 = vadd.f32 %v3494, %v3686
    %v3688 = vpop.f32.mrb[0].mxu0
    %v3689 = vadd.f32 %v3496, %v3688
    %3690 = vmatprep.mubr.bf16.mxu0 %v2154
    %3691 = vmatmul.mubr.bf16.gmra.mrb[0].mxu0 %v2153
    %v3692 = vpop.f32.mrb[0].mxu0
    %v3693 = vadd.f32 %v3500, %v3692
    %v3694 = vpop.f32.mrb[0].mxu0
    %v3695 = vadd.f32 %v3502, %v3694
    %v3696 = vpop.f32.mrb[0].mxu0
    %v3697 = vadd.f32 %v3504, %v3696
    %v3698 = vpop.f32.mrb[0].mxu0
    %v3699 = vadd.f32 %v3506, %v3698
    %3700 = vmatprep.mubr.bf16.mxu0 %v2162
    %3701 = vmatmul.mubr.bf16.gmra.mrb[0].mxu0 %v2161
    %v3702 = vpop.f32.mrb[0].mxu0
    %v3703 = vadd.f32 %v3510, %v3702
    %v3704 = vpop.f32.mrb[0].mxu0
    %v3705 = vadd.f32 %v3512, %v3704
    %v3706 = vpop.f32.mrb[0].mxu0
    %v3707 = vadd.f32 %v3514, %v3706
    %v3708 = vpop.f32.mrb[0].mxu0
    %v3709 = vadd.f32 %v3516, %v3708
    %3710 = vmatprep.mubr.bf16.mxu0 %v2170
    %3711 = vmatmul.mubr.bf16.gmra.mrb[0].mxu0 %v2169
    %v3712 = vpop.f32.mrb[0].mxu0
    %v3713 = vadd.f32 %v3520, %v3712
    %v3714 = vpop.f32.mrb[0].mxu0
    %v3715 = vadd.f32 %v3522, %v3714
    %v3716 = vpop.f32.mrb[0].mxu0
    %v3717 = vadd.f32 %v3524, %v3716
    %v3718 = vpop.f32.mrb[0].mxu0
    %v3719 = vadd.f32 %v3526, %v3718
    %3720 = vmatprep.mubr.bf16.mxu0 %v2178
    %3721 = vmatmul.mubr.bf16.gmra.mrb[0].mxu0 %v2177
    %v3722 = vpop.f32.mrb[0].mxu0
    %v3723 = vadd.f32 %v3530, %v3722
    %v3724 = vpop.f32.mrb[0].mxu0
    %v3725 = vadd.f32 %v3532, %v3724
    %v3726 = vpop.f32.mrb[0].mxu0
    %v3727 = vadd.f32 %v3534, %v3726
    %v3728 = vpop.f32.mrb[0].mxu0
    %v3729 = vadd.f32 %v3536, %v3728
    %3730 = vdwg.mxu0
    %3731 = vst [vmem:[#allocation2] sm:$0xff] %v3573
    %3732 = vst [vmem:[#allocation2 + $0x8] sm:$0xff] %v3575
    %3733 = vst [vmem:[#allocation2 + $0x10] sm:$0xff] %v3577
    %3734 = vst [vmem:[#allocation2 + $0x18] sm:$0xff] %v3579
    %3735 = vst [vmem:[#allocation2 + $0x20] sm:$0xff] %v3583
    %3736 = vst [vmem:[#allocation2 + $0x28] sm:$0xff] %v3585
    %3737 = vst [vmem:[#allocation2 + $0x30] sm:$0xff] %v3587
    %3738 = vst [vmem:[#allocation2 + $0x38] sm:$0xff] %v3589
    %3739 = vst [vmem:[#allocation2 + $0x40] sm:$0xff] %v3593
    %3740 = vst [vmem:[#allocation2 + $0x48] sm:$0xff] %v3595
    %3741 = vst [vmem:[#allocation2 + $0x50] sm:$0xff] %v3597
    %3742 = vst [vmem:[#allocation2 + $0x58] sm:$0xff] %v3599
    %3743 = vst [vmem:[#allocation2 + $0x60] sm:$0xff] %v3603
    %3744 = vst [vmem:[#allocation2 + $0x68] sm:$0xff] %v3605
    %3745 = vst [vmem:[#allocation2 + $0x70] sm:$0xff] %v3607
    %3746 = vst [vmem:[#allocation2 + $0x78] sm:$0xff] %v3609
    %3747 = vst [vmem:[#allocation2 + $0x80] sm:$0xff] %v3613
    %3748 = vst [vmem:[#allocation2 + $0x88] sm:$0xff] %v3615
    %3749 = vst [vmem:[#allocation2 + $0x90] sm:$0xff] %v3617
    %3750 = vst [vmem:[#allocation2 + $0x98] sm:$0xff] %v3619
    %3751 = vst [vmem:[#allocation2 + $0xa0] sm:$0xff] %v3623
    %3752 = vst [vmem:[#allocation2 + $0xa8] sm:$0xff] %v3625
    %3753 = vst [vmem:[#allocation2 + $0xb0] sm:$0xff] %v3627
    %3754 = vst [vmem:[#allocation2 + $0xb8] sm:$0xff] %v3629
    %3755 = vst [vmem:[#allocation2 + $0xc0] sm:$0xff] %v3633
    %3756 = vst [vmem:[#allocation2 + $0xc8] sm:$0xff] %v3635
    %3757 = vst [vmem:[#allocation2 + $0xd0] sm:$0xff] %v3637
    %3758 = vst [vmem:[#allocation2 + $0xd8] sm:$0xff] %v3639
    %3759 = vst [vmem:[#allocation2 + $0xe0] sm:$0xff] %v3643
    %3760 = vst [vmem:[#allocation2 + $0xe8] sm:$0xff] %v3645
    %3761 = vst [vmem:[#allocation2 + $0xf0] sm:$0xff] %v3647
    %3762 = vst [vmem:[#allocation2 + $0xf8] sm:$0xff] %v3649
    %3763 = vst [vmem:[#allocation2 + $0x100] sm:$0xff] %v3653
    %3764 = vst [vmem:[#allocation2 + $0x108] sm:$0xff] %v3655
    %3765 = vst [vmem:[#allocation2 + $0x110] sm:$0xff] %v3657
    %3766 = vst [vmem:[#allocation2 + $0x118] sm:$0xff] %v3659
    %3767 = vst [vmem:[#allocation2 + $0x120] sm:$0xff] %v3663
    %3768 = vst [vmem:[#allocation2 + $0x128] sm:$0xff] %v3665
    %3769 = vst [vmem:[#allocation2 + $0x130] sm:$0xff] %v3667
    %3770 = vst [vmem:[#allocation2 + $0x138] sm:$0xff] %v3669
    %3771 = vst [vmem:[#allocation2 + $0x140] sm:$0xff] %v3673
    %3772 = vst [vmem:[#allocation2 + $0x148] sm:$0xff] %v3675
    %3773 = vst [vmem:[#allocation2 + $0x150] sm:$0xff] %v3677
    %3774 = vst [vmem:[#allocation2 + $0x158] sm:$0xff] %v3679
    %3775 = vst [vmem:[#allocation2 + $0x160] sm:$0xff] %v3683
    %3776 = vst [vmem:[#allocation2 + $0x168] sm:$0xff] %v3685
    %3777 = vst [vmem:[#allocation2 + $0x170] sm:$0xff] %v3687
    %3778 = vst [vmem:[#allocation2 + $0x178] sm:$0xff] %v3689
    %3779 = vst [vmem:[#allocation2 + $0x180] sm:$0xff] %v3693
    %3780 = vst [vmem:[#allocation2 + $0x188] sm:$0xff] %v3695
    %3781 = vst [vmem:[#allocation2 + $0x190] sm:$0xff] %v3697
    %3782 = vst [vmem:[#allocation2 + $0x198] sm:$0xff] %v3699
    %3783 = vst [vmem:[#allocation2 + $0x1a0] sm:$0xff] %v3703
    %3784 = vst [vmem:[#allocation2 + $0x1a8] sm:$0xff] %v3705
    %3785 = vst [vmem:[#allocation2 + $0x1b0] sm:$0xff] %v3707
    %3786 = vst [vmem:[#allocation2 + $0x1b8] sm:$0xff] %v3709
    %3787 = vst [vmem:[#allocation2 + $0x1c0] sm:$0xff] %v3713
    %3788 = vst [vmem:[#allocation2 + $0x1c8] sm:$0xff] %v3715
    %3789 = vst [vmem:[#allocation2 + $0x1d0] sm:$0xff] %v3717
    %3790 = vst [vmem:[#allocation2 + $0x1d8] sm:$0xff] %v3719
    %3791 = vst [vmem:[#allocation2 + $0x1e0] sm:$0xff] %v3723
    %3792 = vst [vmem:[#allocation2 + $0x1e8] sm:$0xff] %v3725
    %3793 = vst [vmem:[#allocation2 + $0x1f0] sm:$0xff] %v3727
    %3794 = vst [vmem:[#allocation2 + $0x1f8] sm:$0xff] %v3729
    // Predicated region
    $region22: #{_ffn_impl.1} parent=1 // pred_check
      _
    $region23: #{_ffn_impl.1} parent=1 // pred_check_branch
      %3796 = sbr.rel (0) target = $region25
    $region24: #{_ffn_impl.1} parent=1 // pred_region
      %s3798 = ssub.s32 8192, 8192
      %3799 = vsyncadd [#allocation3], %s3798
      %s3800 = sshll.u32 [#allocation2], 4
      %s3801 = int_to_ptr.vmem [resolvable:$true] %s3800
      %3806 = dma.vmem_to_hbm [thread:$0]  %s3801, 8192, %s5, [#allocation3], 256, 256, 16
    $region25: #{_ffn_impl.1} parent=1 // pred_fallthru
      _
    // Predicated region
    $region26: #{_ffn_impl.1} parent=1 // pred_check
      _
    $region27: #{_ffn_impl.1} parent=1 // pred_check_branch
      %3808 = sbr.rel (0) target = $region29
    $region28: #{_ffn_impl.1} parent=1 // pred_region
      %3809 = dma.done [#allocation3], 8192
    $region29: #{_ffn_impl.1} parent=1 // pred_fallthru
      _
    %3810 = vsyncpa [#allocation3], 1

</llo_original>
